<compile_context>
chip_gen: v7x
topology: tpu7x:2x2x1
jax: 0.10.0
libtpu: 0.0.40
codegen_flags: <defaults>
</compile_context>

<pallas_src>
import jax
import jax.numpy as jnp
from jax.experimental import pallas as pl
from jax.experimental.pallas import tpu as pltpu

# ----------------------------- small config --------------------------------
B = 2            # batch
L = 8            # sequence length
D = 32           # embedding dim
H = 4            # attention heads
DH = D // H      # head dim
FFN = 64         # ffn hidden dim
K = 16           # gaussian kernels
VOCAB = 16       # token vocabulary (0 = padding)
NLAYERS = 2
LN_EPS = 1e-5
NEG_INF = float("-inf")
INV_SQRT_2PI = 0.3989422804014327


def _gelu(x):
    # TODO(synk): PyTorch F.gelu defaults to exact erf GELU; tanh approximation used here.
    return 0.5 * x * (1.0 + jnp.tanh(0.7978845608028654 * (x + 0.044715 * x * x * x)))


# ---------------------- kernel 1: gaussian-basis pair bias ----------------------
# Layout: pair axis (B*L*L) on lanes, gaussian kernel axis K on sublanes -> all
# elementwise exp/mul work runs on full-width vregs and the two projections are
# [K,K]@[K,BP] and [H,K]@[K,BP] MXU matmuls.  Output [H, BP] is lane-dense.

def _gbf_kernel(d_ref, m_ref, be_ref, mean_ref, std_ref,
                w1t_ref, b1_ref, w2t_ref, b2_ref, o_ref):
    x = m_ref[...] * d_ref[...] + be_ref[...]             # [1, BP]
    std = jnp.abs(std_ref[...]) + 1e-5                    # [K, 1]
    inv_std = 1.0 / std
    a = (x - mean_ref[...]) * inv_std                     # [K, BP] (broadcast)
    g = jnp.exp(-0.5 * a * a) * (INV_SQRT_2PI * inv_std)  # [K, BP]
    h = jnp.dot(w1t_ref[...], g, preferred_element_type=jnp.float32) + b1_ref[...]
    h = _gelu(h)
    o_ref[...] = (jnp.dot(w2t_ref[...], h, preferred_element_type=jnp.float32)
                  + b2_ref[...])                          # [H, BP]


def gbf_bias(dist_flat, mul_flat, be_flat, params):
    BP = dist_flat.shape[1]

    def full2(shape):
        return pl.BlockSpec(shape, lambda i: (0, 0))

    return pl.pallas_call(
        _gbf_kernel,
        out_shape=jax.ShapeDtypeStruct((H, BP), jnp.float32),
        grid=(1,),
        in_specs=[
            full2((1, BP)), full2((1, BP)), full2((1, BP)),
            full2((K, 1)), full2((K, 1)),
            full2((K, K)), full2((K, 1)),
            full2((H, K)), full2((H, 1)),
        ],
        out_specs=full2((H, BP)),
        compiler_params=pltpu.CompilerParams(dimension_semantics=("arbitrary",)),
    )(dist_flat, mul_flat, be_flat,
      params["gbf_means"], params["gbf_stds"],
      params["gbf_w1t"], params["gbf_b1"],
      params["gbf_w2t"], params["gbf_b2"])


# ---------------- kernel 2: fused transformer encoder (all layers) ----------------

def _encoder_kernel(x_ref, bias_ref, mrow_ref, mcol_ref,
                    emb_g_ref, emb_b_ref,
                    aln_g_ref, aln_b_ref, wqkv_ref, bqkv_ref,
                    wout_ref, bout_ref,
                    fln_g_ref, fln_b_ref, wfc1_ref, bfc1_ref,
                    wfc2_ref, bfc2_ref,
                    fin_g_ref, fin_b_ref,
                    orep_ref, oscore_ref):
    def ln(v, g, b):
        mu = jnp.mean(v, axis=-1, keepdims=True)
        var = jnp.mean((v - mu) ** 2, axis=-1, keepdims=True)
        return (v - mu) * jax.lax.rsqrt(var + LN_EPS) * g + b

    x = ln(x_ref[0], emb_g_ref[...], emb_b_ref[...])       # [L, D]
    x = x * mrow_ref[0]                                    # zero padded token rows

    key_valid = mcol_ref[0] > 0.5                          # [1, L] valid key columns
    scale = DH ** -0.5
    # fill_attn_mask: -inf at padded key columns; bias is carried on-chip across layers
    # (each layer's pre-softmax scores become the next layer's additive bias).
    biases = [jnp.where(key_valid, bias_ref[h, 0], NEG_INF) for h in range(H)]

    for l in range(NLAYERS):
        # ---- self attention (pre-LN); 1/sqrt(dh) folded into q ----
        residual = x
        xl = ln(x, aln_g_ref[l], aln_b_ref[l])
        qkv = jnp.dot(xl, wqkv_ref[l],
                      preferred_element_type=jnp.float32) + bqkv_ref[l]   # [L, 3D]
        q = qkv[:, :D] * scale
        k = qkv[:, D:2 * D]
        v = qkv[:, 2 * D:]
        wo = wout_ref[l]                                   # [D, D]
        attn_proj = bout_ref[l]                            # [1, D], accumulate per head
        new_biases = []
        for h in range(H):
            sl = slice(h * DH, (h + 1) * DH)
            s = jax.lax.dot_general(q[:, sl], k[:, sl],
                                    (((1,), (1,)), ((), ())),
                                    preferred_element_type=jnp.float32) + biases[h]
            new_biases.append(s)                           # pre-softmax scores -> next bias
            m = jnp.max(s, axis=-1, keepdims=True)
            e = jnp.exp(s - m)
            p = e * pl.reciprocal(jnp.sum(e, axis=-1, keepdims=True), approx=True)
            o_h = jnp.dot(p, v[:, sl], preferred_element_type=jnp.float32)
            attn_proj = attn_proj + jnp.dot(o_h, wo[sl, :],
                                            preferred_element_type=jnp.float32)
        biases = new_biases
        x = residual + attn_proj
        # ---- feed forward (pre-LN) ----
        residual = x
        xl = ln(x, fln_g_ref[l], fln_b_ref[l])
        hdn = _gelu(jnp.dot(xl, wfc1_ref[l],
                            preferred_element_type=jnp.float32) + bfc1_ref[l])
        x = residual + jnp.dot(hdn, wfc2_ref[l],
                               preferred_element_type=jnp.float32) + bfc2_ref[l]

    orep_ref[0] = ln(x, fin_g_ref[...], fin_b_ref[...])
    # UniMol.forward: encoder_pair_rep[encoder_pair_rep == -inf] = 0.  The only -inf entries
    # are the padded key columns, so zero them here and skip a post-kernel XLA where().
    for h in range(H):
        oscore_ref[0, h] = jnp.where(key_valid, biases[h], 0.0)


def fused_encoder(x_emb, bias_hbll, mask_row, mask_col, params):
    Bx = x_emb.shape[0]
    lp = params["layers"]

    def const_spec(shape):
        nd = len(shape)
        return pl.BlockSpec(shape, lambda b, _nd=nd: (0,) * _nd)

    in_specs = [
        pl.BlockSpec((1, L, D), lambda b: (b, 0, 0)),
        pl.BlockSpec((H, 1, L, L), lambda b: (0, b, 0, 0)),
        pl.BlockSpec((1, L, 1), lambda b: (b, 0, 0)),
        pl.BlockSpec((1, 1, L), lambda b: (b, 0, 0)),
        const_spec((1, D)), const_spec((1, D)),
        const_spec((NLAYERS, 1, D)), const_spec((NLAYERS, 1, D)),
        const_spec((NLAYERS, D, 3 * D)), const_spec((NLAYERS, 1, 3 * D)),
        const_spec((NLAYERS, D, D)), const_spec((NLAYERS, 1, D)),
        const_spec((NLAYERS, 1, D)), const_spec((NLAYERS, 1, D)),
        const_spec((NLAYERS, D, FFN)), const_spec((NLAYERS, 1, FFN)),
        const_spec((NLAYERS, FFN, D)), const_spec((NLAYERS, 1, D)),
        const_spec((1, D)), const_spec((1, D)),
    ]
    out_specs = (
        pl.BlockSpec((1, L, D), lambda b: (b, 0, 0)),
        pl.BlockSpec((1, H, L, L), lambda b: (b, 0, 0, 0)),
    )
    return pl.pallas_call(
        _encoder_kernel,
        out_shape=(jax.ShapeDtypeStruct((Bx, L, D), jnp.float32),
                   jax.ShapeDtypeStruct((Bx, H, L, L), jnp.float32)),
        grid=(Bx,),
        in_specs=in_specs,
        out_specs=out_specs,
        compiler_params=pltpu.CompilerParams(dimension_semantics=("parallel",)),
    )(x_emb, bias_hbll, mask_row, mask_col,
      params["emb_ln_g"], params["emb_ln_b"],
      lp["attn_ln_g"], lp["attn_ln_b"], lp["w_qkv"], lp["b_qkv"],
      lp["w_out"], lp["b_out"],
      lp["ffn_ln_g"], lp["ffn_ln_b"], lp["w_fc1"], lp["b_fc1"],
      lp["w_fc2"], lp["b_fc2"],
      params["final_ln_g"], params["final_ln_b"])


# ----------------------------- model forward --------------------------------

def unimol_forward(params, seq, seq_mask, coords):
    Bx, Lx = seq.shape

    # ---- GaussianEncoder glue (gathers / distances stay in XLA) ----
    x = params["embed_tokens"][seq]                               # [B, L, D]
    diff = coords[:, :, None, :] - coords[:, None, :, :]
    dist = jnp.sqrt(jnp.sum(diff * diff, axis=-1))                # [B, L, L]
    edge_type = seq[:, :, None] * VOCAB + seq[:, None, :]
    mul = params["gbf_mul"][edge_type, 0]                         # [B, L, L]
    bias_e = params["gbf_bias"][edge_type, 0]

    BP = Bx * Lx * Lx
    gbf = gbf_bias(dist.reshape(1, BP), mul.reshape(1, BP),
                   bias_e.reshape(1, BP), params)                 # [H, B*L*L]
    bias_hbll = gbf.reshape(H, Bx, Lx, Lx)                        # free view (no transpose)

    # padding -inf fill and final -inf -> 0 are handled inside the encoder kernel.
    encoder_rep, scores = fused_encoder(
        x, bias_hbll, seq_mask[..., None], seq_mask[:, None, :], params)

    # encoder_pair_rep = final-layer pre-softmax scores, [B, L, L, H]
    encoder_pair_rep = jnp.transpose(scores, (0, 2, 3, 1))
    # TODO(synk): aux outputs x_norm / delta_encoder_pair_rep_norm (training losses) omitted —
    # they do not affect the returned encoder_rep / encoder_pair_rep.
    return encoder_rep, encoder_pair_rep


# ----------------------------- params init --------------------------------

def init_params(key):
    keys = iter(jax.random.split(key, 64))

    def nrm(shape, s=0.02):
        return (s * jax.random.normal(next(keys), shape)).astype(jnp.float32)

    params = {}
    emb = jax.random.normal(next(keys), (VOCAB, D)).astype(jnp.float32)
    params["embed_tokens"] = emb.at[0].set(0.0)                   # padding_idx = 0
    params["gbf_means"] = jax.random.uniform(next(keys), (K, 1), minval=0.0, maxval=3.0).astype(jnp.float32)
    params["gbf_stds"] = jax.random.uniform(next(keys), (K, 1), minval=0.0, maxval=3.0).astype(jnp.float32)
    params["gbf_mul"] = jnp.ones((VOCAB * VOCAB, 1), jnp.float32)
    params["gbf_bias"] = jnp.zeros((VOCAB * VOCAB, 1), jnp.float32)
    params["gbf_w1t"] = nrm((K, K))                               # stored pre-transposed ([K_out, K_in])
    params["gbf_b1"] = jnp.zeros((K, 1), jnp.float32)
    params["gbf_w2t"] = nrm((H, K))                               # stored pre-transposed ([H, K])
    params["gbf_b2"] = jnp.zeros((H, 1), jnp.float32)
    params["emb_ln_g"] = jnp.ones((1, D), jnp.float32)
    params["emb_ln_b"] = jnp.zeros((1, D), jnp.float32)
    # per-layer params stacked along a leading layer axis (loaded once by the fused kernel)
    params["layers"] = dict(
        attn_ln_g=jnp.ones((NLAYERS, 1, D), jnp.float32),
        attn_ln_b=jnp.zeros((NLAYERS, 1, D), jnp.float32),
        w_qkv=nrm((NLAYERS, D, 3 * D)), b_qkv=jnp.zeros((NLAYERS, 1, 3 * D), jnp.float32),
        w_out=nrm((NLAYERS, D, D)), b_out=jnp.zeros((NLAYERS, 1, D), jnp.float32),
        ffn_ln_g=jnp.ones((NLAYERS, 1, D), jnp.float32),
        ffn_ln_b=jnp.zeros((NLAYERS, 1, D), jnp.float32),
        w_fc1=nrm((NLAYERS, D, FFN)), b_fc1=jnp.zeros((NLAYERS, 1, FFN), jnp.float32),
        w_fc2=nrm((NLAYERS, FFN, D)), b_fc2=jnp.zeros((NLAYERS, 1, D), jnp.float32),
    )
    params["final_ln_g"] = jnp.ones((1, D), jnp.float32)
    params["final_ln_b"] = jnp.zeros((1, D), jnp.float32)
    return params


# ----------------------------- main --------------------------------

if __name__ == "__main__":
    key = jax.random.PRNGKey(0)
    pkey, skey, ckey = jax.random.split(key, 3)
    params = init_params(pkey)

    # batch: 'decoy_seq' tokens, 'decoy_seq_mask' (1=valid, 0=pad), 'decoy_coords' 3D positions
    seq_mask = jnp.ones((B, L), jnp.float32).at[1, 6:].set(0.0)
    seq = jax.random.randint(skey, (B, L), 1, VOCAB)
    seq = jnp.where(seq_mask > 0.5, seq, 0).astype(jnp.int32)
    coords = (5.0 * jax.random.normal(ckey, (B, L, 3))).astype(jnp.float32)

    fwd = jax.jit(unimol_forward)
    encoder_rep, encoder_pair_rep = fwd(params, seq, seq_mask, coords)
    jax.block_until_ready((encoder_rep, encoder_pair_rep))

    assert encoder_rep.shape == (B, L, D)
    assert encoder_pair_rep.shape == (B, L, L, H)
    assert bool(jnp.all(jnp.isfinite(encoder_rep)))
    assert bool(jnp.all(jnp.isfinite(encoder_pair_rep)))
    print("KERNEL_OK")
</pallas_src>

<mosaic_0001>
module attributes {stable_mosaic.version = 11 : i64} {
  func.func @_gbf_kernel(%arg0: i32, %arg1: memref<1x128xf32, #tpu.memory_space<vmem>>, %arg2: memref<1x128xf32, #tpu.memory_space<vmem>>, %arg3: memref<1x128xf32, #tpu.memory_space<vmem>>, %arg4: memref<16x1xf32, #tpu.memory_space<vmem>>, %arg5: memref<16x1xf32, #tpu.memory_space<vmem>>, %arg6: memref<16x16xf32, #tpu.memory_space<vmem>>, %arg7: memref<16x1xf32, #tpu.memory_space<vmem>>, %arg8: memref<4x16xf32, #tpu.memory_space<vmem>>, %arg9: memref<4x1xf32, #tpu.memory_space<vmem>>, %arg10: memref<4x128xf32, #tpu.memory_space<vmem>>) attributes {dimension_semantics = [#tpu.dimension_semantics<arbitrary>], iteration_bounds = array<i64: 1>, scalar_prefetch = 0 : i64, scratch_operands = 0 : i64, tpu.core_type = #tpu.core_type<tc>, window_params = [{pipeline_mode = #tpu.pipeline_mode<synchronous>, transform_indices = @transform_0, window_bounds = array<i64: 1, 128>}, {pipeline_mode = #tpu.pipeline_mode<synchronous>, transform_indices = @transform_1, window_bounds = array<i64: 1, 128>}, {pipeline_mode = #tpu.pipeline_mode<synchronous>, transform_indices = @transform_2, window_bounds = array<i64: 1, 128>}, {pipeline_mode = #tpu.pipeline_mode<synchronous>, transform_indices = @transform_3, window_bounds = array<i64: 16, 1>}, {pipeline_mode = #tpu.pipeline_mode<synchronous>, transform_indices = @transform_4, window_bounds = array<i64: 16, 1>}, {pipeline_mode = #tpu.pipeline_mode<synchronous>, transform_indices = @transform_5, window_bounds = array<i64: 16, 16>}, {pipeline_mode = #tpu.pipeline_mode<synchronous>, transform_indices = @transform_6, window_bounds = array<i64: 16, 1>}, {pipeline_mode = #tpu.pipeline_mode<synchronous>, transform_indices = @transform_7, window_bounds = array<i64: 4, 16>}, {pipeline_mode = #tpu.pipeline_mode<synchronous>, transform_indices = @transform_8, window_bounds = array<i64: 4, 1>}, {pipeline_mode = #tpu.pipeline_mode<synchronous>, transform_indices = @transform_9, window_bounds = array<i64: 4, 128>}]} {
    %c0 = arith.constant 0 : index
    %c0_0 = arith.constant 0 : index
    %0 = vector.load %arg2[%c0, %c0_0] : memref<1x128xf32, #tpu.memory_space<vmem>>, vector<1x128xf32>
    %c0_1 = arith.constant 0 : index
    %c0_2 = arith.constant 0 : index
    %1 = vector.load %arg1[%c0_1, %c0_2] : memref<1x128xf32, #tpu.memory_space<vmem>>, vector<1x128xf32>
    %2 = arith.mulf %0, %1 : vector<1x128xf32>
    %c0_3 = arith.constant 0 : index
    %c0_4 = arith.constant 0 : index
    %3 = vector.load %arg3[%c0_3, %c0_4] : memref<1x128xf32, #tpu.memory_space<vmem>>, vector<1x128xf32>
    %4 = arith.addf %2, %3 : vector<1x128xf32>
    %c0_5 = arith.constant 0 : index
    %c0_6 = arith.constant 0 : index
    %5 = vector.load %arg5[%c0_5, %c0_6] : memref<16x1xf32, #tpu.memory_space<vmem>>, vector<16x1xf32>
    %6 = math.absf %5 : vector<16x1xf32>
    %cst = arith.constant 9.99999974E-6 : f32
    %7 = vector.broadcast %cst : f32 to vector<16x1xf32>
    %8 = arith.addf %6, %7 : vector<16x1xf32>
    %cst_7 = arith.constant 1.000000e+00 : f32
    %9 = vector.broadcast %cst_7 : f32 to vector<16x1xf32>
    %10 = arith.divf %9, %8 : vector<16x1xf32>
    %c0_8 = arith.constant 0 : index
    %c0_9 = arith.constant 0 : index
    %11 = vector.load %arg4[%c0_8, %c0_9] : memref<16x1xf32, #tpu.memory_space<vmem>>, vector<16x1xf32>
    %12 = vector.broadcast %4 : vector<1x128xf32> to vector<16x128xf32>
    %13 = vector.broadcast %11 : vector<16x1xf32> to vector<16x128xf32>
    %14 = arith.subf %12, %13 : vector<16x128xf32>
    %15 = vector.broadcast %10 : vector<16x1xf32> to vector<16x128xf32>
    %16 = arith.mulf %14, %15 : vector<16x128xf32>
    %cst_10 = arith.constant -5.000000e-01 : f32
    %17 = vector.broadcast %cst_10 : f32 to vector<16x128xf32>
    %18 = arith.mulf %17, %16 : vector<16x128xf32>
    %19 = arith.mulf %18, %16 : vector<16x128xf32>
    %20 = math.exp %19 : vector<16x128xf32>
    %cst_11 = arith.constant 0.398942292 : f32
    %21 = vector.broadcast %cst_11 : f32 to vector<16x1xf32>
    %22 = arith.mulf %21, %10 : vector<16x1xf32>
    %23 = vector.broadcast %22 : vector<16x1xf32> to vector<16x128xf32>
    %24 = arith.mulf %20, %23 : vector<16x128xf32>
    %c0_12 = arith.constant 0 : index
    %c0_13 = arith.constant 0 : index
    %25 = vector.load %arg6[%c0_12, %c0_13] : memref<16x16xf32, #tpu.memory_space<vmem>>, vector<16x16xf32>
    %cst_14 = arith.constant dense<0.000000e+00> : vector<16x128xf32>
    %26 = tpu.matmul %25, %24, %cst_14 {dimension_numbers = #tpu.dot_dimension_numbers<[1], [0], [0], [1], [0, 0, 1, 1], [], []>} : vector<16x16xf32>, vector<16x128xf32>, vector<16x128xf32> -> vector<16x128xf32>
    %c0_15 = arith.constant 0 : index
    %c0_16 = arith.constant 0 : index
    %27 = vector.load %arg7[%c0_15, %c0_16] : memref<16x1xf32, #tpu.memory_space<vmem>>, vector<16x1xf32>
    %28 = vector.broadcast %27 : vector<16x1xf32> to vector<16x128xf32>
    %29 = arith.addf %26, %28 : vector<16x128xf32>
    %cst_17 = arith.constant 5.000000e-01 : f32
    %30 = vector.broadcast %cst_17 : f32 to vector<16x128xf32>
    %31 = arith.mulf %30, %29 : vector<16x128xf32>
    %cst_18 = arith.constant 4.471500e-02 : f32
    %32 = vector.broadcast %cst_18 : f32 to vector<16x128xf32>
    %33 = arith.mulf %32, %29 : vector<16x128xf32>
    %34 = arith.mulf %33, %29 : vector<16x128xf32>
    %35 = arith.mulf %34, %29 : vector<16x128xf32>
    %36 = arith.addf %29, %35 : vector<16x128xf32>
    %cst_19 = arith.constant 0.797884583 : f32
    %37 = vector.broadcast %cst_19 : f32 to vector<16x128xf32>
    %38 = arith.mulf %37, %36 : vector<16x128xf32>
    %39 = math.tanh %38 : vector<16x128xf32>
    %cst_20 = arith.constant 1.000000e+00 : f32
    %40 = vector.broadcast %cst_20 : f32 to vector<16x128xf32>
    %41 = arith.addf %40, %39 : vector<16x128xf32>
    %42 = arith.mulf %31, %41 : vector<16x128xf32>
    %c0_21 = arith.constant 0 : index
    %c0_22 = arith.constant 0 : index
    %43 = vector.load %arg8[%c0_21, %c0_22] : memref<4x16xf32, #tpu.memory_space<vmem>>, vector<4x16xf32>
    %cst_23 = arith.constant dense<0.000000e+00> : vector<4x128xf32>
    %44 = tpu.matmul %43, %42, %cst_23 {dimension_numbers = #tpu.dot_dimension_numbers<[1], [0], [0], [1], [0, 0, 1, 1], [], []>} : vector<4x16xf32>, vector<16x128xf32>, vector<4x128xf32> -> vector<4x128xf32>
    %c0_24 = arith.constant 0 : index
    %c0_25 = arith.constant 0 : index
    %45 = vector.load %arg9[%c0_24, %c0_25] : memref<4x1xf32, #tpu.memory_space<vmem>>, vector<4x1xf32>
    %46 = vector.broadcast %45 : vector<4x1xf32> to vector<4x128xf32>
    %47 = arith.addf %44, %46 : vector<4x128xf32>
    %c0_26 = arith.constant 0 : index
    %c0_27 = arith.constant 0 : index
    %48 = vector.load %arg10[%c0_26, %c0_27] : memref<4x128xf32, #tpu.memory_space<vmem>>, vector<4x128xf32>
    tpu.vector_store %arg10[%c0_26, %c0_27], %47 {strides = array<i32>} : memref<4x128xf32, #tpu.memory_space<vmem>>, vector<4x128xf32>,
    return
  }
  func.func @transform_0(%arg0: i32) -> (i32, i32) {
    %c0_i32 = arith.constant 0 : i32
    %c0_i32_0 = arith.constant 0 : i32
    %c0_i32_1 = arith.constant 0 : i32
    return %c0_i32, %c0_i32_0 : i32, i32
  }
  func.func @transform_1(%arg0: i32) -> (i32, i32) {
    %c0_i32 = arith.constant 0 : i32
    %c0_i32_0 = arith.constant 0 : i32
    %c0_i32_1 = arith.constant 0 : i32
    return %c0_i32, %c0_i32_0 : i32, i32
  }
  func.func @transform_2(%arg0: i32) -> (i32, i32) {
    %c0_i32 = arith.constant 0 : i32
    %c0_i32_0 = arith.constant 0 : i32
    %c0_i32_1 = arith.constant 0 : i32
    return %c0_i32, %c0_i32_0 : i32, i32
  }
  func.func @transform_3(%arg0: i32) -> (i32, i32) {
    %c0_i32 = arith.constant 0 : i32
    %c0_i32_0 = arith.constant 0 : i32
    %c0_i32_1 = arith.constant 0 : i32
    return %c0_i32, %c0_i32_0 : i32, i32
  }
  func.func @transform_4(%arg0: i32) -> (i32, i32) {
    %c0_i32 = arith.constant 0 : i32
    %c0_i32_0 = arith.constant 0 : i32
    %c0_i32_1 = arith.constant 0 : i32
    return %c0_i32, %c0_i32_0 : i32, i32
  }
  func.func @transform_5(%arg0: i32) -> (i32, i32) {
    %c0_i32 = arith.constant 0 : i32
    %c0_i32_0 = arith.constant 0 : i32
    %c0_i32_1 = arith.constant 0 : i32
    return %c0_i32, %c0_i32_0 : i32, i32
  }
  func.func @transform_6(%arg0: i32) -> (i32, i32) {
    %c0_i32 = arith.constant 0 : i32
    %c0_i32_0 = arith.constant 0 : i32
    %c0_i32_1 = arith.constant 0 : i32
    return %c0_i32, %c0_i32_0 : i32, i32
  }
  func.func @transform_7(%arg0: i32) -> (i32, i32) {
    %c0_i32 = arith.constant 0 : i32
    %c0_i32_0 = arith.constant 0 : i32
    %c0_i32_1 = arith.constant 0 : i32
    return %c0_i32, %c0_i32_0 : i32, i32
  }
  func.func @transform_8(%arg0: i32) -> (i32, i32) {
    %c0_i32 = arith.constant 0 : i32
    %c0_i32_0 = arith.constant 0 : i32
    %c0_i32_1 = arith.constant 0 : i32
    return %c0_i32, %c0_i32_0 : i32, i32
  }
  func.func @transform_9(%arg0: i32) -> (i32, i32) {
    %c0_i32 = arith.constant 0 : i32
    %c0_i32_0 = arith.constant 0 : i32
    %c0_i32_1 = arith.constant 0 : i32
    return %c0_i32, %c0_i32_0 : i32, i32
  }
}

module attributes {stable_mosaic.version = 11 : i64} {
  func.func @_encoder_kernel(%arg0: i32, %arg1: memref<1x8x32xf32, #tpu.memory_space<vmem>>, %arg2: memref<4x1x8x8xf32, #tpu.memory_space<vmem>>, %arg3: memref<1x8x1xf32, #tpu.memory_space<vmem>>, %arg4: memref<1x1x8xf32, #tpu.memory_space<vmem>>, %arg5: memref<1x32xf32, #tpu.memory_space<vmem>>, %arg6: memref<1x32xf32, #tpu.memory_space<vmem>>, %arg7: memref<2x1x32xf32, #tpu.memory_space<vmem>>, %arg8: memref<2x1x32xf32, #tpu.memory_space<vmem>>, %arg9: memref<2x32x96xf32, #tpu.memory_space<vmem>>, %arg10: memref<2x1x96xf32, #tpu.memory_space<vmem>>, %arg11: memref<2x32x32xf32, #tpu.memory_space<vmem>>, %arg12: memref<2x1x32xf32, #tpu.memory_space<vmem>>, %arg13: memref<2x1x32xf32, #tpu.memory_space<vmem>>, %arg14: memref<2x1x32xf32, #tpu.memory_space<vmem>>, %arg15: memref<2x32x64xf32, #tpu.memory_space<vmem>>, %arg16: memref<2x1x64xf32, #tpu.memory_space<vmem>>, %arg17: memref<2x64x32xf32, #tpu.memory_space<vmem>>, %arg18: memref<2x1x32xf32, #tpu.memory_space<vmem>>, %arg19: memref<1x32xf32, #tpu.memory_space<vmem>>, %arg20: memref<1x32xf32, #tpu.memory_space<vmem>>, %arg21: memref<1x8x32xf32, #tpu.memory_space<vmem>>, %arg22: memref<1x4x8x8xf32, #tpu.memory_space<vmem>>) attributes {dimension_semantics = [#tpu.dimension_semantics<parallel>], iteration_bounds = array<i64: 2>, scalar_prefetch = 0 : i64, scratch_operands = 0 : i64, tpu.core_type = #tpu.core_type<tc>, window_params = [{transform_indices = @transform_0, window_bounds = array<i64: 1, 8, 32>}, {transform_indices = @transform_1, window_bounds = array<i64: 4, 1, 8, 8>}, {transform_indices = @transform_2, window_bounds = array<i64: 1, 8, 1>}, {transform_indices = @transform_3, window_bounds = array<i64: 1, 1, 8>}, {pipeline_mode = #tpu.pipeline_mode<synchronous>, transform_indices = @transform_4, window_bounds = array<i64: 1, 32>}, {pipeline_mode = #tpu.pipeline_mode<synchronous>, transform_indices = @transform_5, window_bounds = array<i64: 1, 32>}, {pipeline_mode = #tpu.pipeline_mode<synchronous>, transform_indices = @transform_6, window_bounds = array<i64: 2, 1, 32>}, {pipeline_mode = #tpu.pipeline_mode<synchronous>, transform_indices = @transform_7, window_bounds = array<i64: 2, 1, 32>}, {pipeline_mode = #tpu.pipeline_mode<synchronous>, transform_indices = @transform_8, window_bounds = array<i64: 2, 32, 96>}, {pipeline_mode = #tpu.pipeline_mode<synchronous>, transform_indices = @transform_9, window_bounds = array<i64: 2, 1, 96>}, {pipeline_mode = #tpu.pipeline_mode<synchronous>, transform_indices = @transform_10, window_bounds = array<i64: 2, 32, 32>}, {pipeline_mode = #tpu.pipeline_mode<synchronous>, transform_indices = @transform_11, window_bounds = array<i64: 2, 1, 32>}, {pipeline_mode = #tpu.pipeline_mode<synchronous>, transform_indices = @transform_12, window_bounds = array<i64: 2, 1, 32>}, {pipeline_mode = #tpu.pipeline_mode<synchronous>, transform_indices = @transform_13, window_bounds = array<i64: 2, 1, 32>}, {pipeline_mode = #tpu.pipeline_mode<synchronous>, transform_indices = @transform_14, window_bounds = array<i64: 2, 32, 64>}, {pipeline_mode = #tpu.pipeline_mode<synchronous>, transform_indices = @transform_15, window_bounds = array<i64: 2, 1, 64>}, {pipeline_mode = #tpu.pipeline_mode<synchronous>, transform_indices = @transform_16, window_bounds = array<i64: 2, 64, 32>}, {pipeline_mode = #tpu.pipeline_mode<synchronous>, transform_indices = @transform_17, window_bounds = array<i64: 2, 1, 32>}, {pipeline_mode = #tpu.pipeline_mode<synchronous>, transform_indices = @transform_18, window_bounds = array<i64: 1, 32>}, {pipeline_mode = #tpu.pipeline_mode<synchronous>, transform_indices = @transform_19, window_bounds = array<i64: 1, 32>}, {transform_indices = @transform_20, window_bounds = array<i64: 1, 8, 32>}, {transform_indices = @transform_21, window_bounds = array<i64: 1, 4, 8, 8>}]} {
    %c0 = arith.constant 0 : index
    %c0_0 = arith.constant 0 : index
    %c0_1 = arith.constant 0 : index
    %0 = vector.load %arg1[%c0, %c0_0, %c0_1] : memref<1x8x32xf32, #tpu.memory_space<vmem>>, vector<1x8x32xf32>
    %1 = vector.shape_cast %0 : vector<1x8x32xf32> to vector<8x32xf32>
    %c0_2 = arith.constant 0 : index
    %c0_3 = arith.constant 0 : index
    %2 = vector.load %arg5[%c0_2, %c0_3] : memref<1x32xf32, #tpu.memory_space<vmem>>, vector<1x32xf32>
    %c0_4 = arith.constant 0 : index
    %c0_5 = arith.constant 0 : index
    %3 = vector.load %arg6[%c0_4, %c0_5] : memref<1x32xf32, #tpu.memory_space<vmem>>, vector<1x32xf32>
    %cst = arith.constant dense<0.000000e+00> : vector<8xf32>
    %4 = vector.multi_reduction <add>, %1, %cst [1] : vector<8x32xf32> to vector<8xf32>
    %5 = vector.shape_cast %4 : vector<8xf32> to vector<8x1xf32>
    %cst_6 = arith.constant 3.200000e+01 : f32
    %6 = vector.broadcast %cst_6 : f32 to vector<8x1xf32>
    %7 = arith.divf %5, %6 : vector<8x1xf32>
    %8 = vector.broadcast %7 : vector<8x1xf32> to vector<8x32xf32>
    %9 = arith.subf %1, %8 : vector<8x32xf32>
    %10 = arith.mulf %9, %9 : vector<8x32xf32>
    %cst_7 = arith.constant dense<0.000000e+00> : vector<8xf32>
    %11 = vector.multi_reduction <add>, %10, %cst_7 [1] : vector<8x32xf32> to vector<8xf32>
    %12 = vector.shape_cast %11 : vector<8xf32> to vector<8x1xf32>
    %cst_8 = arith.constant 3.200000e+01 : f32
    %13 = vector.broadcast %cst_8 : f32 to vector<8x1xf32>
    %14 = arith.divf %12, %13 : vector<8x1xf32>
    %15 = vector.broadcast %7 : vector<8x1xf32> to vector<8x32xf32>
    %16 = arith.subf %1, %15 : vector<8x32xf32>
    %cst_9 = arith.constant 9.99999974E-6 : f32
    %17 = vector.broadcast %cst_9 : f32 to vector<8x1xf32>
    %18 = arith.addf %14, %17 : vector<8x1xf32>
    %19 = math.rsqrt %18 : vector<8x1xf32>
    %20 = vector.broadcast %19 : vector<8x1xf32> to vector<8x32xf32>
    %21 = arith.mulf %16, %20 : vector<8x32xf32>
    %22 = vector.broadcast %2 : vector<1x32xf32> to vector<8x32xf32>
    %23 = arith.mulf %21, %22 : vector<8x32xf32>
    %24 = vector.broadcast %3 : vector<1x32xf32> to vector<8x32xf32>
    %25 = arith.addf %23, %24 : vector<8x32xf32>
    %c0_10 = arith.constant 0 : index
    %c0_11 = arith.constant 0 : index
    %c0_12 = arith.constant 0 : index
    %26 = vector.load %arg3[%c0_10, %c0_11, %c0_12] : memref<1x8x1xf32, #tpu.memory_space<vmem>>, vector<1x8x1xf32>
    %27 = vector.shape_cast %26 : vector<1x8x1xf32> to vector<8x1xf32>
    %28 = vector.broadcast %27 : vector<8x1xf32> to vector<8x32xf32>
    %29 = arith.mulf %25, %28 : vector<8x32xf32>
    %c0_13 = arith.constant 0 : index
    %c0_14 = arith.constant 0 : index
    %c0_15 = arith.constant 0 : index
    %30 = vector.load %arg4[%c0_13, %c0_14, %c0_15] : memref<1x1x8xf32, #tpu.memory_space<vmem>>, vector<1x1x8xf32>
    %31 = vector.shape_cast %30 : vector<1x1x8xf32> to vector<1x8xf32>
    %cst_16 = arith.constant 5.000000e-01 : f32
    %32 = vector.broadcast %cst_16 : f32 to vector<1x8xf32>
    %33 = arith.cmpf ogt, %31, %32 : vector<1x8xf32>
    %c0_17 = arith.constant 0 : index
    %c0_18 = arith.constant 0 : index
    %c0_19 = arith.constant 0 : index
    %c0_20 = arith.constant 0 : index
    %34 = vector.load %arg2[%c0_17, %c0_18, %c0_19, %c0_20] : memref<4x1x8x8xf32, #tpu.memory_space<vmem>>, vector<1x1x8x8xf32>
    %35 = vector.shape_cast %34 : vector<1x1x8x8xf32> to vector<8x8xf32>
    %cst_21 = arith.constant 0xFF800000 : f32
    %36 = vector.shape_cast %33 : vector<1x8xi1> to vector<1x8xi1>
    %37 = vector.broadcast %36 : vector<1x8xi1> to vector<8x8xi1>
    %38 = vector.broadcast %cst_21 : f32 to vector<8x8xf32>
    %39 = arith.select %37, %35, %38 : vector<8x8xi1>, vector<8x8xf32>
    %c1 = arith.constant 1 : index
    %c0_22 = arith.constant 0 : index
    %c0_23 = arith.constant 0 : index
    %c0_24 = arith.constant 0 : index
    %40 = vector.load %arg2[%c1, %c0_22, %c0_23, %c0_24] : memref<4x1x8x8xf32, #tpu.memory_space<vmem>>, vector<1x1x8x8xf32>
    %41 = vector.shape_cast %40 : vector<1x1x8x8xf32> to vector<8x8xf32>
    %cst_25 = arith.constant 0xFF800000 : f32
    %42 = vector.shape_cast %33 : vector<1x8xi1> to vector<1x8xi1>
    %43 = vector.broadcast %42 : vector<1x8xi1> to vector<8x8xi1>
    %44 = vector.broadcast %cst_25 : f32 to vector<8x8xf32>
    %45 = arith.select %43, %41, %44 : vector<8x8xi1>, vector<8x8xf32>
    %c2 = arith.constant 2 : index
    %c0_26 = arith.constant 0 : index
    %c0_27 = arith.constant 0 : index
    %c0_28 = arith.constant 0 : index
    %46 = vector.load %arg2[%c2, %c0_26, %c0_27, %c0_28] : memref<4x1x8x8xf32, #tpu.memory_space<vmem>>, vector<1x1x8x8xf32>
    %47 = vector.shape_cast %46 : vector<1x1x8x8xf32> to vector<8x8xf32>
    %cst_29 = arith.constant 0xFF800000 : f32
    %48 = vector.shape_cast %33 : vector<1x8xi1> to vector<1x8xi1>
    %49 = vector.broadcast %48 : vector<1x8xi1> to vector<8x8xi1>
    %50 = vector.broadcast %cst_29 : f32 to vector<8x8xf32>
    %51 = arith.select %49, %47, %50 : vector<8x8xi1>, vector<8x8xf32>
    %c3 = arith.constant 3 : index
    %c0_30 = arith.constant 0 : index
    %c0_31 = arith.constant 0 : index
    %c0_32 = arith.constant 0 : index
    %52 = vector.load %arg2[%c3, %c0_30, %c0_31, %c0_32] : memref<4x1x8x8xf32, #tpu.memory_space<vmem>>, vector<1x1x8x8xf32>
    %53 = vector.shape_cast %52 : vector<1x1x8x8xf32> to vector<8x8xf32>
    %cst_33 = arith.constant 0xFF800000 : f32
    %54 = vector.shape_cast %33 : vector<1x8xi1> to vector<1x8xi1>
    %55 = vector.broadcast %54 : vector<1x8xi1> to vector<8x8xi1>
    %56 = vector.broadcast %cst_33 : f32 to vector<8x8xf32>
    %57 = arith.select %55, %53, %56 : vector<8x8xi1>, vector<8x8xf32>
    %c0_34 = arith.constant 0 : index
    %c0_35 = arith.constant 0 : index
    %c0_36 = arith.constant 0 : index
    %58 = vector.load %arg7[%c0_34, %c0_35, %c0_36] : memref<2x1x32xf32, #tpu.memory_space<vmem>>, vector<1x1x32xf32>
    %59 = vector.shape_cast %58 : vector<1x1x32xf32> to vector<1x32xf32>
    %c0_37 = arith.constant 0 : index
    %c0_38 = arith.constant 0 : index
    %c0_39 = arith.constant 0 : index
    %60 = vector.load %arg8[%c0_37, %c0_38, %c0_39] : memref<2x1x32xf32, #tpu.memory_space<vmem>>, vector<1x1x32xf32>
    %61 = vector.shape_cast %60 : vector<1x1x32xf32> to vector<1x32xf32>
    %cst_40 = arith.constant dense<0.000000e+00> : vector<8xf32>
    %62 = vector.multi_reduction <add>, %29, %cst_40 [1] : vector<8x32xf32> to vector<8xf32>
    %63 = vector.shape_cast %62 : vector<8xf32> to vector<8x1xf32>
    %cst_41 = arith.constant 3.200000e+01 : f32
    %64 = vector.broadcast %cst_41 : f32 to vector<8x1xf32>
    %65 = arith.divf %63, %64 : vector<8x1xf32>
    %66 = vector.broadcast %65 : vector<8x1xf32> to vector<8x32xf32>
    %67 = arith.subf %29, %66 : vector<8x32xf32>
    %68 = arith.mulf %67, %67 : vector<8x32xf32>
    %cst_42 = arith.constant dense<0.000000e+00> : vector<8xf32>
    %69 = vector.multi_reduction <add>, %68, %cst_42 [1] : vector<8x32xf32> to vector<8xf32>
    %70 = vector.shape_cast %69 : vector<8xf32> to vector<8x1xf32>
    %cst_43 = arith.constant 3.200000e+01 : f32
    %71 = vector.broadcast %cst_43 : f32 to vector<8x1xf32>
    %72 = arith.divf %70, %71 : vector<8x1xf32>
    %73 = vector.broadcast %65 : vector<8x1xf32> to vector<8x32xf32>
    %74 = arith.subf %29, %73 : vector<8x32xf32>
    %cst_44 = arith.constant 9.99999974E-6 : f32
    %75 = vector.broadcast %cst_44 : f32 to vector<8x1xf32>
    %76 = arith.addf %72, %75 : vector<8x1xf32>
    %77 = math.rsqrt %76 : vector<8x1xf32>
    %78 = vector.broadcast %77 : vector<8x1xf32> to vector<8x32xf32>
    %79 = arith.mulf %74, %78 : vector<8x32xf32>
    %80 = vector.broadcast %59 : vector<1x32xf32> to vector<8x32xf32>
    %81 = arith.mulf %79, %80 : vector<8x32xf32>
    %82 = vector.broadcast %61 : vector<1x32xf32> to vector<8x32xf32>
    %83 = arith.addf %81, %82 : vector<8x32xf32>
    %c0_45 = arith.constant 0 : index
    %c0_46 = arith.constant 0 : index
    %c0_47 = arith.constant 0 : index
    %84 = vector.load %arg9[%c0_45, %c0_46, %c0_47] : memref<2x32x96xf32, #tpu.memory_space<vmem>>, vector<1x32x96xf32>
    %85 = vector.shape_cast %84 : vector<1x32x96xf32> to vector<32x96xf32>
    %cst_48 = arith.constant dense<0.000000e+00> : vector<8x96xf32>
    %86 = tpu.matmul %83, %85, %cst_48 {dimension_numbers = #tpu.dot_dimension_numbers<[1], [0], [0], [1], [0, 0, 1, 1], [], []>} : vector<8x32xf32>, vector<32x96xf32>, vector<8x96xf32> -> vector<8x96xf32>
    %c0_49 = arith.constant 0 : index
    %c0_50 = arith.constant 0 : index
    %c0_51 = arith.constant 0 : index
    %87 = vector.load %arg10[%c0_49, %c0_50, %c0_51] : memref<2x1x96xf32, #tpu.memory_space<vmem>>, vector<1x1x96xf32>
    %88 = vector.shape_cast %87 : vector<1x1x96xf32> to vector<1x96xf32>
    %89 = vector.broadcast %88 : vector<1x96xf32> to vector<8x96xf32>
    %90 = arith.addf %86, %89 : vector<8x96xf32>
    %91 = vector.extract_strided_slice %90 {offsets = [0, 0], sizes = [8, 32], strides = [1, 1]} : vector<8x96xf32> to vector<8x32xf32>
    %cst_52 = arith.constant 0.353553385 : f32
    %92 = vector.broadcast %cst_52 : f32 to vector<8x32xf32>
    %93 = arith.mulf %91, %92 : vector<8x32xf32>
    %94 = vector.extract_strided_slice %90 {offsets = [0, 32], sizes = [8, 32], strides = [1, 1]} : vector<8x96xf32> to vector<8x32xf32>
    %95 = vector.extract_strided_slice %90 {offsets = [0, 64], sizes = [8, 32], strides = [1, 1]} : vector<8x96xf32> to vector<8x32xf32>
    %c0_53 = arith.constant 0 : index
    %c0_54 = arith.constant 0 : index
    %c0_55 = arith.constant 0 : index
    %96 = vector.load %arg11[%c0_53, %c0_54, %c0_55] : memref<2x32x32xf32, #tpu.memory_space<vmem>>, vector<1x32x32xf32>
    %97 = vector.shape_cast %96 : vector<1x32x32xf32> to vector<32x32xf32>
    %c0_56 = arith.constant 0 : index
    %c0_57 = arith.constant 0 : index
    %c0_58 = arith.constant 0 : index
    %98 = vector.load %arg12[%c0_56, %c0_57, %c0_58] : memref<2x1x32xf32, #tpu.memory_space<vmem>>, vector<1x1x32xf32>
    %99 = vector.shape_cast %98 : vector<1x1x32xf32> to vector<1x32xf32>
    %100 = vector.extract_strided_slice %93 {offsets = [0, 0], sizes = [8, 8], strides = [1, 1]} : vector<8x32xf32> to vector<8x8xf32>
    %101 = vector.extract_strided_slice %94 {offsets = [0, 0], sizes = [8, 8], strides = [1, 1]} : vector<8x32xf32> to vector<8x8xf32>
    %cst_59 = arith.constant dense<0.000000e+00> : vector<8x8xf32>
    %102 = tpu.matmul %100, %101, %cst_59 {dimension_numbers = #tpu.dot_dimension_numbers<[1], [1], [0], [0], [0, 0, 1, 0], [], []>} : vector<8x8xf32>, vector<8x8xf32>, vector<8x8xf32> -> vector<8x8xf32>
    %103 = arith.addf %102, %39 : vector<8x8xf32>
    %cst_60 = arith.constant dense<0xFF800000> : vector<8xf32>
    %104 = vector.multi_reduction <maximumf>, %103, %cst_60 [1] : vector<8x8xf32> to vector<8xf32>
    %105 = vector.shape_cast %104 : vector<8xf32> to vector<8x1xf32>
    %106 = vector.broadcast %105 : vector<8x1xf32> to vector<8x8xf32>
    %107 = arith.subf %103, %106 : vector<8x8xf32>
    %108 = math.exp %107 : vector<8x8xf32>
    %cst_61 = arith.constant dense<0.000000e+00> : vector<8xf32>
    %109 = vector.multi_reduction <add>, %108, %cst_61 [1] : vector<8x8xf32> to vector<8xf32>
    %110 = vector.shape_cast %109 : vector<8xf32> to vector<8x1xf32>
    %111 = tpu.reciprocal %110 {approx = true} : vector<8x1xf32> -> vector<8x1xf32>
    %112 = vector.broadcast %111 : vector<8x1xf32> to vector<8x8xf32>
    %113 = arith.mulf %108, %112 : vector<8x8xf32>
    %114 = vector.extract_strided_slice %95 {offsets = [0, 0], sizes = [8, 8], strides = [1, 1]} : vector<8x32xf32> to vector<8x8xf32>
    %cst_62 = arith.constant dense<0.000000e+00> : vector<8x8xf32>
    %115 = tpu.matmul %113, %114, %cst_62 {dimension_numbers = #tpu.dot_dimension_numbers<[1], [0], [0], [1], [0, 0, 1, 1], [], []>} : vector<8x8xf32>, vector<8x8xf32>, vector<8x8xf32> -> vector<8x8xf32>
    %116 = vector.extract_strided_slice %97 {offsets = [0, 0], sizes = [8, 32], strides = [1, 1]} : vector<32x32xf32> to vector<8x32xf32>
    %cst_63 = arith.constant dense<0.000000e+00> : vector<8x32xf32>
    %117 = tpu.matmul %115, %116, %cst_63 {dimension_numbers = #tpu.dot_dimension_numbers<[1], [0], [0], [1], [0, 0, 1, 1], [], []>} : vector<8x8xf32>, vector<8x32xf32>, vector<8x32xf32> -> vector<8x32xf32>
    %118 = vector.broadcast %99 : vector<1x32xf32> to vector<8x32xf32>
    %119 = arith.addf %118, %117 : vector<8x32xf32>
    %120 = vector.extract_strided_slice %93 {offsets = [0, 8], sizes = [8, 8], strides = [1, 1]} : vector<8x32xf32> to vector<8x8xf32>
    %121 = vector.extract_strided_slice %94 {offsets = [0, 8], sizes = [8, 8], strides = [1, 1]} : vector<8x32xf32> to vector<8x8xf32>
    %cst_64 = arith.constant dense<0.000000e+00> : vector<8x8xf32>
    %122 = tpu.matmul %120, %121, %cst_64 {dimension_numbers = #tpu.dot_dimension_numbers<[1], [1], [0], [0], [0, 0, 1, 0], [], []>} : vector<8x8xf32>, vector<8x8xf32>, vector<8x8xf32> -> vector<8x8xf32>
    %123 = arith.addf %122, %45 : vector<8x8xf32>
    %cst_65 = arith.constant dense<0xFF800000> : vector<8xf32>
    %124 = vector.multi_reduction <maximumf>, %123, %cst_65 [1] : vector<8x8xf32> to vector<8xf32>
    %125 = vector.shape_cast %124 : vector<8xf32> to vector<8x1xf32>
    %126 = vector.broadcast %125 : vector<8x1xf32> to vector<8x8xf32>
    %127 = arith.subf %123, %126 : vector<8x8xf32>
    %128 = math.exp %127 : vector<8x8xf32>
    %cst_66 = arith.constant dense<0.000000e+00> : vector<8xf32>
    %129 = vector.multi_reduction <add>, %128, %cst_66 [1] : vector<8x8xf32> to vector<8xf32>
    %130 = vector.shape_cast %129 : vector<8xf32> to vector<8x1xf32>
    %131 = tpu.reciprocal %130 {approx = true} : vector<8x1xf32> -> vector<8x1xf32>
    %132 = vector.broadcast %131 : vector<8x1xf32> to vector<8x8xf32>
    %133 = arith.mulf %128, %132 : vector<8x8xf32>
    %134 = vector.extract_strided_slice %95 {offsets = [0, 8], sizes = [8, 8], strides = [1, 1]} : vector<8x32xf32> to vector<8x8xf32>
    %cst_67 = arith.constant dense<0.000000e+00> : vector<8x8xf32>
    %135 = tpu.matmul %133, %134, %cst_67 {dimension_numbers = #tpu.dot_dimension_numbers<[1], [0], [0], [1], [0, 0, 1, 1], [], []>} : vector<8x8xf32>, vector<8x8xf32>, vector<8x8xf32> -> vector<8x8xf32>
    %136 = vector.extract_strided_slice %97 {offsets = [8, 0], sizes = [8, 32], strides = [1, 1]} : vector<32x32xf32> to vector<8x32xf32>
    %cst_68 = arith.constant dense<0.000000e+00> : vector<8x32xf32>
    %137 = tpu.matmul %135, %136, %cst_68 {dimension_numbers = #tpu.dot_dimension_numbers<[1], [0], [0], [1], [0, 0, 1, 1], [], []>} : vector<8x8xf32>, vector<8x32xf32>, vector<8x32xf32> -> vector<8x32xf32>
    %138 = arith.addf %119, %137 : vector<8x32xf32>
    %139 = vector.extract_strided_slice %93 {offsets = [0, 16], sizes = [8, 8], strides = [1, 1]} : vector<8x32xf32> to vector<8x8xf32>
    %140 = vector.extract_strided_slice %94 {offsets = [0, 16], sizes = [8, 8], strides = [1, 1]} : vector<8x32xf32> to vector<8x8xf32>
    %cst_69 = arith.constant dense<0.000000e+00> : vector<8x8xf32>
    %141 = tpu.matmul %139, %140, %cst_69 {dimension_numbers = #tpu.dot_dimension_numbers<[1], [1], [0], [0], [0, 0, 1, 0], [], []>} : vector<8x8xf32>, vector<8x8xf32>, vector<8x8xf32> -> vector<8x8xf32>
    %142 = arith.addf %141, %51 : vector<8x8xf32>
    %cst_70 = arith.constant dense<0xFF800000> : vector<8xf32>
    %143 = vector.multi_reduction <maximumf>, %142, %cst_70 [1] : vector<8x8xf32> to vector<8xf32>
    %144 = vector.shape_cast %143 : vector<8xf32> to vector<8x1xf32>
    %145 = vector.broadcast %144 : vector<8x1xf32> to vector<8x8xf32>
    %146 = arith.subf %142, %145 : vector<8x8xf32>
    %147 = math.exp %146 : vector<8x8xf32>
    %cst_71 = arith.constant dense<0.000000e+00> : vector<8xf32>
    %148 = vector.multi_reduction <add>, %147, %cst_71 [1] : vector<8x8xf32> to vector<8xf32>
    %149 = vector.shape_cast %148 : vector<8xf32> to vector<8x1xf32>
    %150 = tpu.reciprocal %149 {approx = true} : vector<8x1xf32> -> vector<8x1xf32>
    %151 = vector.broadcast %150 : vector<8x1xf32> to vector<8x8xf32>
    %152 = arith.mulf %147, %151 : vector<8x8xf32>
    %153 = vector.extract_strided_slice %95 {offsets = [0, 16], sizes = [8, 8], strides = [1, 1]} : vector<8x32xf32> to vector<8x8xf32>
    %cst_72 = arith.constant dense<0.000000e+00> : vector<8x8xf32>
    %154 = tpu.matmul %152, %153, %cst_72 {dimension_numbers = #tpu.dot_dimension_numbers<[1], [0], [0], [1], [0, 0, 1, 1], [], []>} : vector<8x8xf32>, vector<8x8xf32>, vector<8x8xf32> -> vector<8x8xf32>
    %155 = vector.extract_strided_slice %97 {offsets = [16, 0], sizes = [8, 32], strides = [1, 1]} : vector<32x32xf32> to vector<8x32xf32>
    %cst_73 = arith.constant dense<0.000000e+00> : vector<8x32xf32>
    %156 = tpu.matmul %154, %155, %cst_73 {dimension_numbers = #tpu.dot_dimension_numbers<[1], [0], [0], [1], [0, 0, 1, 1], [], []>} : vector<8x8xf32>, vector<8x32xf32>, vector<8x32xf32> -> vector<8x32xf32>
    %157 = arith.addf %138, %156 : vector<8x32xf32>
    %158 = vector.extract_strided_slice %93 {offsets = [0, 24], sizes = [8, 8], strides = [1, 1]} : vector<8x32xf32> to vector<8x8xf32>
    %159 = vector.extract_strided_slice %94 {offsets = [0, 24], sizes = [8, 8], strides = [1, 1]} : vector<8x32xf32> to vector<8x8xf32>
    %cst_74 = arith.constant dense<0.000000e+00> : vector<8x8xf32>
    %160 = tpu.matmul %158, %159, %cst_74 {dimension_numbers = #tpu.dot_dimension_numbers<[1], [1], [0], [0], [0, 0, 1, 0], [], []>} : vector<8x8xf32>, vector<8x8xf32>, vector<8x8xf32> -> vector<8x8xf32>
    %161 = arith.addf %160, %57 : vector<8x8xf32>
    %cst_75 = arith.constant dense<0xFF800000> : vector<8xf32>
    %162 = vector.multi_reduction <maximumf>, %161, %cst_75 [1] : vector<8x8xf32> to vector<8xf32>
    %163 = vector.shape_cast %162 : vector<8xf32> to vector<8x1xf32>
    %164 = vector.broadcast %163 : vector<8x1xf32> to vector<8x8xf32>
    %165 = arith.subf %161, %164 : vector<8x8xf32>
    %166 = math.exp %165 : vector<8x8xf32>
    %cst_76 = arith.constant dense<0.000000e+00> : vector<8xf32>
    %167 = vector.multi_reduction <add>, %166, %cst_76 [1] : vector<8x8xf32> to vector<8xf32>
    %168 = vector.shape_cast %167 : vector<8xf32> to vector<8x1xf32>
    %169 = tpu.reciprocal %168 {approx = true} : vector<8x1xf32> -> vector<8x1xf32>
    %170 = vector.broadcast %169 : vector<8x1xf32> to vector<8x8xf32>
    %171 = arith.mulf %166, %170 : vector<8x8xf32>
    %172 = vector.extract_strided_slice %95 {offsets = [0, 24], sizes = [8, 8], strides = [1, 1]} : vector<8x32xf32> to vector<8x8xf32>
    %cst_77 = arith.constant dense<0.000000e+00> : vector<8x8xf32>
    %173 = tpu.matmul %171, %172, %cst_77 {dimension_numbers = #tpu.dot_dimension_numbers<[1], [0], [0], [1], [0, 0, 1, 1], [], []>} : vector<8x8xf32>, vector<8x8xf32>, vector<8x8xf32> -> vector<8x8xf32>
    %174 = vector.extract_strided_slice %97 {offsets = [24, 0], sizes = [8, 32], strides = [1, 1]} : vector<32x32xf32> to vector<8x32xf32>
    %cst_78 = arith.constant dense<0.000000e+00> : vector<8x32xf32>
    %175 = tpu.matmul %173, %174, %cst_78 {dimension_numbers = #tpu.dot_dimension_numbers<[1], [0], [0], [1], [0, 0, 1, 1], [], []>} : vector<8x8xf32>, vector<8x32xf32>, vector<8x32xf32> -> vector<8x32xf32>
    %176 = arith.addf %157, %175 : vector<8x32xf32>
    %177 = arith.addf %29, %176 : vector<8x32xf32>
    %c0_79 = arith.constant 0 : index
    %c0_80 = arith.constant 0 : index
    %c0_81 = arith.constant 0 : index
    %178 = vector.load %arg13[%c0_79, %c0_80, %c0_81] : memref<2x1x32xf32, #tpu.memory_space<vmem>>, vector<1x1x32xf32>
    %179 = vector.shape_cast %178 : vector<1x1x32xf32> to vector<1x32xf32>
    %c0_82 = arith.constant 0 : index
    %c0_83 = arith.constant 0 : index
    %c0_84 = arith.constant 0 : index
    %180 = vector.load %arg14[%c0_82, %c0_83, %c0_84] : memref<2x1x32xf32, #tpu.memory_space<vmem>>, vector<1x1x32xf32>
    %181 = vector.shape_cast %180 : vector<1x1x32xf32> to vector<1x32xf32>
    %cst_85 = arith.constant dense<0.000000e+00> : vector<8xf32>
    %182 = vector.multi_reduction <add>, %177, %cst_85 [1] : vector<8x32xf32> to vector<8xf32>
    %183 = vector.shape_cast %182 : vector<8xf32> to vector<8x1xf32>
    %cst_86 = arith.constant 3.200000e+01 : f32
    %184 = vector.broadcast %cst_86 : f32 to vector<8x1xf32>
    %185 = arith.divf %183, %184 : vector<8x1xf32>
    %186 = vector.broadcast %185 : vector<8x1xf32> to vector<8x32xf32>
    %187 = arith.subf %177, %186 : vector<8x32xf32>
    %188 = arith.mulf %187, %187 : vector<8x32xf32>
    %cst_87 = arith.constant dense<0.000000e+00> : vector<8xf32>
    %189 = vector.multi_reduction <add>, %188, %cst_87 [1] : vector<8x32xf32> to vector<8xf32>
    %190 = vector.shape_cast %189 : vector<8xf32> to vector<8x1xf32>
    %cst_88 = arith.constant 3.200000e+01 : f32
    %191 = vector.broadcast %cst_88 : f32 to vector<8x1xf32>
    %192 = arith.divf %190, %191 : vector<8x1xf32>
    %193 = vector.broadcast %185 : vector<8x1xf32> to vector<8x32xf32>
    %194 = arith.subf %177, %193 : vector<8x32xf32>
    %cst_89 = arith.constant 9.99999974E-6 : f32
    %195 = vector.broadcast %cst_89 : f32 to vector<8x1xf32>
    %196 = arith.addf %192, %195 : vector<8x1xf32>
    %197 = math.rsqrt %196 : vector<8x1xf32>
    %198 = vector.broadcast %197 : vector<8x1xf32> to vector<8x32xf32>
    %199 = arith.mulf %194, %198 : vector<8x32xf32>
    %200 = vector.broadcast %179 : vector<1x32xf32> to vector<8x32xf32>
    %201 = arith.mulf %199, %200 : vector<8x32xf32>
    %202 = vector.broadcast %181 : vector<1x32xf32> to vector<8x32xf32>
    %203 = arith.addf %201, %202 : vector<8x32xf32>
    %c0_90 = arith.constant 0 : index
    %c0_91 = arith.constant 0 : index
    %c0_92 = arith.constant 0 : index
    %204 = vector.load %arg15[%c0_90, %c0_91, %c0_92] : memref<2x32x64xf32, #tpu.memory_space<vmem>>, vector<1x32x64xf32>
    %205 = vector.shape_cast %204 : vector<1x32x64xf32> to vector<32x64xf32>
    %cst_93 = arith.constant dense<0.000000e+00> : vector<8x64xf32>
    %206 = tpu.matmul %203, %205, %cst_93 {dimension_numbers = #tpu.dot_dimension_numbers<[1], [0], [0], [1], [0, 0, 1, 1], [], []>} : vector<8x32xf32>, vector<32x64xf32>, vector<8x64xf32> -> vector<8x64xf32>
    %c0_94 = arith.constant 0 : index
    %c0_95 = arith.constant 0 : index
    %c0_96 = arith.constant 0 : index
    %207 = vector.load %arg16[%c0_94, %c0_95, %c0_96] : memref<2x1x64xf32, #tpu.memory_space<vmem>>, vector<1x1x64xf32>
    %208 = vector.shape_cast %207 : vector<1x1x64xf32> to vector<1x64xf32>
    %209 = vector.broadcast %208 : vector<1x64xf32> to vector<8x64xf32>
    %210 = arith.addf %206, %209 : vector<8x64xf32>
    %cst_97 = arith.constant 5.000000e-01 : f32
    %211 = vector.broadcast %cst_97 : f32 to vector<8x64xf32>
    %212 = arith.mulf %211, %210 : vector<8x64xf32>
    %cst_98 = arith.constant 4.471500e-02 : f32
    %213 = vector.broadcast %cst_98 : f32 to vector<8x64xf32>
    %214 = arith.mulf %213, %210 : vector<8x64xf32>
    %215 = arith.mulf %214, %210 : vector<8x64xf32>
    %216 = arith.mulf %215, %210 : vector<8x64xf32>
    %217 = arith.addf %210, %216 : vector<8x64xf32>
    %cst_99 = arith.constant 0.797884583 : f32
    %218 = vector.broadcast %cst_99 : f32 to vector<8x64xf32>
    %219 = arith.mulf %218, %217 : vector<8x64xf32>
    %220 = math.tanh %219 : vector<8x64xf32>
    %cst_100 = arith.constant 1.000000e+00 : f32
    %221 = vector.broadcast %cst_100 : f32 to vector<8x64xf32>
    %222 = arith.addf %221, %220 : vector<8x64xf32>
    %223 = arith.mulf %212, %222 : vector<8x64xf32>
    %c0_101 = arith.constant 0 : index
    %c0_102 = arith.constant 0 : index
    %c0_103 = arith.constant 0 : index
    %224 = vector.load %arg17[%c0_101, %c0_102, %c0_103] : memref<2x64x32xf32, #tpu.memory_space<vmem>>, vector<1x64x32xf32>
    %225 = vector.shape_cast %224 : vector<1x64x32xf32> to vector<64x32xf32>
    %cst_104 = arith.constant dense<0.000000e+00> : vector<8x32xf32>
    %226 = tpu.matmul %223, %225, %cst_104 {dimension_numbers = #tpu.dot_dimension_numbers<[1], [0], [0], [1], [0, 0, 1, 1], [], []>} : vector<8x64xf32>, vector<64x32xf32>, vector<8x32xf32> -> vector<8x32xf32>
    %227 = arith.addf %177, %226 : vector<8x32xf32>
    %c0_105 = arith.constant 0 : index
    %c0_106 = arith.constant 0 : index
    %c0_107 = arith.constant 0 : index
    %228 = vector.load %arg18[%c0_105, %c0_106, %c0_107] : memref<2x1x32xf32, #tpu.memory_space<vmem>>, vector<1x1x32xf32>
    %229 = vector.shape_cast %228 : vector<1x1x32xf32> to vector<1x32xf32>
    %230 = vector.broadcast %229 : vector<1x32xf32> to vector<8x32xf32>
    %231 = arith.addf %227, %230 : vector<8x32xf32>
    %c1_108 = arith.constant 1 : index
    %c0_109 = arith.constant 0 : index
    %c0_110 = arith.constant 0 : index
    %232 = vector.load %arg7[%c1_108, %c0_109, %c0_110] : memref<2x1x32xf32, #tpu.memory_space<vmem>>, vector<1x1x32xf32>
    %233 = vector.shape_cast %232 : vector<1x1x32xf32> to vector<1x32xf32>
    %c1_111 = arith.constant 1 : index
    %c0_112 = arith.constant 0 : index
    %c0_113 = arith.constant 0 : index
    %234 = vector.load %arg8[%c1_111, %c0_112, %c0_113] : memref<2x1x32xf32, #tpu.memory_space<vmem>>, vector<1x1x32xf32>
    %235 = vector.shape_cast %234 : vector<1x1x32xf32> to vector<1x32xf32>
    %cst_114 = arith.constant dense<0.000000e+00> : vector<8xf32>
    %236 = vector.multi_reduction <add>, %231, %cst_114 [1] : vector<8x32xf32> to vector<8xf32>
    %237 = vector.shape_cast %236 : vector<8xf32> to vector<8x1xf32>
    %cst_115 = arith.constant 3.200000e+01 : f32
    %238 = vector.broadcast %cst_115 : f32 to vector<8x1xf32>
    %239 = arith.divf %237, %238 : vector<8x1xf32>
    %240 = vector.broadcast %239 : vector<8x1xf32> to vector<8x32xf32>
    %241 = arith.subf %231, %240 : vector<8x32xf32>
    %242 = arith.mulf %241, %241 : vector<8x32xf32>
    %cst_116 = arith.constant dense<0.000000e+00> : vector<8xf32>
    %243 = vector.multi_reduction <add>, %242, %cst_116 [1] : vector<8x32xf32> to vector<8xf32>
    %244 = vector.shape_cast %243 : vector<8xf32> to vector<8x1xf32>
    %cst_117 = arith.constant 3.200000e+01 : f32
    %245 = vector.broadcast %cst_117 : f32 to vector<8x1xf32>
    %246 = arith.divf %244, %245 : vector<8x1xf32>
    %247 = vector.broadcast %239 : vector<8x1xf32> to vector<8x32xf32>
    %248 = arith.subf %231, %247 : vector<8x32xf32>
    %cst_118 = arith.constant 9.99999974E-6 : f32
    %249 = vector.broadcast %cst_118 : f32 to vector<8x1xf32>
    %250 = arith.addf %246, %249 : vector<8x1xf32>
    %251 = math.rsqrt %250 : vector<8x1xf32>
    %252 = vector.broadcast %251 : vector<8x1xf32> to vector<8x32xf32>
    %253 = arith.mulf %248, %252 : vector<8x32xf32>
    %254 = vector.broadcast %233 : vector<1x32xf32> to vector<8x32xf32>
    %255 = arith.mulf %253, %254 : vector<8x32xf32>
    %256 = vector.broadcast %235 : vector<1x32xf32> to vector<8x32xf32>
    %257 = arith.addf %255, %256 : vector<8x32xf32>
    %c1_119 = arith.constant 1 : index
    %c0_120 = arith.constant 0 : index
    %c0_121 = arith.constant 0 : index
    %258 = vector.load %arg9[%c1_119, %c0_120, %c0_121] : memref<2x32x96xf32, #tpu.memory_space<vmem>>, vector<1x32x96xf32>
    %259 = vector.shape_cast %258 : vector<1x32x96xf32> to vector<32x96xf32>
    %cst_122 = arith.constant dense<0.000000e+00> : vector<8x96xf32>
    %260 = tpu.matmul %257, %259, %cst_122 {dimension_numbers = #tpu.dot_dimension_numbers<[1], [0], [0], [1], [0, 0, 1, 1], [], []>} : vector<8x32xf32>, vector<32x96xf32>, vector<8x96xf32> -> vector<8x96xf32>
    %c1_123 = arith.constant 1 : index
    %c0_124 = arith.constant 0 : index
    %c0_125 = arith.constant 0 : index
    %261 = vector.load %arg10[%c1_123, %c0_124, %c0_125] : memref<2x1x96xf32, #tpu.memory_space<vmem>>, vector<1x1x96xf32>
    %262 = vector.shape_cast %261 : vector<1x1x96xf32> to vector<1x96xf32>
    %263 = vector.broadcast %262 : vector<1x96xf32> to vector<8x96xf32>
    %264 = arith.addf %260, %263 : vector<8x96xf32>
    %265 = vector.extract_strided_slice %264 {offsets = [0, 0], sizes = [8, 32], strides = [1, 1]} : vector<8x96xf32> to vector<8x32xf32>
    %cst_126 = arith.constant 0.353553385 : f32
    %266 = vector.broadcast %cst_126 : f32 to vector<8x32xf32>
    %267 = arith.mulf %265, %266 : vector<8x32xf32>
    %268 = vector.extract_strided_slice %264 {offsets = [0, 32], sizes = [8, 32], strides = [1, 1]} : vector<8x96xf32> to vector<8x32xf32>
    %269 = vector.extract_strided_slice %264 {offsets = [0, 64], sizes = [8, 32], strides = [1, 1]} : vector<8x96xf32> to vector<8x32xf32>
    %c1_127 = arith.constant 1 : index
    %c0_128 = arith.constant 0 : index
    %c0_129 = arith.constant 0 : index
    %270 = vector.load %arg11[%c1_127, %c0_128, %c0_129] : memref<2x32x32xf32, #tpu.memory_space<vmem>>, vector<1x32x32xf32>
    %271 = vector.shape_cast %270 : vector<1x32x32xf32> to vector<32x32xf32>
    %c1_130 = arith.constant 1 : index
    %c0_131 = arith.constant 0 : index
    %c0_132 = arith.constant 0 : index
    %272 = vector.load %arg12[%c1_130, %c0_131, %c0_132] : memref<2x1x32xf32, #tpu.memory_space<vmem>>, vector<1x1x32xf32>
    %273 = vector.shape_cast %272 : vector<1x1x32xf32> to vector<1x32xf32>
    %274 = vector.extract_strided_slice %267 {offsets = [0, 0], sizes = [8, 8], strides = [1, 1]} : vector<8x32xf32> to vector<8x8xf32>
    %275 = vector.extract_strided_slice %268 {offsets = [0, 0], sizes = [8, 8], strides = [1, 1]} : vector<8x32xf32> to vector<8x8xf32>
    %cst_133 = arith.constant dense<0.000000e+00> : vector<8x8xf32>
    %276 = tpu.matmul %274, %275, %cst_133 {dimension_numbers = #tpu.dot_dimension_numbers<[1], [1], [0], [0], [0, 0, 1, 0], [], []>} : vector<8x8xf32>, vector<8x8xf32>, vector<8x8xf32> -> vector<8x8xf32>
    %277 = arith.addf %276, %103 : vector<8x8xf32>
    %cst_134 = arith.constant dense<0xFF800000> : vector<8xf32>
    %278 = vector.multi_reduction <maximumf>, %277, %cst_134 [1] : vector<8x8xf32> to vector<8xf32>
    %279 = vector.shape_cast %278 : vector<8xf32> to vector<8x1xf32>
    %280 = vector.broadcast %279 : vector<8x1xf32> to vector<8x8xf32>
    %281 = arith.subf %277, %280 : vector<8x8xf32>
    %282 = math.exp %281 : vector<8x8xf32>
    %cst_135 = arith.constant dense<0.000000e+00> : vector<8xf32>
    %283 = vector.multi_reduction <add>, %282, %cst_135 [1] : vector<8x8xf32> to vector<8xf32>
    %284 = vector.shape_cast %283 : vector<8xf32> to vector<8x1xf32>
    %285 = tpu.reciprocal %284 {approx = true} : vector<8x1xf32> -> vector<8x1xf32>
    %286 = vector.broadcast %285 : vector<8x1xf32> to vector<8x8xf32>
    %287 = arith.mulf %282, %286 : vector<8x8xf32>
    %288 = vector.extract_strided_slice %269 {offsets = [0, 0], sizes = [8, 8], strides = [1, 1]} : vector<8x32xf32> to vector<8x8xf32>
    %cst_136 = arith.constant dense<0.000000e+00> : vector<8x8xf32>
    %289 = tpu.matmul %287, %288, %cst_136 {dimension_numbers = #tpu.dot_dimension_numbers<[1], [0], [0], [1], [0, 0, 1, 1], [], []>} : vector<8x8xf32>, vector<8x8xf32>, vector<8x8xf32> -> vector<8x8xf32>
    %290 = vector.extract_strided_slice %271 {offsets = [0, 0], sizes = [8, 32], strides = [1, 1]} : vector<32x32xf32> to vector<8x32xf32>
    %cst_137 = arith.constant dense<0.000000e+00> : vector<8x32xf32>
    %291 = tpu.matmul %289, %290, %cst_137 {dimension_numbers = #tpu.dot_dimension_numbers<[1], [0], [0], [1], [0, 0, 1, 1], [], []>} : vector<8x8xf32>, vector<8x32xf32>, vector<8x32xf32> -> vector<8x32xf32>
    %292 = vector.broadcast %273 : vector<1x32xf32> to vector<8x32xf32>
    %293 = arith.addf %292, %291 : vector<8x32xf32>
    %294 = vector.extract_strided_slice %267 {offsets = [0, 8], sizes = [8, 8], strides = [1, 1]} : vector<8x32xf32> to vector<8x8xf32>
    %295 = vector.extract_strided_slice %268 {offsets = [0, 8], sizes = [8, 8], strides = [1, 1]} : vector<8x32xf32> to vector<8x8xf32>
    %cst_138 = arith.constant dense<0.000000e+00> : vector<8x8xf32>
    %296 = tpu.matmul %294, %295, %cst_138 {dimension_numbers = #tpu.dot_dimension_numbers<[1], [1], [0], [0], [0, 0, 1, 0], [], []>} : vector<8x8xf32>, vector<8x8xf32>, vector<8x8xf32> -> vector<8x8xf32>
    %297 = arith.addf %296, %123 : vector<8x8xf32>
    %cst_139 = arith.constant dense<0xFF800000> : vector<8xf32>
    %298 = vector.multi_reduction <maximumf>, %297, %cst_139 [1] : vector<8x8xf32> to vector<8xf32>
    %299 = vector.shape_cast %298 : vector<8xf32> to vector<8x1xf32>
    %300 = vector.broadcast %299 : vector<8x1xf32> to vector<8x8xf32>
    %301 = arith.subf %297, %300 : vector<8x8xf32>
    %302 = math.exp %301 : vector<8x8xf32>
    %cst_140 = arith.constant dense<0.000000e+00> : vector<8xf32>
    %303 = vector.multi_reduction <add>, %302, %cst_140 [1] : vector<8x8xf32> to vector<8xf32>
    %304 = vector.shape_cast %303 : vector<8xf32> to vector<8x1xf32>
    %305 = tpu.reciprocal %304 {approx = true} : vector<8x1xf32> -> vector<8x1xf32>
    %306 = vector.broadcast %305 : vector<8x1xf32> to vector<8x8xf32>
    %307 = arith.mulf %302, %306 : vector<8x8xf32>
    %308 = vector.extract_strided_slice %269 {offsets = [0, 8], sizes = [8, 8], strides = [1, 1]} : vector<8x32xf32> to vector<8x8xf32>
    %cst_141 = arith.constant dense<0.000000e+00> : vector<8x8xf32>
    %309 = tpu.matmul %307, %308, %cst_141 {dimension_numbers = #tpu.dot_dimension_numbers<[1], [0], [0], [1], [0, 0, 1, 1], [], []>} : vector<8x8xf32>, vector<8x8xf32>, vector<8x8xf32> -> vector<8x8xf32>
    %310 = vector.extract_strided_slice %271 {offsets = [8, 0], sizes = [8, 32], strides = [1, 1]} : vector<32x32xf32> to vector<8x32xf32>
    %cst_142 = arith.constant dense<0.000000e+00> : vector<8x32xf32>
    %311 = tpu.matmul %309, %310, %cst_142 {dimension_numbers = #tpu.dot_dimension_numbers<[1], [0], [0], [1], [0, 0, 1, 1], [], []>} : vector<8x8xf32>, vector<8x32xf32>, vector<8x32xf32> -> vector<8x32xf32>
    %312 = arith.addf %293, %311 : vector<8x32xf32>
    %313 = vector.extract_strided_slice %267 {offsets = [0, 16], sizes = [8, 8], strides = [1, 1]} : vector<8x32xf32> to vector<8x8xf32>
    %314 = vector.extract_strided_slice %268 {offsets = [0, 16], sizes = [8, 8], strides = [1, 1]} : vector<8x32xf32> to vector<8x8xf32>
    %cst_143 = arith.constant dense<0.000000e+00> : vector<8x8xf32>
    %315 = tpu.matmul %313, %314, %cst_143 {dimension_numbers = #tpu.dot_dimension_numbers<[1], [1], [0], [0], [0, 0, 1, 0], [], []>} : vector<8x8xf32>, vector<8x8xf32>, vector<8x8xf32> -> vector<8x8xf32>
    %316 = arith.addf %315, %142 : vector<8x8xf32>
    %cst_144 = arith.constant dense<0xFF800000> : vector<8xf32>
    %317 = vector.multi_reduction <maximumf>, %316, %cst_144 [1] : vector<8x8xf32> to vector<8xf32>
    %318 = vector.shape_cast %317 : vector<8xf32> to vector<8x1xf32>
    %319 = vector.broadcast %318 : vector<8x1xf32> to vector<8x8xf32>
    %320 = arith.subf %316, %319 : vector<8x8xf32>
    %321 = math.exp %320 : vector<8x8xf32>
    %cst_145 = arith.constant dense<0.000000e+00> : vector<8xf32>
    %322 = vector.multi_reduction <add>, %321, %cst_145 [1] : vector<8x8xf32> to vector<8xf32>
    %323 = vector.shape_cast %322 : vector<8xf32> to vector<8x1xf32>
    %324 = tpu.reciprocal %323 {approx = true} : vector<8x1xf32> -> vector<8x1xf32>
    %325 = vector.broadcast %324 : vector<8x1xf32> to vector<8x8xf32>
    %326 = arith.mulf %321, %325 : vector<8x8xf32>
    %327 = vector.extract_strided_slice %269 {offsets = [0, 16], sizes = [8, 8], strides = [1, 1]} : vector<8x32xf32> to vector<8x8xf32>
    %cst_146 = arith.constant dense<0.000000e+00> : vector<8x8xf32>
    %328 = tpu.matmul %326, %327, %cst_146 {dimension_numbers = #tpu.dot_dimension_numbers<[1], [0], [0], [1], [0, 0, 1, 1], [], []>} : vector<8x8xf32>, vector<8x8xf32>, vector<8x8xf32> -> vector<8x8xf32>
    %329 = vector.extract_strided_slice %271 {offsets = [16, 0], sizes = [8, 32], strides = [1, 1]} : vector<32x32xf32> to vector<8x32xf32>
    %cst_147 = arith.constant dense<0.000000e+00> : vector<8x32xf32>
    %330 = tpu.matmul %328, %329, %cst_147 {dimension_numbers = #tpu.dot_dimension_numbers<[1], [0], [0], [1], [0, 0, 1, 1], [], []>} : vector<8x8xf32>, vector<8x32xf32>, vector<8x32xf32> -> vector<8x32xf32>
    %331 = arith.addf %312, %330 : vector<8x32xf32>
    %332 = vector.extract_strided_slice %267 {offsets = [0, 24], sizes = [8, 8], strides = [1, 1]} : vector<8x32xf32> to vector<8x8xf32>
    %333 = vector.extract_strided_slice %268 {offsets = [0, 24], sizes = [8, 8], strides = [1, 1]} : vector<8x32xf32> to vector<8x8xf32>
    %cst_148 = arith.constant dense<0.000000e+00> : vector<8x8xf32>
    %334 = tpu.matmul %332, %333, %cst_148 {dimension_numbers = #tpu.dot_dimension_numbers<[1], [1], [0], [0], [0, 0, 1, 0], [], []>} : vector<8x8xf32>, vector<8x8xf32>, vector<8x8xf32> -> vector<8x8xf32>
    %335 = arith.addf %334, %161 : vector<8x8xf32>
    %cst_149 = arith.constant dense<0xFF800000> : vector<8xf32>
    %336 = vector.multi_reduction <maximumf>, %335, %cst_149 [1] : vector<8x8xf32> to vector<8xf32>
    %337 = vector.shape_cast %336 : vector<8xf32> to vector<8x1xf32>
    %338 = vector.broadcast %337 : vector<8x1xf32> to vector<8x8xf32>
    %339 = arith.subf %335, %338 : vector<8x8xf32>
    %340 = math.exp %339 : vector<8x8xf32>
    %cst_150 = arith.constant dense<0.000000e+00> : vector<8xf32>
    %341 = vector.multi_reduction <add>, %340, %cst_150 [1] : vector<8x8xf32> to vector<8xf32>
    %342 = vector.shape_cast %341 : vector<8xf32> to vector<8x1xf32>
    %343 = tpu.reciprocal %342 {approx = true} : vector<8x1xf32> -> vector<8x1xf32>
    %344 = vector.broadcast %343 : vector<8x1xf32> to vector<8x8xf32>
    %345 = arith.mulf %340, %344 : vector<8x8xf32>
    %346 = vector.extract_strided_slice %269 {offsets = [0, 24], sizes = [8, 8], strides = [1, 1]} : vector<8x32xf32> to vector<8x8xf32>
    %cst_151 = arith.constant dense<0.000000e+00> : vector<8x8xf32>
    %347 = tpu.matmul %345, %346, %cst_151 {dimension_numbers = #tpu.dot_dimension_numbers<[1], [0], [0], [1], [0, 0, 1, 1], [], []>} : vector<8x8xf32>, vector<8x8xf32>, vector<8x8xf32> -> vector<8x8xf32>
    %348 = vector.extract_strided_slice %271 {offsets = [24, 0], sizes = [8, 32], strides = [1, 1]} : vector<32x32xf32> to vector<8x32xf32>
    %cst_152 = arith.constant dense<0.000000e+00> : vector<8x32xf32>
    %349 = tpu.matmul %347, %348, %cst_152 {dimension_numbers = #tpu.dot_dimension_numbers<[1], [0], [0], [1], [0, 0, 1, 1], [], []>} : vector<8x8xf32>, vector<8x32xf32>, vector<8x32xf32> -> vector<8x32xf32>
    %350 = arith.addf %331, %349 : vector<8x32xf32>
    %351 = arith.addf %231, %350 : vector<8x32xf32>
    %c1_153 = arith.constant 1 : index
    %c0_154 = arith.constant 0 : index
    %c0_155 = arith.constant 0 : index
    %352 = vector.load %arg13[%c1_153, %c0_154, %c0_155] : memref<2x1x32xf32, #tpu.memory_space<vmem>>, vector<1x1x32xf32>
    %353 = vector.shape_cast %352 : vector<1x1x32xf32> to vector<1x32xf32>
    %c1_156 = arith.constant 1 : index
    %c0_157 = arith.constant 0 : index
    %c0_158 = arith.constant 0 : index
    %354 = vector.load %arg14[%c1_156, %c0_157, %c0_158] : memref<2x1x32xf32, #tpu.memory_space<vmem>>, vector<1x1x32xf32>
    %355 = vector.shape_cast %354 : vector<1x1x32xf32> to vector<1x32xf32>
    %cst_159 = arith.constant dense<0.000000e+00> : vector<8xf32>
    %356 = vector.multi_reduction <add>, %351, %cst_159 [1] : vector<8x32xf32> to vector<8xf32>
    %357 = vector.shape_cast %356 : vector<8xf32> to vector<8x1xf32>
    %cst_160 = arith.constant 3.200000e+01 : f32
    %358 = vector.broadcast %cst_160 : f32 to vector<8x1xf32>
    %359 = arith.divf %357, %358 : vector<8x1xf32>
    %360 = vector.broadcast %359 : vector<8x1xf32> to vector<8x32xf32>
    %361 = arith.subf %351, %360 : vector<8x32xf32>
    %362 = arith.mulf %361, %361 : vector<8x32xf32>
    %cst_161 = arith.constant dense<0.000000e+00> : vector<8xf32>
    %363 = vector.multi_reduction <add>, %362, %cst_161 [1] : vector<8x32xf32> to vector<8xf32>
    %364 = vector.shape_cast %363 : vector<8xf32> to vector<8x1xf32>
    %cst_162 = arith.constant 3.200000e+01 : f32
    %365 = vector.broadcast %cst_162 : f32 to vector<8x1xf32>
    %366 = arith.divf %364, %365 : vector<8x1xf32>
    %367 = vector.broadcast %359 : vector<8x1xf32> to vector<8x32xf32>
    %368 = arith.subf %351, %367 : vector<8x32xf32>
    %cst_163 = arith.constant 9.99999974E-6 : f32
    %369 = vector.broadcast %cst_163 : f32 to vector<8x1xf32>
    %370 = arith.addf %366, %369 : vector<8x1xf32>
    %371 = math.rsqrt %370 : vector<8x1xf32>
    %372 = vector.broadcast %371 : vector<8x1xf32> to vector<8x32xf32>
    %373 = arith.mulf %368, %372 : vector<8x32xf32>
    %374 = vector.broadcast %353 : vector<1x32xf32> to vector<8x32xf32>
    %375 = arith.mulf %373, %374 : vector<8x32xf32>
    %376 = vector.broadcast %355 : vector<1x32xf32> to vector<8x32xf32>
    %377 = arith.addf %375, %376 : vector<8x32xf32>
    %c1_164 = arith.constant 1 : index
    %c0_165 = arith.constant 0 : index
    %c0_166 = arith.constant 0 : index
    %378 = vector.load %arg15[%c1_164, %c0_165, %c0_166] : memref<2x32x64xf32, #tpu.memory_space<vmem>>, vector<1x32x64xf32>
    %379 = vector.shape_cast %378 : vector<1x32x64xf32> to vector<32x64xf32>
    %cst_167 = arith.constant dense<0.000000e+00> : vector<8x64xf32>
    %380 = tpu.matmul %377, %379, %cst_167 {dimension_numbers = #tpu.dot_dimension_numbers<[1], [0], [0], [1], [0, 0, 1, 1], [], []>} : vector<8x32xf32>, vector<32x64xf32>, vector<8x64xf32> -> vector<8x64xf32>
    %c1_168 = arith.constant 1 : index
    %c0_169 = arith.constant 0 : index
    %c0_170 = arith.constant 0 : index
    %381 = vector.load %arg16[%c1_168, %c0_169, %c0_170] : memref<2x1x64xf32, #tpu.memory_space<vmem>>, vector<1x1x64xf32>
    %382 = vector.shape_cast %381 : vector<1x1x64xf32> to vector<1x64xf32>
    %383 = vector.broadcast %382 : vector<1x64xf32> to vector<8x64xf32>
    %384 = arith.addf %380, %383 : vector<8x64xf32>
    %cst_171 = arith.constant 5.000000e-01 : f32
    %385 = vector.broadcast %cst_171 : f32 to vector<8x64xf32>
    %386 = arith.mulf %385, %384 : vector<8x64xf32>
    %cst_172 = arith.constant 4.471500e-02 : f32
    %387 = vector.broadcast %cst_172 : f32 to vector<8x64xf32>
    %388 = arith.mulf %387, %384 : vector<8x64xf32>
    %389 = arith.mulf %388, %384 : vector<8x64xf32>
    %390 = arith.mulf %389, %384 : vector<8x64xf32>
    %391 = arith.addf %384, %390 : vector<8x64xf32>
    %cst_173 = arith.constant 0.797884583 : f32
    %392 = vector.broadcast %cst_173 : f32 to vector<8x64xf32>
    %393 = arith.mulf %392, %391 : vector<8x64xf32>
    %394 = math.tanh %393 : vector<8x64xf32>
    %cst_174 = arith.constant 1.000000e+00 : f32
    %395 = vector.broadcast %cst_174 : f32 to vector<8x64xf32>
    %396 = arith.addf %395, %394 : vector<8x64xf32>
    %397 = arith.mulf %386, %396 : vector<8x64xf32>
    %c1_175 = arith.constant 1 : index
    %c0_176 = arith.constant 0 : index
    %c0_177 = arith.constant 0 : index
    %398 = vector.load %arg17[%c1_175, %c0_176, %c0_177] : memref<2x64x32xf32, #tpu.memory_space<vmem>>, vector<1x64x32xf32>
    %399 = vector.shape_cast %398 : vector<1x64x32xf32> to vector<64x32xf32>
    %cst_178 = arith.constant dense<0.000000e+00> : vector<8x32xf32>
    %400 = tpu.matmul %397, %399, %cst_178 {dimension_numbers = #tpu.dot_dimension_numbers<[1], [0], [0], [1], [0, 0, 1, 1], [], []>} : vector<8x64xf32>, vector<64x32xf32>, vector<8x32xf32> -> vector<8x32xf32>
    %401 = arith.addf %351, %400 : vector<8x32xf32>
    %c1_179 = arith.constant 1 : index
    %c0_180 = arith.constant 0 : index
    %c0_181 = arith.constant 0 : index
    %402 = vector.load %arg18[%c1_179, %c0_180, %c0_181] : memref<2x1x32xf32, #tpu.memory_space<vmem>>, vector<1x1x32xf32>
    %403 = vector.shape_cast %402 : vector<1x1x32xf32> to vector<1x32xf32>
    %404 = vector.broadcast %403 : vector<1x32xf32> to vector<8x32xf32>
    %405 = arith.addf %401, %404 : vector<8x32xf32>
    %c0_182 = arith.constant 0 : index
    %c0_183 = arith.constant 0 : index
    %406 = vector.load %arg19[%c0_182, %c0_183] : memref<1x32xf32, #tpu.memory_space<vmem>>, vector<1x32xf32>
    %c0_184 = arith.constant 0 : index
    %c0_185 = arith.constant 0 : index
    %407 = vector.load %arg20[%c0_184, %c0_185] : memref<1x32xf32, #tpu.memory_space<vmem>>, vector<1x32xf32>
    %cst_186 = arith.constant dense<0.000000e+00> : vector<8xf32>
    %408 = vector.multi_reduction <add>, %405, %cst_186 [1] : vector<8x32xf32> to vector<8xf32>
    %409 = vector.shape_cast %408 : vector<8xf32> to vector<8x1xf32>
    %cst_187 = arith.constant 3.200000e+01 : f32
    %410 = vector.broadcast %cst_187 : f32 to vector<8x1xf32>
    %411 = arith.divf %409, %410 : vector<8x1xf32>
    %412 = vector.broadcast %411 : vector<8x1xf32> to vector<8x32xf32>
    %413 = arith.subf %405, %412 : vector<8x32xf32>
    %414 = arith.mulf %413, %413 : vector<8x32xf32>
    %cst_188 = arith.constant dense<0.000000e+00> : vector<8xf32>
    %415 = vector.multi_reduction <add>, %414, %cst_188 [1] : vector<8x32xf32> to vector<8xf32>
    %416 = vector.shape_cast %415 : vector<8xf32> to vector<8x1xf32>
    %cst_189 = arith.constant 3.200000e+01 : f32
    %417 = vector.broadcast %cst_189 : f32 to vector<8x1xf32>
    %418 = arith.divf %416, %417 : vector<8x1xf32>
    %419 = vector.broadcast %411 : vector<8x1xf32> to vector<8x32xf32>
    %420 = arith.subf %405, %419 : vector<8x32xf32>
    %cst_190 = arith.constant 9.99999974E-6 : f32
    %421 = vector.broadcast %cst_190 : f32 to vector<8x1xf32>
    %422 = arith.addf %418, %421 : vector<8x1xf32>
    %423 = math.rsqrt %422 : vector<8x1xf32>
    %424 = vector.broadcast %423 : vector<8x1xf32> to vector<8x32xf32>
    %425 = arith.mulf %420, %424 : vector<8x32xf32>
    %426 = vector.broadcast %406 : vector<1x32xf32> to vector<8x32xf32>
    %427 = arith.mulf %425, %426 : vector<8x32xf32>
    %428 = vector.broadcast %407 : vector<1x32xf32> to vector<8x32xf32>
    %429 = arith.addf %427, %428 : vector<8x32xf32>
    %c0_191 = arith.constant 0 : index
    %c0_192 = arith.constant 0 : index
    %c0_193 = arith.constant 0 : index
    %430 = vector.load %arg21[%c0_191, %c0_192, %c0_193] : memref<1x8x32xf32, #tpu.memory_space<vmem>>, vector<1x8x32xf32>
    %431 = vector.shape_cast %430 : vector<1x8x32xf32> to vector<8x32xf32>
    %432 = vector.shape_cast %429 : vector<8x32xf32> to vector<1x8x32xf32>
    tpu.vector_store %arg21[%c0_191, %c0_192, %c0_193], %432 {strides = array<i32>} : memref<1x8x32xf32, #tpu.memory_space<vmem>>, vector<1x8x32xf32>,
    %cst_194 = arith.constant 0.000000e+00 : f32
    %433 = vector.shape_cast %33 : vector<1x8xi1> to vector<1x8xi1>
    %434 = vector.broadcast %433 : vector<1x8xi1> to vector<8x8xi1>
    %435 = vector.broadcast %cst_194 : f32 to vector<8x8xf32>
    %436 = arith.select %434, %277, %435 : vector<8x8xi1>, vector<8x8xf32>
    %c0_195 = arith.constant 0 : index
    %c0_196 = arith.constant 0 : index
    %c0_197 = arith.constant 0 : index
    %c0_198 = arith.constant 0 : index
    %437 = vector.load %arg22[%c0_195, %c0_196, %c0_197, %c0_198] : memref<1x4x8x8xf32, #tpu.memory_space<vmem>>, vector<1x1x8x8xf32>
    %438 = vector.shape_cast %437 : vector<1x1x8x8xf32> to vector<8x8xf32>
    %439 = vector.shape_cast %436 : vector<8x8xf32> to vector<1x1x8x8xf32>
    tpu.vector_store %arg22[%c0_195, %c0_196, %c0_197, %c0_198], %439 {strides = array<i32>} : memref<1x4x8x8xf32, #tpu.memory_space<vmem>>, vector<1x1x8x8xf32>,
    %cst_199 = arith.constant 0.000000e+00 : f32
    %440 = vector.shape_cast %33 : vector<1x8xi1> to vector<1x8xi1>
    %441 = vector.broadcast %440 : vector<1x8xi1> to vector<8x8xi1>
    %442 = vector.broadcast %cst_199 : f32 to vector<8x8xf32>
    %443 = arith.select %441, %297, %442 : vector<8x8xi1>, vector<8x8xf32>
    %c0_200 = arith.constant 0 : index
    %c1_201 = arith.constant 1 : index
    %c0_202 = arith.constant 0 : index
    %c0_203 = arith.constant 0 : index
    %444 = vector.load %arg22[%c0_200, %c1_201, %c0_202, %c0_203] : memref<1x4x8x8xf32, #tpu.memory_space<vmem>>, vector<1x1x8x8xf32>
    %445 = vector.shape_cast %444 : vector<1x1x8x8xf32> to vector<8x8xf32>
    %446 = vector.shape_cast %443 : vector<8x8xf32> to vector<1x1x8x8xf32>
    tpu.vector_store %arg22[%c0_200, %c1_201, %c0_202, %c0_203], %446 {strides = array<i32>} : memref<1x4x8x8xf32, #tpu.memory_space<vmem>>, vector<1x1x8x8xf32>,
    %cst_204 = arith.constant 0.000000e+00 : f32
    %447 = vector.shape_cast %33 : vector<1x8xi1> to vector<1x8xi1>
    %448 = vector.broadcast %447 : vector<1x8xi1> to vector<8x8xi1>
    %449 = vector.broadcast %cst_204 : f32 to vector<8x8xf32>
    %450 = arith.select %448, %316, %449 : vector<8x8xi1>, vector<8x8xf32>
    %c0_205 = arith.constant 0 : index
    %c2_206 = arith.constant 2 : index
    %c0_207 = arith.constant 0 : index
    %c0_208 = arith.constant 0 : index
    %451 = vector.load %arg22[%c0_205, %c2_206, %c0_207, %c0_208] : memref<1x4x8x8xf32, #tpu.memory_space<vmem>>, vector<1x1x8x8xf32>
    %452 = vector.shape_cast %451 : vector<1x1x8x8xf32> to vector<8x8xf32>
    %453 = vector.shape_cast %450 : vector<8x8xf32> to vector<1x1x8x8xf32>
    tpu.vector_store %arg22[%c0_205, %c2_206, %c0_207, %c0_208], %453 {strides = array<i32>} : memref<1x4x8x8xf32, #tpu.memory_space<vmem>>, vector<1x1x8x8xf32>,
    %cst_209 = arith.constant 0.000000e+00 : f32
    %454 = vector.shape_cast %33 : vector<1x8xi1> to vector<1x8xi1>
    %455 = vector.broadcast %454 : vector<1x8xi1> to vector<8x8xi1>
    %456 = vector.broadcast %cst_209 : f32 to vector<8x8xf32>
    %457 = arith.select %455, %335, %456 : vector<8x8xi1>, vector<8x8xf32>
    %c0_210 = arith.constant 0 : index
    %c3_211 = arith.constant 3 : index
    %c0_212 = arith.constant 0 : index
    %c0_213 = arith.constant 0 : index
    %458 = vector.load %arg22[%c0_210, %c3_211, %c0_212, %c0_213] : memref<1x4x8x8xf32, #tpu.memory_space<vmem>>, vector<1x1x8x8xf32>
    %459 = vector.shape_cast %458 : vector<1x1x8x8xf32> to vector<8x8xf32>
    %460 = vector.shape_cast %457 : vector<8x8xf32> to vector<1x1x8x8xf32>
    tpu.vector_store %arg22[%c0_210, %c3_211, %c0_212, %c0_213], %460 {strides = array<i32>} : memref<1x4x8x8xf32, #tpu.memory_space<vmem>>, vector<1x1x8x8xf32>,
    return
  }
  func.func @transform_0(%arg0: i32) -> (i32, i32, i32) {
    %c0_i32 = arith.constant 0 : i32
    %c0_i32_0 = arith.constant 0 : i32
    %c0_i32_1 = arith.constant 0 : i32
    return %arg0, %c0_i32, %c0_i32_0 : i32, i32, i32
  }
  func.func @transform_1(%arg0: i32) -> (i32, i32, i32, i32) {
    %c0_i32 = arith.constant 0 : i32
    %c0_i32_0 = arith.constant 0 : i32
    %c0_i32_1 = arith.constant 0 : i32
    %c0_i32_2 = arith.constant 0 : i32
    return %c0_i32, %arg0, %c0_i32_0, %c0_i32_1 : i32, i32, i32, i32
  }
  func.func @transform_2(%arg0: i32) -> (i32, i32, i32) {
    %c0_i32 = arith.constant 0 : i32
    %c0_i32_0 = arith.constant 0 : i32
    %c0_i32_1 = arith.constant 0 : i32
    return %arg0, %c0_i32, %c0_i32_0 : i32, i32, i32
  }
  func.func @transform_3(%arg0: i32) -> (i32, i32, i32) {
    %c0_i32 = arith.constant 0 : i32
    %c0_i32_0 = arith.constant 0 : i32
    %c0_i32_1 = arith.constant 0 : i32
    return %arg0, %c0_i32, %c0_i32_0 : i32, i32, i32
  }
  func.func @transform_4(%arg0: i32) -> (i32, i32) {
    %c0_i32 = arith.constant 0 : i32
    %c0_i32_0 = arith.constant 0 : i32
    %c0_i32_1 = arith.constant 0 : i32
    return %c0_i32, %c0_i32_0 : i32, i32
  }
  func.func @transform_5(%arg0: i32) -> (i32, i32) {
    %c0_i32 = arith.constant 0 : i32
    %c0_i32_0 = arith.constant 0 : i32
    %c0_i32_1 = arith.constant 0 : i32
    return %c0_i32, %c0_i32_0 : i32, i32
  }
  func.func @transform_6(%arg0: i32) -> (i32, i32, i32) {
    %c0_i32 = arith.constant 0 : i32
    %c0_i32_0 = arith.constant 0 : i32
    %c0_i32_1 = arith.constant 0 : i32
    %c0_i32_2 = arith.constant 0 : i32
    return %c0_i32, %c0_i32_0, %c0_i32_1 : i32, i32, i32
  }
  func.func @transform_7(%arg0: i32) -> (i32, i32, i32) {
    %c0_i32 = arith.constant 0 : i32
    %c0_i32_0 = arith.constant 0 : i32
    %c0_i32_1 = arith.constant 0 : i32
    %c0_i32_2 = arith.constant 0 : i32
    return %c0_i32, %c0_i32_0, %c0_i32_1 : i32, i32, i32
  }
  func.func @transform_8(%arg0: i32) -> (i32, i32, i32) {
    %c0_i32 = arith.constant 0 : i32
    %c0_i32_0 = arith.constant 0 : i32
    %c0_i32_1 = arith.constant 0 : i32
    %c0_i32_2 = arith.constant 0 : i32
    return %c0_i32, %c0_i32_0, %c0_i32_1 : i32, i32, i32
  }
  func.func @transform_9(%arg0: i32) -> (i32, i32, i32) {
    %c0_i32 = arith.constant 0 : i32
    %c0_i32_0 = arith.constant 0 : i32
    %c0_i32_1 = arith.constant 0 : i32
    %c0_i32_2 = arith.constant 0 : i32
    return %c0_i32, %c0_i32_0, %c0_i32_1 : i32, i32, i32
  }
  func.func @transform_10(%arg0: i32) -> (i32, i32, i32) {
    %c0_i32 = arith.constant 0 : i32
    %c0_i32_0 = arith.constant 0 : i32
    %c0_i32_1 = arith.constant 0 : i32
    %c0_i32_2 = arith.constant 0 : i32
    return %c0_i32, %c0_i32_0, %c0_i32_1 : i32, i32, i32
  }
  func.func @transform_11(%arg0: i32) -> (i32, i32, i32) {
    %c0_i32 = arith.constant 0 : i32
    %c0_i32_0 = arith.constant 0 : i32
    %c0_i32_1 = arith.constant 0 : i32
    %c0_i32_2 = arith.constant 0 : i32
    return %c0_i32, %c0_i32_0, %c0_i32_1 : i32, i32, i32
  }
  func.func @transform_12(%arg0: i32) -> (i32, i32, i32) {
    %c0_i32 = arith.constant 0 : i32
    %c0_i32_0 = arith.constant 0 : i32
    %c0_i32_1 = arith.constant 0 : i32
    %c0_i32_2 = arith.constant 0 : i32
    return %c0_i32, %c0_i32_0, %c0_i32_1 : i32, i32, i32
  }
  func.func @transform_13(%arg0: i32) -> (i32, i32, i32) {
    %c0_i32 = arith.constant 0 : i32
    %c0_i32_0 = arith.constant 0 : i32
    %c0_i32_1 = arith.constant 0 : i32
    %c0_i32_2 = arith.constant 0 : i32
    return %c0_i32, %c0_i32_0, %c0_i32_1 : i32, i32, i32
  }
  func.func @transform_14(%arg0: i32) -> (i32, i32, i32) {
    %c0_i32 = arith.constant 0 : i32
    %c0_i32_0 = arith.constant 0 : i32
    %c0_i32_1 = arith.constant 0 : i32
    %c0_i32_2 = arith.constant 0 : i32
    return %c0_i32, %c0_i32_0, %c0_i32_1 : i32, i32, i32
  }
  func.func @transform_15(%arg0: i32) -> (i32, i32, i32) {
    %c0_i32 = arith.constant 0 : i32
    %c0_i32_0 = arith.constant 0 : i32
    %c0_i32_1 = arith.constant 0 : i32
    %c0_i32_2 = arith.constant 0 : i32
    return %c0_i32, %c0_i32_0, %c0_i32_1 : i32, i32, i32
  }
  func.func @transform_16(%arg0: i32) -> (i32, i32, i32) {
    %c0_i32 = arith.constant 0 : i32
    %c0_i32_0 = arith.constant 0 : i32
    %c0_i32_1 = arith.constant 0 : i32
    %c0_i32_2 = arith.constant 0 : i32
    return %c0_i32, %c0_i32_0, %c0_i32_1 : i32, i32, i32
  }
  func.func @transform_17(%arg0: i32) -> (i32, i32, i32) {
    %c0_i32 = arith.constant 0 : i32
    %c0_i32_0 = arith.constant 0 : i32
    %c0_i32_1 = arith.constant 0 : i32
    %c0_i32_2 = arith.constant 0 : i32
    return %c0_i32, %c0_i32_0, %c0_i32_1 : i32, i32, i32
  }
  func.func @transform_18(%arg0: i32) -> (i32, i32) {
    %c0_i32 = arith.constant 0 : i32
    %c0_i32_0 = arith.constant 0 : i32
    %c0_i32_1 = arith.constant 0 : i32
    return %c0_i32, %c0_i32_0 : i32, i32
  }
  func.func @transform_19(%arg0: i32) -> (i32, i32) {
    %c0_i32 = arith.constant 0 : i32
    %c0_i32_0 = arith.constant 0 : i32
    %c0_i32_1 = arith.constant 0 : i32
    return %c0_i32, %c0_i32_0 : i32, i32
  }
  func.func @transform_20(%arg0: i32) -> (i32, i32, i32) {
    %c0_i32 = arith.constant 0 : i32
    %c0_i32_0 = arith.constant 0 : i32
    %c0_i32_1 = arith.constant 0 : i32
    return %arg0, %c0_i32, %c0_i32_0 : i32, i32, i32
  }
  func.func @transform_21(%arg0: i32) -> (i32, i32, i32, i32) {
    %c0_i32 = arith.constant 0 : i32
    %c0_i32_0 = arith.constant 0 : i32
    %c0_i32_1 = arith.constant 0 : i32
    %c0_i32_2 = arith.constant 0 : i32
    return %arg0, %c0_i32, %c0_i32_0, %c0_i32_1 : i32, i32, i32, i32
  }
}

</mosaic_0001>

<llo_original>
// kernel: unimol_forward.2
$region0: #{unimol_forward.2}
  #allocation0 [shape = 'u32[]', space=smem, size = 0x4, offset = 0x4, fixed_abs, tag = 'smem constant byte address 0x4 - core index']
  #allocation1 [shape = 'u32[144,128]{1,0:T(1,128)}', space=vmem, size = 0x12000, scoped, tag = 'internal scratch']
  %s0 = inlined_call_operand.vmem [shape: f32[1,128], index: 0, kind: input, shape index: {}]
  %s1 = inlined_call_operand.vmem [shape: f32[1,128], index: 1, kind: input, shape index: {}]
  %s2 = inlined_call_operand.vmem [shape: f32[1,128], index: 2, kind: input, shape index: {}]
  %s3 = inlined_call_operand.vmem [shape: f32[16,1], index: 3, kind: input, shape index: {}]
  %s4 = inlined_call_operand.vmem [shape: f32[16,1], index: 4, kind: input, shape index: {}]
  %s5 = inlined_call_operand.vmem [shape: f32[16,16], index: 5, kind: input, shape index: {}]
  %s6 = inlined_call_operand.vmem [shape: f32[16,1], index: 6, kind: input, shape index: {}]
  %s7 = inlined_call_operand.vmem [shape: f32[4,16], index: 7, kind: input, shape index: {}]
  %s8 = inlined_call_operand.vmem [shape: f32[4,1], index: 8, kind: input, shape index: {}]
  %s9 = inlined_call_operand.vmem [shape: f32[4,128], index: 9, kind: output, shape index: {}]
  %s10 = sld [smem:[#allocation0]]
  $region46: #{unimol_forward.2} parent=0
    _
  %s12 = ssub.s32 1, %s10
  %s13 = scalar_select 0, %s12, %s10
  // Predicated region
  $region2: #{unimol_forward.2} parent=0 // pred_check
    _
  $region3: #{unimol_forward.2} parent=0 // pred_check_branch
    %15 = sbr.rel (0) target = $region5
  $region4: #{unimol_forward.2} parent=0 // pred_region
    _
  $region5: #{unimol_forward.2} parent=0 // pred_fallthru
    _
  // Predicated region
  $region6: #{unimol_forward.2} parent=0 // pred_check
    _
  $region7: #{unimol_forward.2} parent=0 // pred_check_branch
    %17 = sbr.rel (0) target = $region9
  $region8: #{unimol_forward.2} parent=0 // pred_region
    _
  $region9: #{unimol_forward.2} parent=0 // pred_fallthru
    _
  // Predicated region
  $region10: #{unimol_forward.2} parent=0 // pred_check
    _
  $region11: #{unimol_forward.2} parent=0 // pred_check_branch
    %19 = sbr.rel (0) target = $region13
  $region12: #{unimol_forward.2} parent=0 // pred_region
    _
  $region13: #{unimol_forward.2} parent=0 // pred_fallthru
    _
  // Predicated region
  $region14: #{unimol_forward.2} parent=0 // pred_check
    _
  $region15: #{unimol_forward.2} parent=0 // pred_check_branch
    %21 = sbr.rel (0) target = $region17
  $region16: #{unimol_forward.2} parent=0 // pred_region
    _
  $region17: #{unimol_forward.2} parent=0 // pred_fallthru
    _
  // Predicated region
  $region18: #{unimol_forward.2} parent=0 // pred_check
    _
  $region19: #{unimol_forward.2} parent=0 // pred_check_branch
    %23 = sbr.rel (0) target = $region21
  $region20: #{unimol_forward.2} parent=0 // pred_region
    _
  $region21: #{unimol_forward.2} parent=0 // pred_fallthru
    _
  // Predicated region
  $region22: #{unimol_forward.2} parent=0 // pred_check
    _
  $region23: #{unimol_forward.2} parent=0 // pred_check_branch
    %25 = sbr.rel (0) target = $region25
  $region24: #{unimol_forward.2} parent=0 // pred_region
    _
  $region25: #{unimol_forward.2} parent=0 // pred_fallthru
    _
  // Predicated region
  $region26: #{unimol_forward.2} parent=0 // pred_check
    _
  $region27: #{unimol_forward.2} parent=0 // pred_check_branch
    %27 = sbr.rel (0) target = $region29
  $region28: #{unimol_forward.2} parent=0 // pred_region
    _
  $region29: #{unimol_forward.2} parent=0 // pred_fallthru
    _
  // Predicated region
  $region30: #{unimol_forward.2} parent=0 // pred_check
    _
  $region31: #{unimol_forward.2} parent=0 // pred_check_branch
    %29 = sbr.rel (0) target = $region33
  $region32: #{unimol_forward.2} parent=0 // pred_region
    _
  $region33: #{unimol_forward.2} parent=0 // pred_fallthru
    _
  // Predicated region
  $region34: #{unimol_forward.2} parent=0 // pred_check
    _
  $region35: #{unimol_forward.2} parent=0 // pred_check_branch
    %31 = sbr.rel (0) target = $region37
  $region36: #{unimol_forward.2} parent=0 // pred_region
    _
  $region37: #{unimol_forward.2} parent=0 // pred_fallthru
    _
  %v32 = vld [vmem:[%s1] sm:$0x1]
  %v33 = vld [vmem:[%s0] sm:$0x1]
  %v34 = vmul.f32 %v32, %v33
  %v35 = vld [vmem:[%s2] sm:$0x1]
  %v36 = vadd.f32 %v34, %v35
  %v37 = vld [vmem:[%s4] sm:$0xff]
  %v38 = vld [vmem:[%s4 + $0x8] sm:$0xff]
  %v39 = vand.u32 2147483647, %v37
  %v40 = vand.u32 2147483647, %v38
  %v41 = vadd.f32 %v39, 1e-05
  %v42 = vadd.f32 %v40, 1e-05
  %v43 = vrcp.pop %v41
  %v44 = vmul.f32 1.0, %v43
  %v45 = vrcp.pop %v42
  %v46 = vmul.f32 1.0, %v45
  %v47 = vld [vmem:[%s3] sm:$0xff]
  %v48 = vld [vmem:[%s3 + $0x8] sm:$0xff]
  %v50 = vlaneseq
  %v51 = vshrl.u32 %v50, 7
  %v52 = vsub.s32 0, %v51
  %v53 = vrot.slane %v36, %v52
  %56 = vset.pattern.permute.xlu0 0
  %57 = vperm.xlu0 %56, %v47
  %v58 = vpop.permute.xlu0 %57
  %61 = vset.pattern.permute.xlu0 0
  %62 = vperm.xlu0 %61, %v48
  %v63 = vpop.permute.xlu0 %62
  %v65 = vsub.f32 %v53, %v58
  %v66 = vsub.f32 %v53, %v63
  %68 = vset.pattern.permute.xlu0 0
  %69 = vperm.xlu0 %68, %v44
  %v70 = vpop.permute.xlu0 %69
  %73 = vset.pattern.permute.xlu0 0
  %74 = vperm.xlu0 %73, %v46
  %v75 = vpop.permute.xlu0 %74
  %v77 = vmul.f32 %v65, %v70
  %v78 = vmul.f32 %v66, %v75
  %v79 = vmul.f32 %v77, -0.5
  %v80 = vmul.f32 %v78, -0.5
  %v81 = vmul.f32 %v79, %v77
  %v82 = vmul.f32 %v80, %v78
  %v83 = vmul.f32 %v81, 1.442695
  %v84 = vpow.pop %v83
  %v85 = vmul.f32 %v82, 1.442695
  %v86 = vpow.pop %v85
  %v87 = vmul.f32 %v44, 0.3989423
  %v88 = vmul.f32 %v46, 0.3989423
  %90 = vset.pattern.permute.xlu0 0
  %91 = vperm.xlu0 %90, %v87
  %v92 = vpop.permute.xlu0 %91
  %95 = vset.pattern.permute.xlu0 0
  %96 = vperm.xlu0 %95, %v88
  %v97 = vpop.permute.xlu0 %96
  %v99 = vmul.f32 %v84, %v92
  %v100 = vmul.f32 %v86, %v97
  %v101 = vld [vmem:[%s5] sm:$0xff]
  %v102 = vld [vmem:[%s5 + $0x8] sm:$0xff]
  %v103 = vld [vmem:[%s6] sm:$0xff]
  %v104 = vld [vmem:[%s6 + $0x8] sm:$0xff]
  %106 = vset.pattern.permute.xlu0 0
  %107 = vperm.xlu0 %106, %v103
  %v108 = vpop.permute.xlu0 %107
  %111 = vset.pattern.permute.xlu0 0
  %112 = vperm.xlu0 %111, %v104
  %v113 = vpop.permute.xlu0 %112
  %vm115 = vcmask 130048
  %v117 = vsel %vm115, %v101, 0
  %v120 = vsel %vm115, %v102, 0
  %122 = vmatprep.subr.mxu0 0.0
  %123 = vmatpush1.msra.mxu0 %v99
  %124 = vmatprep.subr.mxu0 0.0
  %125 = vmatpush1.msra.mxu0 %v100
  %126 = vmatprep.subr.mxu0 0.0
  %127 = vmatpush1.msra.mxu0 0.0
  %128 = vmatprep.subr.mxu0 0.0
  %129 = vmatpush1.msra.mxu0 0.0
  %130 = vmatprep.subr.mxu0 0.0
  %131 = vmatpush1.msra.mxu0 0.0
  %132 = vmatprep.subr.mxu0 0.0
  %133 = vmatpush1.msra.mxu0 0.0
  %134 = vmatprep.subr.mxu0 0.0
  %135 = vmatpush1.msra.mxu0 0.0
  %136 = vmatprep.subr.mxu0 0.0
  %137 = vmatpush1.msra.mxu0 0.0
  %138 = vmatprep.subr.mxu0 0.0
  %139 = vmatpush1.msra.mxu0 0.0
  %140 = vmatprep.subr.mxu0 0.0
  %141 = vmatpush1.msra.mxu0 0.0
  %142 = vmatprep.subr.mxu0 0.0
  %143 = vmatpush1.msra.mxu0 0.0
  %144 = vmatprep.subr.mxu0 0.0
  %145 = vmatpush1.msra.mxu0 0.0
  %146 = vmatprep.subr.mxu0 0.0
  %147 = vmatpush1.msra.mxu0 0.0
  %148 = vmatprep.subr.mxu0 0.0
  %149 = vmatpush1.msra.mxu0 0.0
  %150 = vmatprep.subr.mxu0 0.0
  %151 = vmatpush1.msra.mxu0 0.0
  %152 = vmatprep.subr.mxu0 0.0
  %153 = vmatpush1.msra.mxu0 0.0
  %154 = vmatprep.subr.mxu0 0.0
  %155 = vmatpush1.msra.mxu0 0.0
  %156 = vmatprep.subr.mxu0 0.0
  %157 = vmatpush1.msra.mxu0 0.0
  %158 = vmatprep.subr.mxu0 0.0
  %159 = vmatpush1.msra.mxu0 0.0
  %160 = vmatprep.subr.mxu0 0.0
  %161 = vmatpush1.msra.mxu0 0.0
  %162 = vmatprep.subr.mxu0 0.0
  %163 = vmatpush1.msra.mxu0 0.0
  %164 = vmatprep.subr.mxu0 0.0
  %165 = vmatpush1.msra.mxu0 0.0
  %166 = vmatprep.subr.mxu0 0.0
  %167 = vmatpush1.msra.mxu0 0.0
  %168 = vmatprep.subr.mxu0 0.0
  %169 = vmatpush1.msra.mxu0 0.0
  %170 = vmatprep.subr.mxu0 0.0
  %171 = vmatpush1.msra.mxu0 0.0
  %172 = vmatprep.subr.mxu0 0.0
  %173 = vmatpush1.msra.mxu0 0.0
  %174 = vmatprep.subr.mxu0 0.0
  %175 = vmatpush1.msra.mxu0 0.0
  %176 = vmatprep.subr.mxu0 0.0
  %177 = vmatpush1.msra.mxu0 0.0
  %178 = vmatprep.subr.mxu0 0.0
  %179 = vmatpush1.msra.mxu0 0.0
  %180 = vmatprep.subr.mxu0 0.0
  %181 = vmatpush1.msra.mxu0 0.0
  %182 = vmatprep.subr.mxu0 0.0
  %183 = vmatpush1.msra.mxu0 0.0
  %184 = vmatprep.subr.mxu0 0.0
  %185 = vmatpush1.msra.mxu0 0.0
  %186 = vmatprep.mubr.f32.mxu0 0.0
  %187 = vmatmul.mubr.f32.gmra.mrb[0].mxu0 %v117
  %v188 = vpop.f32.mrb[0].mxu0
  %v189 = vadd.f32 %v108, %v188
  %v190 = vpop.f32.mrb[0].mxu0
  %191 = vmatprep.mubr.f32.mxu0 0.0
  %192 = vmatmul.mubr.f32.gmra.mrb[0].mxu0 %v120
  %v193 = vpop.f32.mrb[0].mxu0
  %v194 = vadd.f32 %v113, %v193
  %v195 = vpop.f32.mrb[0].mxu0
  %196 = vdwg.mxu0
  %v197 = vmul.f32 %v189, 0.5
  %v198 = vmul.f32 %v194, 0.5
  %v199 = vmul.f32 %v189, 0.044715
  %v200 = vmul.f32 %v194, 0.044715
  %v201 = vmul.f32 %v199, %v189
  %v202 = vmul.f32 %v200, %v194
  %v203 = vmul.f32 %v201, %v189
  %v204 = vmul.f32 %v202, %v194
  %v205 = vadd.f32 %v189, %v203
  %v206 = vadd.f32 %v194, %v204
  %v207 = vmul.f32 %v205, 0.7978846
  %v208 = vmul.f32 %v206, 0.7978846
  %v209 = vtanh.pop %v207
  %v210 = vtanh.pop %v208
  %v211 = vadd.f32 %v209, 1.0
  %v212 = vadd.f32 %v210, 1.0
  %v213 = vmul.f32 %v197, %v211
  %v214 = vmul.f32 %v198, %v212
  %v215 = vld [vmem:[%s7] sm:$0xf]
  %v216 = vld [vmem:[%s8] sm:$0xf]
  %218 = vset.pattern.permute.xlu0 0
  %219 = vperm.xlu0 %218, %v216
  %v220 = vpop.permute.xlu0 %219
  %v223 = vsel %vm115, %v215, 0
  %225 = vmatprep.subr.mxu0 0.0
  %226 = vmatpush1.msra.mxu0 %v213
  %227 = vmatprep.subr.mxu0 0.0
  %228 = vmatpush1.msra.mxu0 %v214
  %229 = vmatprep.subr.mxu0 0.0
  %230 = vmatpush1.msra.mxu0 0.0
  %231 = vmatprep.subr.mxu0 0.0
  %232 = vmatpush1.msra.mxu0 0.0
  %233 = vmatprep.subr.mxu0 0.0
  %234 = vmatpush1.msra.mxu0 0.0
  %235 = vmatprep.subr.mxu0 0.0
  %236 = vmatpush1.msra.mxu0 0.0
  %237 = vmatprep.subr.mxu0 0.0
  %238 = vmatpush1.msra.mxu0 0.0
  %239 = vmatprep.subr.mxu0 0.0
  %240 = vmatpush1.msra.mxu0 0.0
  %241 = vmatprep.subr.mxu0 0.0
  %242 = vmatpush1.msra.mxu0 0.0
  %243 = vmatprep.subr.mxu0 0.0
  %244 = vmatpush1.msra.mxu0 0.0
  %245 = vmatprep.subr.mxu0 0.0
  %246 = vmatpush1.msra.mxu0 0.0
  %247 = vmatprep.subr.mxu0 0.0
  %248 = vmatpush1.msra.mxu0 0.0
  %249 = vmatprep.subr.mxu0 0.0
  %250 = vmatpush1.msra.mxu0 0.0
  %251 = vmatprep.subr.mxu0 0.0
  %252 = vmatpush1.msra.mxu0 0.0
  %253 = vmatprep.subr.mxu0 0.0
  %254 = vmatpush1.msra.mxu0 0.0
  %255 = vmatprep.subr.mxu0 0.0
  %256 = vmatpush1.msra.mxu0 0.0
  %257 = vmatprep.subr.mxu0 0.0
  %258 = vmatpush1.msra.mxu0 0.0
  %259 = vmatprep.subr.mxu0 0.0
  %260 = vmatpush1.msra.mxu0 0.0
  %261 = vmatprep.subr.mxu0 0.0
  %262 = vmatpush1.msra.mxu0 0.0
  %263 = vmatprep.subr.mxu0 0.0
  %264 = vmatpush1.msra.mxu0 0.0
  %265 = vmatprep.subr.mxu0 0.0
  %266 = vmatpush1.msra.mxu0 0.0
  %267 = vmatprep.subr.mxu0 0.0
  %268 = vmatpush1.msra.mxu0 0.0
  %269 = vmatprep.subr.mxu0 0.0
  %270 = vmatpush1.msra.mxu0 0.0
  %271 = vmatprep.subr.mxu0 0.0
  %272 = vmatpush1.msra.mxu0 0.0
  %273 = vmatprep.subr.mxu0 0.0
  %274 = vmatpush1.msra.mxu0 0.0
  %275 = vmatprep.subr.mxu0 0.0
  %276 = vmatpush1.msra.mxu0 0.0
  %277 = vmatprep.subr.mxu0 0.0
  %278 = vmatpush1.msra.mxu0 0.0
  %279 = vmatprep.subr.mxu0 0.0
  %280 = vmatpush1.msra.mxu0 0.0
  %281 = vmatprep.subr.mxu0 0.0
  %282 = vmatpush1.msra.mxu0 0.0
  %283 = vmatprep.subr.mxu0 0.0
  %284 = vmatpush1.msra.mxu0 0.0
  %285 = vmatprep.subr.mxu0 0.0
  %286 = vmatpush1.msra.mxu0 0.0
  %287 = vmatprep.subr.mxu0 0.0
  %288 = vmatpush1.msra.mxu0 0.0
  %289 = vmatprep.mubr.f32.mxu0 0.0
  %290 = vmatmul.mubr.f32.gmra.mrb[0].mxu0 %v223
  %v291 = vpop.f32.mrb[0].mxu0
  %v292 = vadd.f32 %v220, %v291
  %v293 = vpop.f32.mrb[0].mxu0
  %294 = vdwg.mxu0
  %295 = vst [vmem:[%s9] sm:$0xf] %v292
  // Predicated region
  $region38: #{unimol_forward.2} parent=0 // pred_check
    _
  $region39: #{unimol_forward.2} parent=0 // pred_check_branch
    %297 = sbr.rel (0) target = $region41
  $region40: #{unimol_forward.2} parent=0 // pred_region
    _
  $region41: #{unimol_forward.2} parent=0 // pred_fallthru
    _
  // Predicated region
  $region42: #{unimol_forward.2} parent=0 // pred_check
    _
  $region43: #{unimol_forward.2} parent=0 // pred_check_branch
    %299 = sbr.rel (0) target = $region45
  $region44: #{unimol_forward.2} parent=0 // pred_region
    _
  $region45: #{unimol_forward.2} parent=0 // pred_fallthru
    _

// kernel: unimol_forward.3
$region0: #{unimol_forward.3}
  #allocation0 [shape = 'u32[]', space=smem, size = 0x4, offset = 0x4, fixed_abs, tag = 'smem constant byte address 0x4 - core index']
  #allocation1 [shape = 'u32[144,128]{1,0:T(1,128)}', space=vmem, size = 0x12000, scoped, tag = 'internal scratch']
  %s0 = inlined_call_operand.vmem [shape: f32[2,8,32], index: 0, kind: input, shape index: {}]
  %s1 = inlined_call_operand.vmem [shape: f32[4,2,8,8], index: 1, kind: input, shape index: {}]
  %s2 = inlined_call_operand.vmem [shape: f32[2,8,1], index: 2, kind: input, shape index: {}]
  %s3 = inlined_call_operand.vmem [shape: f32[2,1,8], index: 3, kind: input, shape index: {}]
  %s4 = inlined_call_operand.vmem [shape: f32[1,32], index: 4, kind: input, shape index: {}]
  %s5 = inlined_call_operand.vmem [shape: f32[1,32], index: 5, kind: input, shape index: {}]
  %s6 = inlined_call_operand.vmem [shape: f32[2,1,32], index: 6, kind: input, shape index: {}]
  %s7 = inlined_call_operand.vmem [shape: f32[2,1,32], index: 7, kind: input, shape index: {}]
  %s8 = inlined_call_operand.vmem [shape: f32[2,32,96], index: 8, kind: input, shape index: {}]
  %s9 = inlined_call_operand.vmem [shape: f32[2,1,96], index: 9, kind: input, shape index: {}]
  %s10 = inlined_call_operand.vmem [shape: f32[2,32,32], index: 10, kind: input, shape index: {}]
  %s11 = inlined_call_operand.vmem [shape: f32[2,1,32], index: 11, kind: input, shape index: {}]
  %s12 = inlined_call_operand.vmem [shape: f32[2,1,32], index: 12, kind: input, shape index: {}]
  %s13 = inlined_call_operand.vmem [shape: f32[2,1,32], index: 13, kind: input, shape index: {}]
  %s14 = inlined_call_operand.vmem [shape: f32[2,32,64], index: 14, kind: input, shape index: {}]
  %s15 = inlined_call_operand.vmem [shape: f32[2,1,64], index: 15, kind: input, shape index: {}]
  %s16 = inlined_call_operand.vmem [shape: f32[2,64,32], index: 16, kind: input, shape index: {}]
  %s17 = inlined_call_operand.vmem [shape: f32[2,1,32], index: 17, kind: input, shape index: {}]
  %s18 = inlined_call_operand.vmem [shape: f32[1,32], index: 18, kind: input, shape index: {}]
  %s19 = inlined_call_operand.vmem [shape: f32[1,32], index: 19, kind: input, shape index: {}]
  %s20 = inlined_call_operand.hbm [shape: f32[2,8,32], index: 20, kind: output, shape index: {0}]
  %s21 = inlined_call_operand.vmem [shape: f32[2,4,8,8], index: 21, kind: output, shape index: {1}]
  %22 = xla_tuple %s20, %s21
  %s23 = sld [smem:[#allocation0]]
  $region159: #{unimol_forward.3} parent=0
    _
  %s25 = ssub.s32 1, %s23
  %s26 = scalar_select 0, %s25, %s23
  $region1: #{unimol_forward.3} parent=0
    #allocation2 [shape = 'u8[32768]{0}', space=vmem, size = 0x8000, scoped, tag = 'input window, operand 1']
    #allocation3 [shape = 'u8[8192]{0}', space=vmem, size = 0x2000, scoped, tag = 'output window, operand 0']
    #allocation4 [shape = 's32[2]{0}', space=sflag, size = 0x8, scoped, tag = 'scoped memory for unimol_forward.3']
    %27 = vsyncpa [#allocation4], 0
    %s28 = scalar_lea.sflag [#allocation4], 1
    %29 = vsyncpa %s28, 0
    loop: start=0, step=1, limit=4
    $region2: #{unimol_forward.3} parent=1 // loop_pre_header
      _
    $region3: #{unimol_forward.3} parent=1 // loop_header
      %s31 = sphi 0, %s35
      %p32 = scmp.ge.s32.totalorder %s31, 4
      %s41 = sphi 0, %s43
      %s44 = sphi 0, %s41
      %s45 = sphi 0, %s44
      %s61 = sphi 0, %s45
      %s67 = sphi 0, %s69
      %s70 = sphi 0, %s67
      %s71 = sphi 0, %s70
      %s87 = sphi 0, %s71
      %s93 = sphi 0, %s95
      %s96 = sphi 0, %s93
      %s97 = sphi 0, %s96
      %s113 = sphi 0, %s97
      %s119 = sphi 0, %s121
      %s122 = sphi 0, %s119
      %s123 = sphi 0, %s122
      %s139 = sphi 0, %s123
      %s143 = sphi 0, %s143
      %s145 = sphi 0, %s143
      %s146 = sphi 0, %s145
      %s160 = sphi 0, %s146
      %s164 = sphi 0, %s164
      %s166 = sphi 0, %s164
      %s167 = sphi 0, %s166
      %s181 = sphi 0, %s167
      %s185 = sphi 0, %s185
      %s187 = sphi 0, %s185
      %s188 = sphi 0, %s187
      %s202 = sphi 0, %s188
      %s206 = sphi 0, %s206
      %s208 = sphi 0, %s206
      %s209 = sphi 0, %s208
      %s223 = sphi 0, %s209
      %s227 = sphi 0, %s227
      %s229 = sphi 0, %s227
      %s230 = sphi 0, %s229
      %s244 = sphi 0, %s230
      %s248 = sphi 0, %s248
      %s250 = sphi 0, %s248
      %s251 = sphi 0, %s250
      %s265 = sphi 0, %s251
      %s269 = sphi 0, %s269
      %s271 = sphi 0, %s269
      %s272 = sphi 0, %s271
      %s286 = sphi 0, %s272
      %s290 = sphi 0, %s290
      %s292 = sphi 0, %s290
      %s293 = sphi 0, %s292
      %s307 = sphi 0, %s293
      %s311 = sphi 0, %s311
      %s313 = sphi 0, %s311
      %s314 = sphi 0, %s313
      %s328 = sphi 0, %s314
      %s332 = sphi 0, %s332
      %s334 = sphi 0, %s332
      %s335 = sphi 0, %s334
      %s349 = sphi 0, %s335
      %s353 = sphi 0, %s353
      %s355 = sphi 0, %s353
      %s356 = sphi 0, %s355
      %s370 = sphi 0, %s356
      %s374 = sphi 0, %s374
      %s376 = sphi 0, %s374
      %s377 = sphi 0, %s376
      %s391 = sphi 0, %s377
      %s395 = sphi 0, %s395
      %s397 = sphi 0, %s395
      %s398 = sphi 0, %s397
      %s412 = sphi 0, %s398
      %s416 = sphi 0, %s416
      %s418 = sphi 0, %s416
      %s419 = sphi 0, %s418
      %s433 = sphi 0, %s419
      %s437 = sphi 0, %s437
      %s439 = sphi 0, %s437
      %s440 = sphi 0, %s439
      %s454 = sphi 0, %s440
      %s458 = sphi 0, %s458
      %s460 = sphi 0, %s458
      %s461 = sphi 0, %s460
      %s475 = sphi 0, %s461
      %s481 = sphi 0, %s483
      %s484 = sphi 0, %s481
      %s485 = sphi 0, %s484
      %s501 = sphi 0, %s485
      %s507 = sphi 0, %s509
      %s510 = sphi 0, %s507
      %s511 = sphi 0, %s510
      %s527 = sphi 0, %s511
    $region4: #{unimol_forward.3} parent=1 // loop_header_branch
      %34 = sbr.rel (%p32) target = $region8
    $region5: #{unimol_forward.3} parent=1 // loop_body
      %s36 = ssub.s32 %s31, 1
      %s37 = ssub.s32 %s31, 2
      %s38 = sadd.s32 %s31, 1
      %s39 = ssub.s32 %s31, %s38
      %p40 = scmp.eq.s32.totalorder %s39, 0
      %s42 = sadd.s32 %s41, 1
      %s43 = scalar_select %p40, %s41, %s42
      %p46 = pneg %p40
      %p47 = scmp.eq.s32.totalorder %s31, 1
      %p48 = por %p46, %p47
      %p49 = scmp.ne.s32.totalorder %s41, %s44
      %p50 = scmp.eq.s32.totalorder %s31, 0
      %p51 = por %p49, %p50
      %p52 = scmp.ne.s32.totalorder %s41, %s44
      %p53 = scmp.eq.s32.totalorder %s36, 1
      %p54 = por %p52, %p53
      %p55 = scmp.ne.s32.totalorder %s44, %s45
      %p56 = scmp.eq.s32.totalorder %s36, 0
      %p57 = por %p55, %p56
      %p58 = scmp.ne.s32.totalorder %s44, %s45
      %p59 = scmp.eq.s32.totalorder %s37, 1
      %p60 = por %p58, %p59
      %p62 = scmp.ne.s32.totalorder %s45, %s61
      %p63 = scmp.eq.s32.totalorder %s37, 0
      %p64 = por %p62, %p63
      %s65 = ssub.s32 %s31, %s38
      %p66 = scmp.eq.s32.totalorder %s65, 0
      %s68 = sadd.s32 %s67, 1
      %s69 = scalar_select %p66, %s67, %s68
      %p72 = pneg %p66
      %p73 = scmp.eq.s32.totalorder %s31, 1
      %p74 = por %p72, %p73
      %p75 = scmp.ne.s32.totalorder %s67, %s70
      %p76 = scmp.eq.s32.totalorder %s31, 0
      %p77 = por %p75, %p76
      %p78 = scmp.ne.s32.totalorder %s67, %s70
      %p79 = scmp.eq.s32.totalorder %s36, 1
      %p80 = por %p78, %p79
      %p81 = scmp.ne.s32.totalorder %s70, %s71
      %p82 = scmp.eq.s32.totalorder %s36, 0
      %p83 = por %p81, %p82
      %p84 = scmp.ne.s32.totalorder %s70, %s71
      %p85 = scmp.eq.s32.totalorder %s37, 1
      %p86 = por %p84, %p85
      %p88 = scmp.ne.s32.totalorder %s71, %s87
      %p89 = scmp.eq.s32.totalorder %s37, 0
      %p90 = por %p88, %p89
      %s91 = ssub.s32 %s31, %s38
      %p92 = scmp.eq.s32.totalorder %s91, 0
      %s94 = sadd.s32 %s93, 1
      %s95 = scalar_select %p92, %s93, %s94
      %p98 = pneg %p92
      %p99 = scmp.eq.s32.totalorder %s31, 1
      %p100 = por %p98, %p99
      %p101 = scmp.ne.s32.totalorder %s93, %s96
      %p102 = scmp.eq.s32.totalorder %s31, 0
      %p103 = por %p101, %p102
      %p104 = scmp.ne.s32.totalorder %s93, %s96
      %p105 = scmp.eq.s32.totalorder %s36, 1
      %p106 = por %p104, %p105
      %p107 = scmp.ne.s32.totalorder %s96, %s97
      %p108 = scmp.eq.s32.totalorder %s36, 0
      %p109 = por %p107, %p108
      %p110 = scmp.ne.s32.totalorder %s96, %s97
      %p111 = scmp.eq.s32.totalorder %s37, 1
      %p112 = por %p110, %p111
      %p114 = scmp.ne.s32.totalorder %s97, %s113
      %p115 = scmp.eq.s32.totalorder %s37, 0
      %p116 = por %p114, %p115
      %s117 = ssub.s32 %s31, %s38
      %p118 = scmp.eq.s32.totalorder %s117, 0
      %s120 = sadd.s32 %s119, 1
      %s121 = scalar_select %p118, %s119, %s120
      %p124 = pneg %p118
      %p125 = scmp.eq.s32.totalorder %s31, 1
      %p126 = por %p124, %p125
      %p127 = scmp.ne.s32.totalorder %s119, %s122
      %p128 = scmp.eq.s32.totalorder %s31, 0
      %p129 = por %p127, %p128
      %p130 = scmp.ne.s32.totalorder %s119, %s122
      %p131 = scmp.eq.s32.totalorder %s36, 1
      %p132 = por %p130, %p131
      %p133 = scmp.ne.s32.totalorder %s122, %s123
      %p134 = scmp.eq.s32.totalorder %s36, 0
      %p135 = por %p133, %p134
      %p136 = scmp.ne.s32.totalorder %s122, %s123
      %p137 = scmp.eq.s32.totalorder %s37, 1
      %p138 = por %p136, %p137
      %p140 = scmp.ne.s32.totalorder %s123, %s139
      %p141 = scmp.eq.s32.totalorder %s37, 0
      %p142 = por %p140, %p141
      %s144 = sadd.s32 %s143, 1
      %p147 = scmp.eq.s32.totalorder %s31, 1
      %p148 = scmp.ne.s32.totalorder %s143, %s145
      %p149 = scmp.eq.s32.totalorder %s31, 0
      %p150 = por %p148, %p149
      %p151 = scmp.ne.s32.totalorder %s143, %s145
      %p152 = scmp.eq.s32.totalorder %s36, 1
      %p153 = por %p151, %p152
      %p154 = scmp.ne.s32.totalorder %s145, %s146
      %p155 = scmp.eq.s32.totalorder %s36, 0
      %p156 = por %p154, %p155
      %p157 = scmp.ne.s32.totalorder %s145, %s146
      %p158 = scmp.eq.s32.totalorder %s37, 1
      %p159 = por %p157, %p158
      %p161 = scmp.ne.s32.totalorder %s146, %s160
      %p162 = scmp.eq.s32.totalorder %s37, 0
      %p163 = por %p161, %p162
      %s165 = sadd.s32 %s164, 1
      %p168 = scmp.eq.s32.totalorder %s31, 1
      %p169 = scmp.ne.s32.totalorder %s164, %s166
      %p170 = scmp.eq.s32.totalorder %s31, 0
      %p171 = por %p169, %p170
      %p172 = scmp.ne.s32.totalorder %s164, %s166
      %p173 = scmp.eq.s32.totalorder %s36, 1
      %p174 = por %p172, %p173
      %p175 = scmp.ne.s32.totalorder %s166, %s167
      %p176 = scmp.eq.s32.totalorder %s36, 0
      %p177 = por %p175, %p176
      %p178 = scmp.ne.s32.totalorder %s166, %s167
      %p179 = scmp.eq.s32.totalorder %s37, 1
      %p180 = por %p178, %p179
      %p182 = scmp.ne.s32.totalorder %s167, %s181
      %p183 = scmp.eq.s32.totalorder %s37, 0
      %p184 = por %p182, %p183
      %s186 = sadd.s32 %s185, 1
      %p189 = scmp.eq.s32.totalorder %s31, 1
      %p190 = scmp.ne.s32.totalorder %s185, %s187
      %p191 = scmp.eq.s32.totalorder %s31, 0
      %p192 = por %p190, %p191
      %p193 = scmp.ne.s32.totalorder %s185, %s187
      %p194 = scmp.eq.s32.totalorder %s36, 1
      %p195 = por %p193, %p194
      %p196 = scmp.ne.s32.totalorder %s187, %s188
      %p197 = scmp.eq.s32.totalorder %s36, 0
      %p198 = por %p196, %p197
      %p199 = scmp.ne.s32.totalorder %s187, %s188
      %p200 = scmp.eq.s32.totalorder %s37, 1
      %p201 = por %p199, %p200
      %p203 = scmp.ne.s32.totalorder %s188, %s202
      %p204 = scmp.eq.s32.totalorder %s37, 0
      %p205 = por %p203, %p204
      %s207 = sadd.s32 %s206, 1
      %p210 = scmp.eq.s32.totalorder %s31, 1
      %p211 = scmp.ne.s32.totalorder %s206, %s208
      %p212 = scmp.eq.s32.totalorder %s31, 0
      %p213 = por %p211, %p212
      %p214 = scmp.ne.s32.totalorder %s206, %s208
      %p215 = scmp.eq.s32.totalorder %s36, 1
      %p216 = por %p214, %p215
      %p217 = scmp.ne.s32.totalorder %s208, %s209
      %p218 = scmp.eq.s32.totalorder %s36, 0
      %p219 = por %p217, %p218
      %p220 = scmp.ne.s32.totalorder %s208, %s209
      %p221 = scmp.eq.s32.totalorder %s37, 1
      %p222 = por %p220, %p221
      %p224 = scmp.ne.s32.totalorder %s209, %s223
      %p225 = scmp.eq.s32.totalorder %s37, 0
      %p226 = por %p224, %p225
      %s228 = sadd.s32 %s227, 1
      %p231 = scmp.eq.s32.totalorder %s31, 1
      %p232 = scmp.ne.s32.totalorder %s227, %s229
      %p233 = scmp.eq.s32.totalorder %s31, 0
      %p234 = por %p232, %p233
      %p235 = scmp.ne.s32.totalorder %s227, %s229
      %p236 = scmp.eq.s32.totalorder %s36, 1
      %p237 = por %p235, %p236
      %p238 = scmp.ne.s32.totalorder %s229, %s230
      %p239 = scmp.eq.s32.totalorder %s36, 0
      %p240 = por %p238, %p239
      %p241 = scmp.ne.s32.totalorder %s229, %s230
      %p242 = scmp.eq.s32.totalorder %s37, 1
      %p243 = por %p241, %p242
      %p245 = scmp.ne.s32.totalorder %s230, %s244
      %p246 = scmp.eq.s32.totalorder %s37, 0
      %p247 = por %p245, %p246
      %s249 = sadd.s32 %s248, 1
      %p252 = scmp.eq.s32.totalorder %s31, 1
      %p253 = scmp.ne.s32.totalorder %s248, %s250
      %p254 = scmp.eq.s32.totalorder %s31, 0
      %p255 = por %p253, %p254
      %p256 = scmp.ne.s32.totalorder %s248, %s250
      %p257 = scmp.eq.s32.totalorder %s36, 1
      %p258 = por %p256, %p257
      %p259 = scmp.ne.s32.totalorder %s250, %s251
      %p260 = scmp.eq.s32.totalorder %s36, 0
      %p261 = por %p259, %p260
      %p262 = scmp.ne.s32.totalorder %s250, %s251
      %p263 = scmp.eq.s32.totalorder %s37, 1
      %p264 = por %p262, %p263
      %p266 = scmp.ne.s32.totalorder %s251, %s265
      %p267 = scmp.eq.s32.totalorder %s37, 0
      %p268 = por %p266, %p267
      %s270 = sadd.s32 %s269, 1
      %p273 = scmp.eq.s32.totalorder %s31, 1
      %p274 = scmp.ne.s32.totalorder %s269, %s271
      %p275 = scmp.eq.s32.totalorder %s31, 0
      %p276 = por %p274, %p275
      %p277 = scmp.ne.s32.totalorder %s269, %s271
      %p278 = scmp.eq.s32.totalorder %s36, 1
      %p279 = por %p277, %p278
      %p280 = scmp.ne.s32.totalorder %s271, %s272
      %p281 = scmp.eq.s32.totalorder %s36, 0
      %p282 = por %p280, %p281
      %p283 = scmp.ne.s32.totalorder %s271, %s272
      %p284 = scmp.eq.s32.totalorder %s37, 1
      %p285 = por %p283, %p284
      %p287 = scmp.ne.s32.totalorder %s272, %s286
      %p288 = scmp.eq.s32.totalorder %s37, 0
      %p289 = por %p287, %p288
      %s291 = sadd.s32 %s290, 1
      %p294 = scmp.eq.s32.totalorder %s31, 1
      %p295 = scmp.ne.s32.totalorder %s290, %s292
      %p296 = scmp.eq.s32.totalorder %s31, 0
      %p297 = por %p295, %p296
      %p298 = scmp.ne.s32.totalorder %s290, %s292
      %p299 = scmp.eq.s32.totalorder %s36, 1
      %p300 = por %p298, %p299
      %p301 = scmp.ne.s32.totalorder %s292, %s293
      %p302 = scmp.eq.s32.totalorder %s36, 0
      %p303 = por %p301, %p302
      %p304 = scmp.ne.s32.totalorder %s292, %s293
      %p305 = scmp.eq.s32.totalorder %s37, 1
      %p306 = por %p304, %p305
      %p308 = scmp.ne.s32.totalorder %s293, %s307
      %p309 = scmp.eq.s32.totalorder %s37, 0
      %p310 = por %p308, %p309
      %s312 = sadd.s32 %s311, 1
      %p315 = scmp.eq.s32.totalorder %s31, 1
      %p316 = scmp.ne.s32.totalorder %s311, %s313
      %p317 = scmp.eq.s32.totalorder %s31, 0
      %p318 = por %p316, %p317
      %p319 = scmp.ne.s32.totalorder %s311, %s313
      %p320 = scmp.eq.s32.totalorder %s36, 1
      %p321 = por %p319, %p320
      %p322 = scmp.ne.s32.totalorder %s313, %s314
      %p323 = scmp.eq.s32.totalorder %s36, 0
      %p324 = por %p322, %p323
      %p325 = scmp.ne.s32.totalorder %s313, %s314
      %p326 = scmp.eq.s32.totalorder %s37, 1
      %p327 = por %p325, %p326
      %p329 = scmp.ne.s32.totalorder %s314, %s328
      %p330 = scmp.eq.s32.totalorder %s37, 0
      %p331 = por %p329, %p330
      %s333 = sadd.s32 %s332, 1
      %p336 = scmp.eq.s32.totalorder %s31, 1
      %p337 = scmp.ne.s32.totalorder %s332, %s334
      %p338 = scmp.eq.s32.totalorder %s31, 0
      %p339 = por %p337, %p338
      %p340 = scmp.ne.s32.totalorder %s332, %s334
      %p341 = scmp.eq.s32.totalorder %s36, 1
      %p342 = por %p340, %p341
      %p343 = scmp.ne.s32.totalorder %s334, %s335
      %p344 = scmp.eq.s32.totalorder %s36, 0
      %p345 = por %p343, %p344
      %p346 = scmp.ne.s32.totalorder %s334, %s335
      %p347 = scmp.eq.s32.totalorder %s37, 1
      %p348 = por %p346, %p347
      %p350 = scmp.ne.s32.totalorder %s335, %s349
      %p351 = scmp.eq.s32.totalorder %s37, 0
      %p352 = por %p350, %p351
      %s354 = sadd.s32 %s353, 1
      %p357 = scmp.eq.s32.totalorder %s31, 1
      %p358 = scmp.ne.s32.totalorder %s353, %s355
      %p359 = scmp.eq.s32.totalorder %s31, 0
      %p360 = por %p358, %p359
      %p361 = scmp.ne.s32.totalorder %s353, %s355
      %p362 = scmp.eq.s32.totalorder %s36, 1
      %p363 = por %p361, %p362
      %p364 = scmp.ne.s32.totalorder %s355, %s356
      %p365 = scmp.eq.s32.totalorder %s36, 0
      %p366 = por %p364, %p365
      %p367 = scmp.ne.s32.totalorder %s355, %s356
      %p368 = scmp.eq.s32.totalorder %s37, 1
      %p369 = por %p367, %p368
      %p371 = scmp.ne.s32.totalorder %s356, %s370
      %p372 = scmp.eq.s32.totalorder %s37, 0
      %p373 = por %p371, %p372
      %s375 = sadd.s32 %s374, 1
      %p378 = scmp.eq.s32.totalorder %s31, 1
      %p379 = scmp.ne.s32.totalorder %s374, %s376
      %p380 = scmp.eq.s32.totalorder %s31, 0
      %p381 = por %p379, %p380
      %p382 = scmp.ne.s32.totalorder %s374, %s376
      %p383 = scmp.eq.s32.totalorder %s36, 1
      %p384 = por %p382, %p383
      %p385 = scmp.ne.s32.totalorder %s376, %s377
      %p386 = scmp.eq.s32.totalorder %s36, 0
      %p387 = por %p385, %p386
      %p388 = scmp.ne.s32.totalorder %s376, %s377
      %p389 = scmp.eq.s32.totalorder %s37, 1
      %p390 = por %p388, %p389
      %p392 = scmp.ne.s32.totalorder %s377, %s391
      %p393 = scmp.eq.s32.totalorder %s37, 0
      %p394 = por %p392, %p393
      %s396 = sadd.s32 %s395, 1
      %p399 = scmp.eq.s32.totalorder %s31, 1
      %p400 = scmp.ne.s32.totalorder %s395, %s397
      %p401 = scmp.eq.s32.totalorder %s31, 0
      %p402 = por %p400, %p401
      %p403 = scmp.ne.s32.totalorder %s395, %s397
      %p404 = scmp.eq.s32.totalorder %s36, 1
      %p405 = por %p403, %p404
      %p406 = scmp.ne.s32.totalorder %s397, %s398
      %p407 = scmp.eq.s32.totalorder %s36, 0
      %p408 = por %p406, %p407
      %p409 = scmp.ne.s32.totalorder %s397, %s398
      %p410 = scmp.eq.s32.totalorder %s37, 1
      %p411 = por %p409, %p410
      %p413 = scmp.ne.s32.totalorder %s398, %s412
      %p414 = scmp.eq.s32.totalorder %s37, 0
      %p415 = por %p413, %p414
      %s417 = sadd.s32 %s416, 1
      %p420 = scmp.eq.s32.totalorder %s31, 1
      %p421 = scmp.ne.s32.totalorder %s416, %s418
      %p422 = scmp.eq.s32.totalorder %s31, 0
      %p423 = por %p421, %p422
      %p424 = scmp.ne.s32.totalorder %s416, %s418
      %p425 = scmp.eq.s32.totalorder %s36, 1
      %p426 = por %p424, %p425
      %p427 = scmp.ne.s32.totalorder %s418, %s419
      %p428 = scmp.eq.s32.totalorder %s36, 0
      %p429 = por %p427, %p428
      %p430 = scmp.ne.s32.totalorder %s418, %s419
      %p431 = scmp.eq.s32.totalorder %s37, 1
      %p432 = por %p430, %p431
      %p434 = scmp.ne.s32.totalorder %s419, %s433
      %p435 = scmp.eq.s32.totalorder %s37, 0
      %p436 = por %p434, %p435
      %s438 = sadd.s32 %s437, 1
      %p441 = scmp.eq.s32.totalorder %s31, 1
      %p442 = scmp.ne.s32.totalorder %s437, %s439
      %p443 = scmp.eq.s32.totalorder %s31, 0
      %p444 = por %p442, %p443
      %p445 = scmp.ne.s32.totalorder %s437, %s439
      %p446 = scmp.eq.s32.totalorder %s36, 1
      %p447 = por %p445, %p446
      %p448 = scmp.ne.s32.totalorder %s439, %s440
      %p449 = scmp.eq.s32.totalorder %s36, 0
      %p450 = por %p448, %p449
      %p451 = scmp.ne.s32.totalorder %s439, %s440
      %p452 = scmp.eq.s32.totalorder %s37, 1
      %p453 = por %p451, %p452
      %p455 = scmp.ne.s32.totalorder %s440, %s454
      %p456 = scmp.eq.s32.totalorder %s37, 0
      %p457 = por %p455, %p456
      %s459 = sadd.s32 %s458, 1
      %p462 = scmp.eq.s32.totalorder %s31, 1
      %p463 = scmp.ne.s32.totalorder %s458, %s460
      %p464 = scmp.eq.s32.totalorder %s31, 0
      %p465 = por %p463, %p464
      %p466 = scmp.ne.s32.totalorder %s458, %s460
      %p467 = scmp.eq.s32.totalorder %s36, 1
      %p468 = por %p466, %p467
      %p469 = scmp.ne.s32.totalorder %s460, %s461
      %p470 = scmp.eq.s32.totalorder %s36, 0
      %p471 = por %p469, %p470
      %p472 = scmp.ne.s32.totalorder %s460, %s461
      %p473 = scmp.eq.s32.totalorder %s37, 1
      %p474 = por %p472, %p473
      %p476 = scmp.ne.s32.totalorder %s461, %s475
      %p477 = scmp.eq.s32.totalorder %s37, 0
      %p478 = por %p476, %p477
      %s479 = ssub.s32 %s31, %s38
      %p480 = scmp.eq.s32.totalorder %s479, 0
      %s482 = sadd.s32 %s481, 1
      %s483 = scalar_select %p480, %s481, %s482
      %p486 = pneg %p480
      %p487 = scmp.eq.s32.totalorder %s31, 1
      %p488 = por %p486, %p487
      %p489 = scmp.ne.s32.totalorder %s481, %s484
      %p490 = scmp.eq.s32.totalorder %s31, 0
      %p491 = por %p489, %p490
      %p492 = scmp.ne.s32.totalorder %s481, %s484
      %p493 = scmp.eq.s32.totalorder %s36, 1
      %p494 = por %p492, %p493
      %p495 = scmp.ne.s32.totalorder %s484, %s485
      %p496 = scmp.eq.s32.totalorder %s36, 0
      %p497 = por %p495, %p496
      %p498 = scmp.ne.s32.totalorder %s484, %s485
      %p499 = scmp.eq.s32.totalorder %s37, 1
      %p500 = por %p498, %p499
      %p502 = scmp.ne.s32.totalorder %s485, %s501
      %p503 = scmp.eq.s32.totalorder %s37, 0
      %p504 = por %p502, %p503
      %s505 = ssub.s32 %s31, %s38
      %p506 = scmp.eq.s32.totalorder %s505, 0
      %s508 = sadd.s32 %s507, 1
      %s509 = scalar_select %p506, %s507, %s508
      %p512 = pneg %p506
      %p513 = scmp.eq.s32.totalorder %s31, 1
      %p514 = por %p512, %p513
      %p515 = scmp.ne.s32.totalorder %s507, %s510
      %p516 = scmp.eq.s32.totalorder %s31, 0
      %p517 = por %p515, %p516
      %p518 = scmp.ne.s32.totalorder %s507, %s510
      %p519 = scmp.eq.s32.totalorder %s36, 1
      %p520 = por %p518, %p519
      %p521 = scmp.ne.s32.totalorder %s510, %s511
      %p522 = scmp.eq.s32.totalorder %s36, 0
      %p523 = por %p521, %p522
      %p524 = scmp.ne.s32.totalorder %s510, %s511
      %p525 = scmp.eq.s32.totalorder %s37, 1
      %p526 = por %p524, %p525
      %p528 = scmp.ne.s32.totalorder %s511, %s527
      %p529 = scmp.eq.s32.totalorder %s37, 0
      %p530 = por %p528, %p529
      %p531 = scmp.le.s32.totalorder 1, %s31
      %p532 = scmp.lt.s32.totalorder %s31, 3
      %p533 = pnand %p531, %p532
      %p534 = pneg %p533
      // Predicated region
      $region9: #{unimol_forward.3} parent=5 // pred_check
        _
      $region10: #{unimol_forward.3} parent=5 // pred_check_branch
        %536 = sbr.rel (%p533) target = $region12
      $region11: #{unimol_forward.3} parent=5 // pred_region
        %s537 = ssub.s32 %s31, 1
        // Predicated region
        $region13: #{unimol_forward.3} parent=11 // pred_check
          %p538 = pneg %p156
        $region14: #{unimol_forward.3} parent=11 // pred_check_branch
          %540 = sbr.rel (%p538) target = $region16
        $region15: #{unimol_forward.3} parent=11 // pred_region
          _
        $region16: #{unimol_forward.3} parent=11 // pred_fallthru
          _
        // Predicated region
        $region17: #{unimol_forward.3} parent=11 // pred_check
          %p541 = pneg %p177
        $region18: #{unimol_forward.3} parent=11 // pred_check_branch
          %543 = sbr.rel (%p541) target = $region20
        $region19: #{unimol_forward.3} parent=11 // pred_region
          _
        $region20: #{unimol_forward.3} parent=11 // pred_fallthru
          _
        // Predicated region
        $region21: #{unimol_forward.3} parent=11 // pred_check
          %p544 = pneg %p198
        $region22: #{unimol_forward.3} parent=11 // pred_check_branch
          %546 = sbr.rel (%p544) target = $region24
        $region23: #{unimol_forward.3} parent=11 // pred_region
          _
        $region24: #{unimol_forward.3} parent=11 // pred_fallthru
          _
        // Predicated region
        $region25: #{unimol_forward.3} parent=11 // pred_check
          %p547 = pneg %p219
        $region26: #{unimol_forward.3} parent=11 // pred_check_branch
          %549 = sbr.rel (%p547) target = $region28
        $region27: #{unimol_forward.3} parent=11 // pred_region
          _
        $region28: #{unimol_forward.3} parent=11 // pred_fallthru
          _
        // Predicated region
        $region29: #{unimol_forward.3} parent=11 // pred_check
          %p550 = pneg %p240
        $region30: #{unimol_forward.3} parent=11 // pred_check_branch
          %552 = sbr.rel (%p550) target = $region32
        $region31: #{unimol_forward.3} parent=11 // pred_region
          _
        $region32: #{unimol_forward.3} parent=11 // pred_fallthru
          _
        // Predicated region
        $region33: #{unimol_forward.3} parent=11 // pred_check
          %p553 = pneg %p261
        $region34: #{unimol_forward.3} parent=11 // pred_check_branch
          %555 = sbr.rel (%p553) target = $region36
        $region35: #{unimol_forward.3} parent=11 // pred_region
          _
        $region36: #{unimol_forward.3} parent=11 // pred_fallthru
          _
        // Predicated region
        $region37: #{unimol_forward.3} parent=11 // pred_check
          %p556 = pneg %p282
        $region38: #{unimol_forward.3} parent=11 // pred_check_branch
          %558 = sbr.rel (%p556) target = $region40
        $region39: #{unimol_forward.3} parent=11 // pred_region
          _
        $region40: #{unimol_forward.3} parent=11 // pred_fallthru
          _
        // Predicated region
        $region41: #{unimol_forward.3} parent=11 // pred_check
          %p559 = pneg %p303
        $region42: #{unimol_forward.3} parent=11 // pred_check_branch
          %561 = sbr.rel (%p559) target = $region44
        $region43: #{unimol_forward.3} parent=11 // pred_region
          _
        $region44: #{unimol_forward.3} parent=11 // pred_fallthru
          _
        // Predicated region
        $region45: #{unimol_forward.3} parent=11 // pred_check
          %p562 = pneg %p324
        $region46: #{unimol_forward.3} parent=11 // pred_check_branch
          %564 = sbr.rel (%p562) target = $region48
        $region47: #{unimol_forward.3} parent=11 // pred_region
          _
        $region48: #{unimol_forward.3} parent=11 // pred_fallthru
          _
        // Predicated region
        $region49: #{unimol_forward.3} parent=11 // pred_check
          %p565 = pneg %p345
        $region50: #{unimol_forward.3} parent=11 // pred_check_branch
          %567 = sbr.rel (%p565) target = $region52
        $region51: #{unimol_forward.3} parent=11 // pred_region
          _
        $region52: #{unimol_forward.3} parent=11 // pred_fallthru
          _
        // Predicated region
        $region53: #{unimol_forward.3} parent=11 // pred_check
          %p568 = pneg %p366
        $region54: #{unimol_forward.3} parent=11 // pred_check_branch
          %570 = sbr.rel (%p568) target = $region56
        $region55: #{unimol_forward.3} parent=11 // pred_region
          _
        $region56: #{unimol_forward.3} parent=11 // pred_fallthru
          _
        // Predicated region
        $region57: #{unimol_forward.3} parent=11 // pred_check
          %p571 = pneg %p387
        $region58: #{unimol_forward.3} parent=11 // pred_check_branch
          %573 = sbr.rel (%p571) target = $region60
        $region59: #{unimol_forward.3} parent=11 // pred_region
          _
        $region60: #{unimol_forward.3} parent=11 // pred_fallthru
          _
        // Predicated region
        $region61: #{unimol_forward.3} parent=11 // pred_check
          %p574 = pneg %p408
        $region62: #{unimol_forward.3} parent=11 // pred_check_branch
          %576 = sbr.rel (%p574) target = $region64
        $region63: #{unimol_forward.3} parent=11 // pred_region
          _
        $region64: #{unimol_forward.3} parent=11 // pred_fallthru
          _
        // Predicated region
        $region65: #{unimol_forward.3} parent=11 // pred_check
          %p577 = pneg %p429
        $region66: #{unimol_forward.3} parent=11 // pred_check_branch
          %579 = sbr.rel (%p577) target = $region68
        $region67: #{unimol_forward.3} parent=11 // pred_region
          _
        $region68: #{unimol_forward.3} parent=11 // pred_fallthru
          _
        // Predicated region
        $region69: #{unimol_forward.3} parent=11 // pred_check
          %p580 = pneg %p450
        $region70: #{unimol_forward.3} parent=11 // pred_check_branch
          %582 = sbr.rel (%p580) target = $region72
        $region71: #{unimol_forward.3} parent=11 // pred_region
          _
        $region72: #{unimol_forward.3} parent=11 // pred_fallthru
          _
        // Predicated region
        $region73: #{unimol_forward.3} parent=11 // pred_check
          %p583 = pneg %p471
        $region74: #{unimol_forward.3} parent=11 // pred_check_branch
          %585 = sbr.rel (%p583) target = $region76
        $region75: #{unimol_forward.3} parent=11 // pred_region
          _
        $region76: #{unimol_forward.3} parent=11 // pred_fallthru
          _
      $region12: #{unimol_forward.3} parent=5 // pred_fallthru
        _
      %p586 = scmp.lt.s32.totalorder %s31, 2
      // Predicated region
      $region77: #{unimol_forward.3} parent=5 // pred_check
        %p587 = pneg %p586
      $region78: #{unimol_forward.3} parent=5 // pred_check_branch
        %589 = sbr.rel (%p587) target = $region80
      $region79: #{unimol_forward.3} parent=5 // pred_region
        // Predicated region
        $region81: #{unimol_forward.3} parent=79 // pred_check
          %p590 = pneg %p51
        $region82: #{unimol_forward.3} parent=79 // pred_check_branch
          %592 = sbr.rel (%p590) target = $region84
        $region83: #{unimol_forward.3} parent=79 // pred_region
          %p593 = scmp.lt.s32.totalorder %s31, 1
          %s594 = scalar_select %p593, %s31, 1
          %s595 = smul.addr %s594, 8
          %s596 = scalar_lea.vmem %s0, %s595
        $region84: #{unimol_forward.3} parent=79 // pred_fallthru
          _
        // Predicated region
        $region85: #{unimol_forward.3} parent=79 // pred_check
          %p597 = pneg %p77
        $region86: #{unimol_forward.3} parent=79 // pred_check_branch
          %599 = sbr.rel (%p597) target = $region88
        $region87: #{unimol_forward.3} parent=79 // pred_region
          %s600 = sand.u32 %s67, 1
          %s601 = sand.u32 %s67, 1
          %s602 = smul.addr %s601, 32
          %s603 = scalar_lea.vmem [#allocation2], %s602
          %s604 = smul.addr %s31, 8
          %s605 = scalar_lea.vmem %s1, %s604
          // Predicated region
          $region89: #{unimol_forward.3} parent=87 // pred_check
            _
          $region90: #{unimol_forward.3} parent=87 // pred_check_branch
            %607 = sbr.rel (0) target = $region92
          $region91: #{unimol_forward.3} parent=87 // pred_region
            // Predicated region
            $region93: #{unimol_forward.3} parent=91 // pred_check
              _
            $region94: #{unimol_forward.3} parent=91 // pred_check_branch
              %609 = sbr.rel (0) target = $region96
            $region95: #{unimol_forward.3} parent=91 // pred_region
              // Predicated region
              $region108: #{unimol_forward.3} parent=95 // pred_check
                _
              $region109: #{unimol_forward.3} parent=95 // pred_check_branch
                %630 = sbr.rel (0) target = $region111
              $region110: #{unimol_forward.3} parent=95 // pred_region
                loop: start=0, step=1, limit=1
                $region112: #{unimol_forward.3} parent=110 // loop_pre_header
                  _
                $region113: #{unimol_forward.3} parent=110 // loop_header
                  %s632 = sphi 0, %s636
                  %p633 = scmp.ge.s32.totalorder %s632, 1
                  %s637 = sphi %s605, %s605
                  %s638 = sphi %s603, %s603
                $region114: #{unimol_forward.3} parent=110 // loop_header_branch
                  %635 = sbr.rel (%p633) target = $region118
                $region115: #{unimol_forward.3} parent=110 // loop_body
                  %v639 = vld [vmem:[%s637] sm:$0xff]
                  %640 = vst [vmem:[%s638] sm:$0xff] %v639
                  %v641 = vld [vmem:[%s637 + $0x10] sm:$0xff]
                  %642 = vst [vmem:[%s638 + $0x8] sm:$0xff] %v641
                  %v643 = vld [vmem:[%s637 + $0x20] sm:$0xff]
                  %644 = vst [vmem:[%s638 + $0x10] sm:$0xff] %v643
                  %v645 = vld [vmem:[%s637 + $0x30] sm:$0xff]
                  %646 = vst [vmem:[%s638 + $0x18] sm:$0xff] %v645
                $region116: #{unimol_forward.3} parent=110 // loop_footer
                  %s636 = sadd.s32 1, %s632
                $region117: #{unimol_forward.3} parent=110 // loop_footer_branch
                  %631 = sbr.rel target = $region113
                $region118: #{unimol_forward.3} parent=110 // loop_exit
                  _
              $region111: #{unimol_forward.3} parent=95 // pred_fallthru
                _
              // Predicated region
              $region119: #{unimol_forward.3} parent=95 // pred_check
                _
              $region120: #{unimol_forward.3} parent=95 // pred_check_branch
                %648 = sbr.rel target = $region122
              $region121: #{unimol_forward.3} parent=95 // pred_region
                _
              $region122: #{unimol_forward.3} parent=95 // pred_fallthru
                _
            $region96: #{unimol_forward.3} parent=91 // pred_fallthru
              _
            // Predicated region
            $region97: #{unimol_forward.3} parent=91 // pred_check
              _
            $region98: #{unimol_forward.3} parent=91 // pred_check_branch
              %611 = sbr.rel target = $region100
            $region99: #{unimol_forward.3} parent=91 // pred_region
              loop: start=0, step=1, limit=1
              $region101: #{unimol_forward.3} parent=99 // loop_pre_header
                _
              $region102: #{unimol_forward.3} parent=99 // loop_header
                %s614 = sphi 0, %s618
                %p615 = scmp.ge.s32.totalorder %s614, 1
                %s619 = sphi %s605, %s605
                %s620 = sphi %s603, %s603
              $region103: #{unimol_forward.3} parent=99 // loop_header_branch
                %617 = sbr.rel (%p615) target = $region107
              $region104: #{unimol_forward.3} parent=99 // loop_body
                %v621 = vld [vmem:[%s619] sm:$0xff]
                %622 = vst [vmem:[%s620] sm:$0xff] %v621
                %v623 = vld [vmem:[%s619 + $0x10] sm:$0xff]
                %624 = vst [vmem:[%s620 + $0x8] sm:$0xff] %v623
                %v625 = vld [vmem:[%s619 + $0x20] sm:$0xff]
                %626 = vst [vmem:[%s620 + $0x10] sm:$0xff] %v625
                %v627 = vld [vmem:[%s619 + $0x30] sm:$0xff]
                %628 = vst [vmem:[%s620 + $0x18] sm:$0xff] %v627
              $region105: #{unimol_forward.3} parent=99 // loop_footer
                %s618 = sadd.s32 1, %s614
              $region106: #{unimol_forward.3} parent=99 // loop_footer_branch
                %613 = sbr.rel target = $region102
              $region107: #{unimol_forward.3} parent=99 // loop_exit
                _
            $region100: #{unimol_forward.3} parent=91 // pred_fallthru
              _
          $region92: #{unimol_forward.3} parent=87 // pred_fallthru
            _
          %649 = vnop
        $region88: #{unimol_forward.3} parent=79 // pred_fallthru
          _
        // Predicated region
        $region123: #{unimol_forward.3} parent=79 // pred_check
          %p650 = pneg %p103
        $region124: #{unimol_forward.3} parent=79 // pred_check_branch
          %652 = sbr.rel (%p650) target = $region126
        $region125: #{unimol_forward.3} parent=79 // pred_region
          %p653 = scmp.lt.s32.totalorder %s31, 1
          %s654 = scalar_select %p653, %s31, 1
          %s655 = smul.addr %s654, 8
          %s656 = scalar_lea.vmem %s2, %s655
        $region126: #{unimol_forward.3} parent=79 // pred_fallthru
          _
        // Predicated region
        $region127: #{unimol_forward.3} parent=79 // pred_check
          %p657 = pneg %p129
        $region128: #{unimol_forward.3} parent=79 // pred_check_branch
          %659 = sbr.rel (%p657) target = $region130
        $region129: #{unimol_forward.3} parent=79 // pred_region
          %p660 = scmp.lt.s32.totalorder %s31, 1
          %s661 = scalar_select %p660, %s31, 1
          %s662 = scalar_lea.vmem %s3, %s661
        $region130: #{unimol_forward.3} parent=79 // pred_fallthru
          _
      $region80: #{unimol_forward.3} parent=5 // pred_fallthru
        _
      %p663 = scmp.le.s32.totalorder 1, %s31
      %p664 = scmp.lt.s32.totalorder %s31, 3
      %p665 = pnand %p663, %p664
      %p666 = pneg %p665
      // Predicated region
      $region131: #{unimol_forward.3} parent=5 // pred_check
        _
      $region132: #{unimol_forward.3} parent=5 // pred_check_branch
        %668 = sbr.rel (%p665) target = $region134
      $region133: #{unimol_forward.3} parent=5 // pred_region
        %s669 = ssub.s32 %s31, 1
        %s670 = sand.u32 %s70, 1
        %s671 = sand.u32 %s70, 1
        %s672 = smul.addr %s671, 32
        %s673 = scalar_lea.vmem [#allocation2], %s672
        // Predicated region
        $region135: #{unimol_forward.3} parent=133 // pred_check
          %p674 = pneg %p83
        $region136: #{unimol_forward.3} parent=133 // pred_check_branch
          %676 = sbr.rel (%p674) target = $region138
        $region137: #{unimol_forward.3} parent=133 // pred_region
          _
        $region138: #{unimol_forward.3} parent=133 // pred_fallthru
          _
        %p677 = scmp.lt.s32.totalorder %s36, 1
        %s678 = scalar_select %p677, %s36, 1
        %s679 = smul.addr %s678, 8
        %s680 = scalar_lea.vmem %s0, %s679
        %p681 = pneg %p57
        %p682 = pneg %p54
        %s683 = sand.u32 %s70, 1
        %s684 = sand.u32 %s70, 1
        %s685 = smul.addr %s684, 32
        %s686 = scalar_lea.vmem [#allocation2], %s685
        %p687 = pneg %p83
        %p688 = pneg %p80
        %p689 = scmp.lt.s32.totalorder %s36, 1
        %s690 = scalar_select %p689, %s36, 1
        %s691 = smul.addr %s690, 8
        %s692 = scalar_lea.vmem %s2, %s691
        %p693 = pneg %p109
        %p694 = pneg %p106
        %p695 = scmp.lt.s32.totalorder %s36, 1
        %s696 = scalar_select %p695, %s36, 1
        %s697 = scalar_lea.vmem %s3, %s696
        %p698 = pneg %p135
        %p699 = pneg %p132
        %p700 = pneg %p156
        %p701 = pneg %p153
        %p702 = pneg %p177
        %p703 = pneg %p174
        %p704 = pneg %p198
        %p705 = pneg %p195
        %p706 = pneg %p219
        %p707 = pneg %p216
        %p708 = pneg %p240
        %p709 = pneg %p237
        %p710 = pneg %p261
        %p711 = pneg %p258
        %p712 = pneg %p282
        %p713 = pneg %p279
        %p714 = pneg %p303
        %p715 = pneg %p300
        %p716 = pneg %p324
        %p717 = pneg %p321
        %p718 = pneg %p345
        %p719 = pneg %p342
        %p720 = pneg %p366
        %p721 = pneg %p363
        %p722 = pneg %p387
        %p723 = pneg %p384
        %p724 = pneg %p408
        %p725 = pneg %p405
        %p726 = pneg %p429
        %p727 = pneg %p426
        %p728 = pneg %p450
        %p729 = pneg %p447
        %p730 = pneg %p471
        %p731 = pneg %p468
        %p732 = pneg %p497
        %p733 = pneg %p494
        %s734 = sand.u32 %s484, 1
        %s735 = scalar_lea.sflag [#allocation4], %s734
        %s736 = sand.u32 %s484, 1
        %s737 = smul.addr %s736, 8
        %s738 = scalar_lea.vmem [#allocation3], %s737
        %p739 = pneg %p523
        %p740 = pneg %p520
        %p741 = scmp.lt.s32.totalorder %s36, 1
        %s742 = scalar_select %p741, %s36, 1
        %s743 = smul.addr %s742, 4
        %s744 = smul.addr %s743, 8
        %s745 = scalar_lea.vmem %s21, %s744
        %p746 = scmp.lt.s32.totalorder %s36, 1
        %s747 = scalar_select %p746, %s36, 1
        %s748 = smul.addr %s747, 8
        %s749 = scalar_lea.vmem %s0, %s748
        %p750 = scmp.lt.s32.totalorder %s36, 1
        %s751 = scalar_select %p750, %s36, 1
        %s752 = smul.addr %s751, 8
        %s753 = scalar_lea.vmem %s2, %s752
        %p754 = scmp.lt.s32.totalorder %s36, 1
        %s755 = scalar_select %p754, %s36, 1
        %s756 = scalar_lea.vmem %s3, %s755
        %p757 = scmp.lt.s32.totalorder %s36, 1
        %s758 = scalar_select %p757, %s36, 1
        %s759 = smul.addr %s758, 4
        %s760 = smul.addr %s759, 8
        %s761 = scalar_lea.vmem %s21, %s760
        %v762 = vld [vmem:[%s749] sm:$0xff]
        %v763 = vld [vmem:[%s4] sm:$0x1]
        %v764 = vld [vmem:[%s5] sm:$0x1]
        %vm765 = vcmask 261120
        %v766 = vsel %vm765, %v762, 0.0
        %767 = vadd.xlane.f32.xlu0 %v766
        %v768 = vpop.xlane.xlu0 %767
        %v769 = vrcp.pop 32.0
        %v770 = vmul.f32 %v768, %v769
        %v771 = vsub.f32 %v762, %v770
        %v772 = vmul.f32 %v771, %v771
        %v773 = vsel %vm765, %v772, 0.0
        %774 = vadd.xlane.f32.xlu0 %v773
        %v775 = vpop.xlane.xlu0 %774
        %v776 = vmul.f32 %v775, %v769
        %v777 = vadd.f32 %v776, 1e-05
        %v778 = vrsqrt.pop %v777
        %v779 = vmul.f32 %v771, %v778
        %v781 = vlaneseq
        %v782 = vshrl.u32 %v781, 7
        %v783 = vsub.s32 0, %v782
        %v784 = vrot.slane %v763, %v783
        %v786 = vmul.f32 %v779, %v784
        %v788 = vlaneseq
        %v789 = vshrl.u32 %v788, 7
        %v790 = vsub.s32 0, %v789
        %v791 = vrot.slane %v764, %v790
        %v793 = vadd.f32 %v786, %v791
        %v794 = vld [vmem:[%s753] sm:$0xff]
        %796 = vset.pattern.permute.xlu0 0
        %797 = vperm.xlu0 %796, %v794
        %v798 = vpop.permute.xlu0 %797
        %v800 = vmul.f32 %v793, %v798
        %v801 = vld [vmem:[%s756] sm:$0x1]
        %vm802 = vcmp.gt.f32.partialorder %v801, 0.5
        %v803 = vld [vmem:[%s673] sm:$0xff]
        %v804 = vsel %vm802, 1, 0
        %v805 = vlaneseq
        %v806 = vshrl.u32 %v805, 7
        %v807 = vsub.s32 0, %v806
        %v808 = vrot.slane %v804, %v807
        %vm809 = vcmp.eq.s32.totalorder %v808, 1
        %v810 = vsel %vm809, %v803, -inf
        %s811 = scalar_lea.vmem %s673, 8 [#allocation2]
        %v812 = vld [vmem:[%s811] sm:$0xff]
        %v813 = vsel %vm809, %v812, -inf
        %s814 = scalar_lea.vmem %s673, 16 [#allocation2]
        %v815 = vld [vmem:[%s814] sm:$0xff]
        %v816 = vsel %vm809, %v815, -inf
        %s817 = scalar_lea.vmem %s673, 24 [#allocation2]
        %v818 = vld [vmem:[%s817] sm:$0xff]
        %v819 = vsel %vm809, %v818, -inf
        %v820 = vld [vmem:[%s6] sm:$0x1]
        %v821 = vld [vmem:[%s7] sm:$0x1]
        %v822 = vsel %vm765, %v800, 0.0
        %823 = vadd.xlane.f32.xlu0 %v822
        %v824 = vpop.xlane.xlu0 %823
        %v825 = vmul.f32 %v824, %v769
        %v826 = vsub.f32 %v800, %v825
        %v827 = vmul.f32 %v826, %v826
        %v828 = vsel %vm765, %v827, 0.0
        %829 = vadd.xlane.f32.xlu0 %v828
        %v830 = vpop.xlane.xlu0 %829
        %v831 = vmul.f32 %v830, %v769
        %v832 = vadd.f32 %v831, 1e-05
        %v833 = vrsqrt.pop %v832
        %v834 = vmul.f32 %v826, %v833
        %v836 = vlaneseq
        %v837 = vshrl.u32 %v836, 7
        %v838 = vsub.s32 0, %v837
        %v839 = vrot.slane %v820, %v838
        %v841 = vmul.f32 %v834, %v839
        %v843 = vlaneseq
        %v844 = vshrl.u32 %v843, 7
        %v845 = vsub.s32 0, %v844
        %v846 = vrot.slane %v821, %v845
        %v848 = vadd.f32 %v841, %v846
        %v849 = vld [vmem:[%s8] sm:$0xff]
        %v850 = vld [vmem:[%s8 + $0x8] sm:$0xff]
        %v851 = vld [vmem:[%s8 + $0x10] sm:$0xff]
        %v852 = vld [vmem:[%s8 + $0x18] sm:$0xff]
        %v853 = vld [vmem:[%s9] sm:$0x1]
        %v855 = vlaneseq
        %v856 = vshrl.u32 %v855, 7
        %v857 = vsub.s32 0, %v856
        %v858 = vrot.slane %v853, %v857
        %v861 = vsel %vm765, %v848, 0
        %863 = vmatprep.subr.mxu0 0.0
        %864 = vmatpush1.msra.mxu0 %v849
        %865 = vmatprep.subr.mxu0 0.0
        %866 = vmatpush1.msra.mxu0 %v850
        %867 = vmatprep.subr.mxu0 0.0
        %868 = vmatpush1.msra.mxu0 %v851
        %869 = vmatprep.subr.mxu0 0.0
        %870 = vmatpush1.msra.mxu0 %v852
        %871 = vmatprep.subr.mxu0 0.0
        %872 = vmatpush1.msra.mxu0 0.0
        %873 = vmatprep.subr.mxu0 0.0
        %874 = vmatpush1.msra.mxu0 0.0
        %875 = vmatprep.subr.mxu0 0.0
        %876 = vmatpush1.msra.mxu0 0.0
        %877 = vmatprep.subr.mxu0 0.0
        %878 = vmatpush1.msra.mxu0 0.0
        %879 = vmatprep.subr.mxu0 0.0
        %880 = vmatpush1.msra.mxu0 0.0
        %881 = vmatprep.subr.mxu0 0.0
        %882 = vmatpush1.msra.mxu0 0.0
        %883 = vmatprep.subr.mxu0 0.0
        %884 = vmatpush1.msra.mxu0 0.0
        %885 = vmatprep.subr.mxu0 0.0
        %886 = vmatpush1.msra.mxu0 0.0
        %887 = vmatprep.subr.mxu0 0.0
        %888 = vmatpush1.msra.mxu0 0.0
        %889 = vmatprep.subr.mxu0 0.0
        %890 = vmatpush1.msra.mxu0 0.0
        %891 = vmatprep.subr.mxu0 0.0
        %892 = vmatpush1.msra.mxu0 0.0
        %893 = vmatprep.subr.mxu0 0.0
        %894 = vmatpush1.msra.mxu0 0.0
        %895 = vmatprep.subr.mxu0 0.0
        %896 = vmatpush1.msra.mxu0 0.0
        %897 = vmatprep.subr.mxu0 0.0
        %898 = vmatpush1.msra.mxu0 0.0
        %899 = vmatprep.subr.mxu0 0.0
        %900 = vmatpush1.msra.mxu0 0.0
        %901 = vmatprep.subr.mxu0 0.0
        %902 = vmatpush1.msra.mxu0 0.0
        %903 = vmatprep.subr.mxu0 0.0
        %904 = vmatpush1.msra.mxu0 0.0
        %905 = vmatprep.subr.mxu0 0.0
        %906 = vmatpush1.msra.mxu0 0.0
        %907 = vmatprep.subr.mxu0 0.0
        %908 = vmatpush1.msra.mxu0 0.0
        %909 = vmatprep.subr.mxu0 0.0
        %910 = vmatpush1.msra.mxu0 0.0
        %911 = vmatprep.subr.mxu0 0.0
        %912 = vmatpush1.msra.mxu0 0.0
        %913 = vmatprep.subr.mxu0 0.0
        %914 = vmatpush1.msra.mxu0 0.0
        %915 = vmatprep.subr.mxu0 0.0
        %916 = vmatpush1.msra.mxu0 0.0
        %917 = vmatprep.subr.mxu0 0.0
        %918 = vmatpush1.msra.mxu0 0.0
        %919 = vmatprep.subr.mxu0 0.0
        %920 = vmatpush1.msra.mxu0 0.0
        %921 = vmatprep.subr.mxu0 0.0
        %922 = vmatpush1.msra.mxu0 0.0
        %923 = vmatprep.subr.mxu0 0.0
        %924 = vmatpush1.msra.mxu0 0.0
        %925 = vmatprep.subr.mxu0 0.0
        %926 = vmatpush1.msra.mxu0 0.0
        %927 = vmatprep.mubr.f32.mxu0 0.0
        %928 = vmatmul.mubr.f32.gmra.mrb[0].mxu0 %v861
        %v929 = vpop.f32.mrb[0].mxu0
        %v930 = vadd.f32 %v858, %v929
        %v931 = vpop.f32.mrb[0].mxu0
        %932 = vdwg.mxu0
        %v933 = vmul.f32 %v930, 0.35355338
        %v934 = vld [vmem:[%s10] sm:$0xff]
        %v935 = vld [vmem:[%s10 + $0x8] sm:$0xff]
        %v936 = vld [vmem:[%s10 + $0x10] sm:$0xff]
        %v937 = vld [vmem:[%s10 + $0x18] sm:$0xff]
        %v938 = vld [vmem:[%s11] sm:$0x1]
        %940 = vrot.lane.b32.xlu0 %v930, 96
        %v941 = vpop.permute.xlu0 %940
        %vm942 = vcmask 64512
        %v944 = vsel %vm942, %v933, 0
        %v946 = vsel %vm942, %v941, 0
        %948 = vmatprep.subr.mxu0 0.0
        %949 = vmatpush1.xpose.msra.mxu0 %v946
        %950 = vmatprep.subr.mxu0 0.0
        %951 = vmatpush1.xpose.msra.mxu0 0.0
        %952 = vmatprep.subr.mxu0 0.0
        %953 = vmatpush1.xpose.msra.mxu0 0.0
        %954 = vmatprep.subr.mxu0 0.0
        %955 = vmatpush1.xpose.msra.mxu0 0.0
        %956 = vmatprep.subr.mxu0 0.0
        %957 = vmatpush1.xpose.msra.mxu0 0.0
        %958 = vmatprep.subr.mxu0 0.0
        %959 = vmatpush1.xpose.msra.mxu0 0.0
        %960 = vmatprep.subr.mxu0 0.0
        %961 = vmatpush1.xpose.msra.mxu0 0.0
        %962 = vmatprep.subr.mxu0 0.0
        %963 = vmatpush1.xpose.msra.mxu0 0.0
        %964 = vmatprep.subr.mxu0 0.0
        %965 = vmatpush1.xpose.msra.mxu0 0.0
        %966 = vmatprep.subr.mxu0 0.0
        %967 = vmatpush1.xpose.msra.mxu0 0.0
        %968 = vmatprep.subr.mxu0 0.0
        %969 = vmatpush1.xpose.msra.mxu0 0.0
        %970 = vmatprep.subr.mxu0 0.0
        %971 = vmatpush1.xpose.msra.mxu0 0.0
        %972 = vmatprep.subr.mxu0 0.0
        %973 = vmatpush1.xpose.msra.mxu0 0.0
        %974 = vmatprep.subr.mxu0 0.0
        %975 = vmatpush1.xpose.msra.mxu0 0.0
        %976 = vmatprep.subr.mxu0 0.0
        %977 = vmatpush1.xpose.msra.mxu0 0.0
        %978 = vmatprep.subr.mxu0 0.0
        %979 = vmatpush1.xpose.msra.mxu0 0.0
        %980 = vmatprep.subr.mxu0 0.0
        %981 = vmatpush1.xpose.msra.mxu0 0.0
        %982 = vmatprep.subr.mxu0 0.0
        %983 = vmatpush1.xpose.msra.mxu0 0.0
        %984 = vmatprep.subr.mxu0 0.0
        %985 = vmatpush1.xpose.msra.mxu0 0.0
        %986 = vmatprep.subr.mxu0 0.0
        %987 = vmatpush1.xpose.msra.mxu0 0.0
        %988 = vmatprep.subr.mxu0 0.0
        %989 = vmatpush1.xpose.msra.mxu0 0.0
        %990 = vmatprep.subr.mxu0 0.0
        %991 = vmatpush1.xpose.msra.mxu0 0.0
        %992 = vmatprep.subr.mxu0 0.0
        %993 = vmatpush1.xpose.msra.mxu0 0.0
        %994 = vmatprep.subr.mxu0 0.0
        %995 = vmatpush1.xpose.msra.mxu0 0.0
        %996 = vmatprep.subr.mxu0 0.0
        %997 = vmatpush1.xpose.msra.mxu0 0.0
        %998 = vmatprep.subr.mxu0 0.0
        %999 = vmatpush1.xpose.msra.mxu0 0.0
        %1000 = vmatprep.subr.mxu0 0.0
        %1001 = vmatpush1.xpose.msra.mxu0 0.0
        %1002 = vmatprep.subr.mxu0 0.0
        %1003 = vmatpush1.xpose.msra.mxu0 0.0
        %1004 = vmatprep.subr.mxu0 0.0
        %1005 = vmatpush1.xpose.msra.mxu0 0.0
        %1006 = vmatprep.subr.mxu0 0.0
        %1007 = vmatpush1.xpose.msra.mxu0 0.0
        %1008 = vmatprep.subr.mxu0 0.0
        %1009 = vmatpush1.xpose.msra.mxu0 0.0
        %1010 = vmatprep.subr.mxu0 0.0
        %1011 = vmatpush1.xpose.msra.mxu0 0.0
        %1012 = vmatprep.mubr.f32.mxu0 0.0
        %1013 = vmatmul.mubr.f32.gmra.mrb[0].mxu0 %v944
        %v1014 = vpop.f32.mrb[0].mxu0
        %v1015 = vadd.f32 %v810, %v1014
        %v1016 = vpop.f32.mrb[0].mxu0
        %1017 = vdwg.mxu0
        %v1018 = vsel %vm942, %v1015, -inf
        %1019 = vmax.xlane.f32.xlu0 %v1018
        %v1020 = vpop.xlane.xlu0 %1019
        %v1021 = vsub.f32 %v1015, %v1020
        %v1022 = vmul.f32 %v1021, 1.442695
        %v1023 = vpow.pop %v1022
        %v1024 = vsel %vm942, %v1023, 0.0
        %1025 = vadd.xlane.f32.xlu0 %v1024
        %v1026 = vpop.xlane.xlu0 %1025
        %v1027 = vrcp.pop %v1026
        %v1028 = vmul.f32 %v1023, %v1027
        %1029 = vrot.lane.b32.xlu0 %v930, 64
        %v1030 = vpop.permute.xlu0 %1029
        %v1033 = vsel %vm942, %v1028, 0
        %1035 = vmatprep.subr.mxu0 0.0
        %1036 = vmatpush1.msra.mxu0 %v1030
        %1037 = vmatprep.subr.mxu0 0.0
        %1038 = vmatpush1.msra.mxu0 0.0
        %1039 = vmatprep.subr.mxu0 0.0
        %1040 = vmatpush1.msra.mxu0 0.0
        %1041 = vmatprep.subr.mxu0 0.0
        %1042 = vmatpush1.msra.mxu0 0.0
        %1043 = vmatprep.subr.mxu0 0.0
        %1044 = vmatpush1.msra.mxu0 0.0
        %1045 = vmatprep.subr.mxu0 0.0
        %1046 = vmatpush1.msra.mxu0 0.0
        %1047 = vmatprep.subr.mxu0 0.0
        %1048 = vmatpush1.msra.mxu0 0.0
        %1049 = vmatprep.subr.mxu0 0.0
        %1050 = vmatpush1.msra.mxu0 0.0
        %1051 = vmatprep.subr.mxu0 0.0
        %1052 = vmatpush1.msra.mxu0 0.0
        %1053 = vmatprep.subr.mxu0 0.0
        %1054 = vmatpush1.msra.mxu0 0.0
        %1055 = vmatprep.subr.mxu0 0.0
        %1056 = vmatpush1.msra.mxu0 0.0
        %1057 = vmatprep.subr.mxu0 0.0
        %1058 = vmatpush1.msra.mxu0 0.0
        %1059 = vmatprep.subr.mxu0 0.0
        %1060 = vmatpush1.msra.mxu0 0.0
        %1061 = vmatprep.subr.mxu0 0.0
        %1062 = vmatpush1.msra.mxu0 0.0
        %1063 = vmatprep.subr.mxu0 0.0
        %1064 = vmatpush1.msra.mxu0 0.0
        %1065 = vmatprep.subr.mxu0 0.0
        %1066 = vmatpush1.msra.mxu0 0.0
        %1067 = vmatprep.subr.mxu0 0.0
        %1068 = vmatpush1.msra.mxu0 0.0
        %1069 = vmatprep.subr.mxu0 0.0
        %1070 = vmatpush1.msra.mxu0 0.0
        %1071 = vmatprep.subr.mxu0 0.0
        %1072 = vmatpush1.msra.mxu0 0.0
        %1073 = vmatprep.subr.mxu0 0.0
        %1074 = vmatpush1.msra.mxu0 0.0
        %1075 = vmatprep.subr.mxu0 0.0
        %1076 = vmatpush1.msra.mxu0 0.0
        %1077 = vmatprep.subr.mxu0 0.0
        %1078 = vmatpush1.msra.mxu0 0.0
        %1079 = vmatprep.subr.mxu0 0.0
        %1080 = vmatpush1.msra.mxu0 0.0
        %1081 = vmatprep.subr.mxu0 0.0
        %1082 = vmatpush1.msra.mxu0 0.0
        %1083 = vmatprep.subr.mxu0 0.0
        %1084 = vmatpush1.msra.mxu0 0.0
        %1085 = vmatprep.subr.mxu0 0.0
        %1086 = vmatpush1.msra.mxu0 0.0
        %1087 = vmatprep.subr.mxu0 0.0
        %1088 = vmatpush1.msra.mxu0 0.0
        %1089 = vmatprep.subr.mxu0 0.0
        %1090 = vmatpush1.msra.mxu0 0.0
        %1091 = vmatprep.subr.mxu0 0.0
        %1092 = vmatpush1.msra.mxu0 0.0
        %1093 = vmatprep.subr.mxu0 0.0
        %1094 = vmatpush1.msra.mxu0 0.0
        %1095 = vmatprep.subr.mxu0 0.0
        %1096 = vmatpush1.msra.mxu0 0.0
        %1097 = vmatprep.subr.mxu0 0.0
        %1098 = vmatpush1.msra.mxu0 0.0
        %1099 = vmatprep.mubr.f32.mxu0 0.0
        %1100 = vmatmul.mubr.f32.gmra.mrb[0].mxu0 %v1033
        %v1101 = vpop.f32.mrb[0].mxu0
        %v1102 = vadd.f32 0.0, %v1101
        %v1103 = vpop.f32.mrb[0].mxu0
        %1104 = vdwg.mxu0
        %v1106 = vsel %vm942, %v1102, 0
        %1108 = vmatprep.subr.mxu0 0.0
        %1109 = vmatpush1.msra.mxu0 %v934
        %1110 = vmatprep.subr.mxu0 0.0
        %1111 = vmatpush1.msra.mxu0 0.0
        %1112 = vmatprep.subr.mxu0 0.0
        %1113 = vmatpush1.msra.mxu0 0.0
        %1114 = vmatprep.subr.mxu0 0.0
        %1115 = vmatpush1.msra.mxu0 0.0
        %1116 = vmatprep.subr.mxu0 0.0
        %1117 = vmatpush1.msra.mxu0 0.0
        %1118 = vmatprep.subr.mxu0 0.0
        %1119 = vmatpush1.msra.mxu0 0.0
        %1120 = vmatprep.subr.mxu0 0.0
        %1121 = vmatpush1.msra.mxu0 0.0
        %1122 = vmatprep.subr.mxu0 0.0
        %1123 = vmatpush1.msra.mxu0 0.0
        %1124 = vmatprep.subr.mxu0 0.0
        %1125 = vmatpush1.msra.mxu0 0.0
        %1126 = vmatprep.subr.mxu0 0.0
        %1127 = vmatpush1.msra.mxu0 0.0
        %1128 = vmatprep.subr.mxu0 0.0
        %1129 = vmatpush1.msra.mxu0 0.0
        %1130 = vmatprep.subr.mxu0 0.0
        %1131 = vmatpush1.msra.mxu0 0.0
        %1132 = vmatprep.subr.mxu0 0.0
        %1133 = vmatpush1.msra.mxu0 0.0
        %1134 = vmatprep.subr.mxu0 0.0
        %1135 = vmatpush1.msra.mxu0 0.0
        %1136 = vmatprep.subr.mxu0 0.0
        %1137 = vmatpush1.msra.mxu0 0.0
        %1138 = vmatprep.subr.mxu0 0.0
        %1139 = vmatpush1.msra.mxu0 0.0
        %1140 = vmatprep.subr.mxu0 0.0
        %1141 = vmatpush1.msra.mxu0 0.0
        %1142 = vmatprep.subr.mxu0 0.0
        %1143 = vmatpush1.msra.mxu0 0.0
        %1144 = vmatprep.subr.mxu0 0.0
        %1145 = vmatpush1.msra.mxu0 0.0
        %1146 = vmatprep.subr.mxu0 0.0
        %1147 = vmatpush1.msra.mxu0 0.0
        %1148 = vmatprep.subr.mxu0 0.0
        %1149 = vmatpush1.msra.mxu0 0.0
        %1150 = vmatprep.subr.mxu0 0.0
        %1151 = vmatpush1.msra.mxu0 0.0
        %1152 = vmatprep.subr.mxu0 0.0
        %1153 = vmatpush1.msra.mxu0 0.0
        %1154 = vmatprep.subr.mxu0 0.0
        %1155 = vmatpush1.msra.mxu0 0.0
        %1156 = vmatprep.subr.mxu0 0.0
        %1157 = vmatpush1.msra.mxu0 0.0
        %1158 = vmatprep.subr.mxu0 0.0
        %1159 = vmatpush1.msra.mxu0 0.0
        %1160 = vmatprep.subr.mxu0 0.0
        %1161 = vmatpush1.msra.mxu0 0.0
        %1162 = vmatprep.subr.mxu0 0.0
        %1163 = vmatpush1.msra.mxu0 0.0
        %1164 = vmatprep.subr.mxu0 0.0
        %1165 = vmatpush1.msra.mxu0 0.0
        %1166 = vmatprep.subr.mxu0 0.0
        %1167 = vmatpush1.msra.mxu0 0.0
        %1168 = vmatprep.subr.mxu0 0.0
        %1169 = vmatpush1.msra.mxu0 0.0
        %1170 = vmatprep.subr.mxu0 0.0
        %1171 = vmatpush1.msra.mxu0 0.0
        %1172 = vmatprep.mubr.f32.mxu0 0.0
        %1173 = vmatmul.mubr.f32.gmra.mrb[0].mxu0 %v1106
        %v1174 = vpop.f32.mrb[0].mxu0
        %v1175 = vadd.f32 0.0, %v1174
        %v1176 = vpop.f32.mrb[0].mxu0
        %1177 = vdwg.mxu0
        %v1179 = vlaneseq
        %v1180 = vshrl.u32 %v1179, 7
        %v1181 = vsub.s32 0, %v1180
        %v1182 = vrot.slane %v938, %v1181
        %v1184 = vadd.f32 %v1182, %v1175
        %1185 = vrot.lane.b32.xlu0 %v933, 120
        %v1186 = vpop.permute.xlu0 %1185
        %1187 = vrot.lane.b32.xlu0 %v930, 88
        %v1188 = vpop.permute.xlu0 %1187
        %v1189 = vsel %vm942, %v1186, 0
        %v1191 = vsel %vm942, %v1188, 0
        %1193 = vmatprep.subr.mxu0 0.0
        %1194 = vmatpush1.xpose.msra.mxu0 %v1191
        %1195 = vmatprep.subr.mxu0 0.0
        %1196 = vmatpush1.xpose.msra.mxu0 0.0
        %1197 = vmatprep.subr.mxu0 0.0
        %1198 = vmatpush1.xpose.msra.mxu0 0.0
        %1199 = vmatprep.subr.mxu0 0.0
        %1200 = vmatpush1.xpose.msra.mxu0 0.0
        %1201 = vmatprep.subr.mxu0 0.0
        %1202 = vmatpush1.xpose.msra.mxu0 0.0
        %1203 = vmatprep.subr.mxu0 0.0
        %1204 = vmatpush1.xpose.msra.mxu0 0.0
        %1205 = vmatprep.subr.mxu0 0.0
        %1206 = vmatpush1.xpose.msra.mxu0 0.0
        %1207 = vmatprep.subr.mxu0 0.0
        %1208 = vmatpush1.xpose.msra.mxu0 0.0
        %1209 = vmatprep.subr.mxu0 0.0
        %1210 = vmatpush1.xpose.msra.mxu0 0.0
        %1211 = vmatprep.subr.mxu0 0.0
        %1212 = vmatpush1.xpose.msra.mxu0 0.0
        %1213 = vmatprep.subr.mxu0 0.0
        %1214 = vmatpush1.xpose.msra.mxu0 0.0
        %1215 = vmatprep.subr.mxu0 0.0
        %1216 = vmatpush1.xpose.msra.mxu0 0.0
        %1217 = vmatprep.subr.mxu0 0.0
        %1218 = vmatpush1.xpose.msra.mxu0 0.0
        %1219 = vmatprep.subr.mxu0 0.0
        %1220 = vmatpush1.xpose.msra.mxu0 0.0
        %1221 = vmatprep.subr.mxu0 0.0
        %1222 = vmatpush1.xpose.msra.mxu0 0.0
        %1223 = vmatprep.subr.mxu0 0.0
        %1224 = vmatpush1.xpose.msra.mxu0 0.0
        %1225 = vmatprep.subr.mxu0 0.0
        %1226 = vmatpush1.xpose.msra.mxu0 0.0
        %1227 = vmatprep.subr.mxu0 0.0
        %1228 = vmatpush1.xpose.msra.mxu0 0.0
        %1229 = vmatprep.subr.mxu0 0.0
        %1230 = vmatpush1.xpose.msra.mxu0 0.0
        %1231 = vmatprep.subr.mxu0 0.0
        %1232 = vmatpush1.xpose.msra.mxu0 0.0
        %1233 = vmatprep.subr.mxu0 0.0
        %1234 = vmatpush1.xpose.msra.mxu0 0.0
        %1235 = vmatprep.subr.mxu0 0.0
        %1236 = vmatpush1.xpose.msra.mxu0 0.0
        %1237 = vmatprep.subr.mxu0 0.0
        %1238 = vmatpush1.xpose.msra.mxu0 0.0
        %1239 = vmatprep.subr.mxu0 0.0
        %1240 = vmatpush1.xpose.msra.mxu0 0.0
        %1241 = vmatprep.subr.mxu0 0.0
        %1242 = vmatpush1.xpose.msra.mxu0 0.0
        %1243 = vmatprep.subr.mxu0 0.0
        %1244 = vmatpush1.xpose.msra.mxu0 0.0
        %1245 = vmatprep.subr.mxu0 0.0
        %1246 = vmatpush1.xpose.msra.mxu0 0.0
        %1247 = vmatprep.subr.mxu0 0.0
        %1248 = vmatpush1.xpose.msra.mxu0 0.0
        %1249 = vmatprep.subr.mxu0 0.0
        %1250 = vmatpush1.xpose.msra.mxu0 0.0
        %1251 = vmatprep.subr.mxu0 0.0
        %1252 = vmatpush1.xpose.msra.mxu0 0.0
        %1253 = vmatprep.subr.mxu0 0.0
        %1254 = vmatpush1.xpose.msra.mxu0 0.0
        %1255 = vmatprep.subr.mxu0 0.0
        %1256 = vmatpush1.xpose.msra.mxu0 0.0
        %1257 = vmatprep.mubr.f32.mxu0 0.0
        %1258 = vmatmul.mubr.f32.gmra.mrb[0].mxu0 %v1189
        %v1259 = vpop.f32.mrb[0].mxu0
        %v1260 = vadd.f32 %v813, %v1259
        %v1261 = vpop.f32.mrb[0].mxu0
        %1262 = vdwg.mxu0
        %v1263 = vsel %vm942, %v1260, -inf
        %1264 = vmax.xlane.f32.xlu0 %v1263
        %v1265 = vpop.xlane.xlu0 %1264
        %v1266 = vsub.f32 %v1260, %v1265
        %v1267 = vmul.f32 %v1266, 1.442695
        %v1268 = vpow.pop %v1267
        %v1269 = vsel %vm942, %v1268, 0.0
        %1270 = vadd.xlane.f32.xlu0 %v1269
        %v1271 = vpop.xlane.xlu0 %1270
        %v1272 = vrcp.pop %v1271
        %v1273 = vmul.f32 %v1268, %v1272
        %1274 = vrot.lane.b32.xlu0 %v930, 56
        %v1275 = vpop.permute.xlu0 %1274
        %v1278 = vsel %vm942, %v1273, 0
        %1280 = vmatprep.subr.mxu0 0.0
        %1281 = vmatpush1.msra.mxu0 %v1275
        %1282 = vmatprep.subr.mxu0 0.0
        %1283 = vmatpush1.msra.mxu0 0.0
        %1284 = vmatprep.subr.mxu0 0.0
        %1285 = vmatpush1.msra.mxu0 0.0
        %1286 = vmatprep.subr.mxu0 0.0
        %1287 = vmatpush1.msra.mxu0 0.0
        %1288 = vmatprep.subr.mxu0 0.0
        %1289 = vmatpush1.msra.mxu0 0.0
        %1290 = vmatprep.subr.mxu0 0.0
        %1291 = vmatpush1.msra.mxu0 0.0
        %1292 = vmatprep.subr.mxu0 0.0
        %1293 = vmatpush1.msra.mxu0 0.0
        %1294 = vmatprep.subr.mxu0 0.0
        %1295 = vmatpush1.msra.mxu0 0.0
        %1296 = vmatprep.subr.mxu0 0.0
        %1297 = vmatpush1.msra.mxu0 0.0
        %1298 = vmatprep.subr.mxu0 0.0
        %1299 = vmatpush1.msra.mxu0 0.0
        %1300 = vmatprep.subr.mxu0 0.0
        %1301 = vmatpush1.msra.mxu0 0.0
        %1302 = vmatprep.subr.mxu0 0.0
        %1303 = vmatpush1.msra.mxu0 0.0
        %1304 = vmatprep.subr.mxu0 0.0
        %1305 = vmatpush1.msra.mxu0 0.0
        %1306 = vmatprep.subr.mxu0 0.0
        %1307 = vmatpush1.msra.mxu0 0.0
        %1308 = vmatprep.subr.mxu0 0.0
        %1309 = vmatpush1.msra.mxu0 0.0
        %1310 = vmatprep.subr.mxu0 0.0
        %1311 = vmatpush1.msra.mxu0 0.0
        %1312 = vmatprep.subr.mxu0 0.0
        %1313 = vmatpush1.msra.mxu0 0.0
        %1314 = vmatprep.subr.mxu0 0.0
        %1315 = vmatpush1.msra.mxu0 0.0
        %1316 = vmatprep.subr.mxu0 0.0
        %1317 = vmatpush1.msra.mxu0 0.0
        %1318 = vmatprep.subr.mxu0 0.0
        %1319 = vmatpush1.msra.mxu0 0.0
        %1320 = vmatprep.subr.mxu0 0.0
        %1321 = vmatpush1.msra.mxu0 0.0
        %1322 = vmatprep.subr.mxu0 0.0
        %1323 = vmatpush1.msra.mxu0 0.0
        %1324 = vmatprep.subr.mxu0 0.0
        %1325 = vmatpush1.msra.mxu0 0.0
        %1326 = vmatprep.subr.mxu0 0.0
        %1327 = vmatpush1.msra.mxu0 0.0
        %1328 = vmatprep.subr.mxu0 0.0
        %1329 = vmatpush1.msra.mxu0 0.0
        %1330 = vmatprep.subr.mxu0 0.0
        %1331 = vmatpush1.msra.mxu0 0.0
        %1332 = vmatprep.subr.mxu0 0.0
        %1333 = vmatpush1.msra.mxu0 0.0
        %1334 = vmatprep.subr.mxu0 0.0
        %1335 = vmatpush1.msra.mxu0 0.0
        %1336 = vmatprep.subr.mxu0 0.0
        %1337 = vmatpush1.msra.mxu0 0.0
        %1338 = vmatprep.subr.mxu0 0.0
        %1339 = vmatpush1.msra.mxu0 0.0
        %1340 = vmatprep.subr.mxu0 0.0
        %1341 = vmatpush1.msra.mxu0 0.0
        %1342 = vmatprep.subr.mxu0 0.0
        %1343 = vmatpush1.msra.mxu0 0.0
        %1344 = vmatprep.mubr.f32.mxu0 0.0
        %1345 = vmatmul.mubr.f32.gmra.mrb[0].mxu0 %v1278
        %v1346 = vpop.f32.mrb[0].mxu0
        %v1347 = vadd.f32 0.0, %v1346
        %v1348 = vpop.f32.mrb[0].mxu0
        %1349 = vdwg.mxu0
        %v1351 = vsel %vm942, %v1347, 0
        %1353 = vmatprep.subr.mxu0 0.0
        %1354 = vmatpush1.msra.mxu0 %v935
        %1355 = vmatprep.subr.mxu0 0.0
        %1356 = vmatpush1.msra.mxu0 0.0
        %1357 = vmatprep.subr.mxu0 0.0
        %1358 = vmatpush1.msra.mxu0 0.0
        %1359 = vmatprep.subr.mxu0 0.0
        %1360 = vmatpush1.msra.mxu0 0.0
        %1361 = vmatprep.subr.mxu0 0.0
        %1362 = vmatpush1.msra.mxu0 0.0
        %1363 = vmatprep.subr.mxu0 0.0
        %1364 = vmatpush1.msra.mxu0 0.0
        %1365 = vmatprep.subr.mxu0 0.0
        %1366 = vmatpush1.msra.mxu0 0.0
        %1367 = vmatprep.subr.mxu0 0.0
        %1368 = vmatpush1.msra.mxu0 0.0
        %1369 = vmatprep.subr.mxu0 0.0
        %1370 = vmatpush1.msra.mxu0 0.0
        %1371 = vmatprep.subr.mxu0 0.0
        %1372 = vmatpush1.msra.mxu0 0.0
        %1373 = vmatprep.subr.mxu0 0.0
        %1374 = vmatpush1.msra.mxu0 0.0
        %1375 = vmatprep.subr.mxu0 0.0
        %1376 = vmatpush1.msra.mxu0 0.0
        %1377 = vmatprep.subr.mxu0 0.0
        %1378 = vmatpush1.msra.mxu0 0.0
        %1379 = vmatprep.subr.mxu0 0.0
        %1380 = vmatpush1.msra.mxu0 0.0
        %1381 = vmatprep.subr.mxu0 0.0
        %1382 = vmatpush1.msra.mxu0 0.0
        %1383 = vmatprep.subr.mxu0 0.0
        %1384 = vmatpush1.msra.mxu0 0.0
        %1385 = vmatprep.subr.mxu0 0.0
        %1386 = vmatpush1.msra.mxu0 0.0
        %1387 = vmatprep.subr.mxu0 0.0
        %1388 = vmatpush1.msra.mxu0 0.0
        %1389 = vmatprep.subr.mxu0 0.0
        %1390 = vmatpush1.msra.mxu0 0.0
        %1391 = vmatprep.subr.mxu0 0.0
        %1392 = vmatpush1.msra.mxu0 0.0
        %1393 = vmatprep.subr.mxu0 0.0
        %1394 = vmatpush1.msra.mxu0 0.0
        %1395 = vmatprep.subr.mxu0 0.0
        %1396 = vmatpush1.msra.mxu0 0.0
        %1397 = vmatprep.subr.mxu0 0.0
        %1398 = vmatpush1.msra.mxu0 0.0
        %1399 = vmatprep.subr.mxu0 0.0
        %1400 = vmatpush1.msra.mxu0 0.0
        %1401 = vmatprep.subr.mxu0 0.0
        %1402 = vmatpush1.msra.mxu0 0.0
        %1403 = vmatprep.subr.mxu0 0.0
        %1404 = vmatpush1.msra.mxu0 0.0
        %1405 = vmatprep.subr.mxu0 0.0
        %1406 = vmatpush1.msra.mxu0 0.0
        %1407 = vmatprep.subr.mxu0 0.0
        %1408 = vmatpush1.msra.mxu0 0.0
        %1409 = vmatprep.subr.mxu0 0.0
        %1410 = vmatpush1.msra.mxu0 0.0
        %1411 = vmatprep.subr.mxu0 0.0
        %1412 = vmatpush1.msra.mxu0 0.0
        %1413 = vmatprep.subr.mxu0 0.0
        %1414 = vmatpush1.msra.mxu0 0.0
        %1415 = vmatprep.subr.mxu0 0.0
        %1416 = vmatpush1.msra.mxu0 0.0
        %1417 = vmatprep.mubr.f32.mxu0 0.0
        %1418 = vmatmul.mubr.f32.gmra.mrb[0].mxu0 %v1351
        %v1419 = vpop.f32.mrb[0].mxu0
        %v1420 = vadd.f32 0.0, %v1419
        %v1421 = vpop.f32.mrb[0].mxu0
        %1422 = vdwg.mxu0
        %v1423 = vadd.f32 %v1184, %v1420
        %1424 = vrot.lane.b32.xlu0 %v933, 112
        %v1425 = vpop.permute.xlu0 %1424
        %1426 = vrot.lane.b32.xlu0 %v930, 80
        %v1427 = vpop.permute.xlu0 %1426
        %v1428 = vsel %vm942, %v1425, 0
        %v1430 = vsel %vm942, %v1427, 0
        %1432 = vmatprep.subr.mxu0 0.0
        %1433 = vmatpush1.xpose.msra.mxu0 %v1430
        %1434 = vmatprep.subr.mxu0 0.0
        %1435 = vmatpush1.xpose.msra.mxu0 0.0
        %1436 = vmatprep.subr.mxu0 0.0
        %1437 = vmatpush1.xpose.msra.mxu0 0.0
        %1438 = vmatprep.subr.mxu0 0.0
        %1439 = vmatpush1.xpose.msra.mxu0 0.0
        %1440 = vmatprep.subr.mxu0 0.0
        %1441 = vmatpush1.xpose.msra.mxu0 0.0
        %1442 = vmatprep.subr.mxu0 0.0
        %1443 = vmatpush1.xpose.msra.mxu0 0.0
        %1444 = vmatprep.subr.mxu0 0.0
        %1445 = vmatpush1.xpose.msra.mxu0 0.0
        %1446 = vmatprep.subr.mxu0 0.0
        %1447 = vmatpush1.xpose.msra.mxu0 0.0
        %1448 = vmatprep.subr.mxu0 0.0
        %1449 = vmatpush1.xpose.msra.mxu0 0.0
        %1450 = vmatprep.subr.mxu0 0.0
        %1451 = vmatpush1.xpose.msra.mxu0 0.0
        %1452 = vmatprep.subr.mxu0 0.0
        %1453 = vmatpush1.xpose.msra.mxu0 0.0
        %1454 = vmatprep.subr.mxu0 0.0
        %1455 = vmatpush1.xpose.msra.mxu0 0.0
        %1456 = vmatprep.subr.mxu0 0.0
        %1457 = vmatpush1.xpose.msra.mxu0 0.0
        %1458 = vmatprep.subr.mxu0 0.0
        %1459 = vmatpush1.xpose.msra.mxu0 0.0
        %1460 = vmatprep.subr.mxu0 0.0
        %1461 = vmatpush1.xpose.msra.mxu0 0.0
        %1462 = vmatprep.subr.mxu0 0.0
        %1463 = vmatpush1.xpose.msra.mxu0 0.0
        %1464 = vmatprep.subr.mxu0 0.0
        %1465 = vmatpush1.xpose.msra.mxu0 0.0
        %1466 = vmatprep.subr.mxu0 0.0
        %1467 = vmatpush1.xpose.msra.mxu0 0.0
        %1468 = vmatprep.subr.mxu0 0.0
        %1469 = vmatpush1.xpose.msra.mxu0 0.0
        %1470 = vmatprep.subr.mxu0 0.0
        %1471 = vmatpush1.xpose.msra.mxu0 0.0
        %1472 = vmatprep.subr.mxu0 0.0
        %1473 = vmatpush1.xpose.msra.mxu0 0.0
        %1474 = vmatprep.subr.mxu0 0.0
        %1475 = vmatpush1.xpose.msra.mxu0 0.0
        %1476 = vmatprep.subr.mxu0 0.0
        %1477 = vmatpush1.xpose.msra.mxu0 0.0
        %1478 = vmatprep.subr.mxu0 0.0
        %1479 = vmatpush1.xpose.msra.mxu0 0.0
        %1480 = vmatprep.subr.mxu0 0.0
        %1481 = vmatpush1.xpose.msra.mxu0 0.0
        %1482 = vmatprep.subr.mxu0 0.0
        %1483 = vmatpush1.xpose.msra.mxu0 0.0
        %1484 = vmatprep.subr.mxu0 0.0
        %1485 = vmatpush1.xpose.msra.mxu0 0.0
        %1486 = vmatprep.subr.mxu0 0.0
        %1487 = vmatpush1.xpose.msra.mxu0 0.0
        %1488 = vmatprep.subr.mxu0 0.0
        %1489 = vmatpush1.xpose.msra.mxu0 0.0
        %1490 = vmatprep.subr.mxu0 0.0
        %1491 = vmatpush1.xpose.msra.mxu0 0.0
        %1492 = vmatprep.subr.mxu0 0.0
        %1493 = vmatpush1.xpose.msra.mxu0 0.0
        %1494 = vmatprep.subr.mxu0 0.0
        %1495 = vmatpush1.xpose.msra.mxu0 0.0
        %1496 = vmatprep.mubr.f32.mxu0 0.0
        %1497 = vmatmul.mubr.f32.gmra.mrb[0].mxu0 %v1428
        %v1498 = vpop.f32.mrb[0].mxu0
        %v1499 = vadd.f32 %v816, %v1498
        %v1500 = vpop.f32.mrb[0].mxu0
        %1501 = vdwg.mxu0
        %v1502 = vsel %vm942, %v1499, -inf
        %1503 = vmax.xlane.f32.xlu0 %v1502
        %v1504 = vpop.xlane.xlu0 %1503
        %v1505 = vsub.f32 %v1499, %v1504
        %v1506 = vmul.f32 %v1505, 1.442695
        %v1507 = vpow.pop %v1506
        %v1508 = vsel %vm942, %v1507, 0.0
        %1509 = vadd.xlane.f32.xlu0 %v1508
        %v1510 = vpop.xlane.xlu0 %1509
        %v1511 = vrcp.pop %v1510
        %v1512 = vmul.f32 %v1507, %v1511
        %1513 = vrot.lane.b32.xlu0 %v930, 48
        %v1514 = vpop.permute.xlu0 %1513
        %v1517 = vsel %vm942, %v1512, 0
        %1519 = vmatprep.subr.mxu0 0.0
        %1520 = vmatpush1.msra.mxu0 %v1514
        %1521 = vmatprep.subr.mxu0 0.0
        %1522 = vmatpush1.msra.mxu0 0.0
        %1523 = vmatprep.subr.mxu0 0.0
        %1524 = vmatpush1.msra.mxu0 0.0
        %1525 = vmatprep.subr.mxu0 0.0
        %1526 = vmatpush1.msra.mxu0 0.0
        %1527 = vmatprep.subr.mxu0 0.0
        %1528 = vmatpush1.msra.mxu0 0.0
        %1529 = vmatprep.subr.mxu0 0.0
        %1530 = vmatpush1.msra.mxu0 0.0
        %1531 = vmatprep.subr.mxu0 0.0
        %1532 = vmatpush1.msra.mxu0 0.0
        %1533 = vmatprep.subr.mxu0 0.0
        %1534 = vmatpush1.msra.mxu0 0.0
        %1535 = vmatprep.subr.mxu0 0.0
        %1536 = vmatpush1.msra.mxu0 0.0
        %1537 = vmatprep.subr.mxu0 0.0
        %1538 = vmatpush1.msra.mxu0 0.0
        %1539 = vmatprep.subr.mxu0 0.0
        %1540 = vmatpush1.msra.mxu0 0.0
        %1541 = vmatprep.subr.mxu0 0.0
        %1542 = vmatpush1.msra.mxu0 0.0
        %1543 = vmatprep.subr.mxu0 0.0
        %1544 = vmatpush1.msra.mxu0 0.0
        %1545 = vmatprep.subr.mxu0 0.0
        %1546 = vmatpush1.msra.mxu0 0.0
        %1547 = vmatprep.subr.mxu0 0.0
        %1548 = vmatpush1.msra.mxu0 0.0
        %1549 = vmatprep.subr.mxu0 0.0
        %1550 = vmatpush1.msra.mxu0 0.0
        %1551 = vmatprep.subr.mxu0 0.0
        %1552 = vmatpush1.msra.mxu0 0.0
        %1553 = vmatprep.subr.mxu0 0.0
        %1554 = vmatpush1.msra.mxu0 0.0
        %1555 = vmatprep.subr.mxu0 0.0
        %1556 = vmatpush1.msra.mxu0 0.0
        %1557 = vmatprep.subr.mxu0 0.0
        %1558 = vmatpush1.msra.mxu0 0.0
        %1559 = vmatprep.subr.mxu0 0.0
        %1560 = vmatpush1.msra.mxu0 0.0
        %1561 = vmatprep.subr.mxu0 0.0
        %1562 = vmatpush1.msra.mxu0 0.0
        %1563 = vmatprep.subr.mxu0 0.0
        %1564 = vmatpush1.msra.mxu0 0.0
        %1565 = vmatprep.subr.mxu0 0.0
        %1566 = vmatpush1.msra.mxu0 0.0
        %1567 = vmatprep.subr.mxu0 0.0
        %1568 = vmatpush1.msra.mxu0 0.0
        %1569 = vmatprep.subr.mxu0 0.0
        %1570 = vmatpush1.msra.mxu0 0.0
        %1571 = vmatprep.subr.mxu0 0.0
        %1572 = vmatpush1.msra.mxu0 0.0
        %1573 = vmatprep.subr.mxu0 0.0
        %1574 = vmatpush1.msra.mxu0 0.0
        %1575 = vmatprep.subr.mxu0 0.0
        %1576 = vmatpush1.msra.mxu0 0.0
        %1577 = vmatprep.subr.mxu0 0.0
        %1578 = vmatpush1.msra.mxu0 0.0
        %1579 = vmatprep.subr.mxu0 0.0
        %1580 = vmatpush1.msra.mxu0 0.0
        %1581 = vmatprep.subr.mxu0 0.0
        %1582 = vmatpush1.msra.mxu0 0.0
        %1583 = vmatprep.mubr.f32.mxu0 0.0
        %1584 = vmatmul.mubr.f32.gmra.mrb[0].mxu0 %v1517
        %v1585 = vpop.f32.mrb[0].mxu0
        %v1586 = vadd.f32 0.0, %v1585
        %v1587 = vpop.f32.mrb[0].mxu0
        %1588 = vdwg.mxu0
        %v1590 = vsel %vm942, %v1586, 0
        %1592 = vmatprep.subr.mxu0 0.0
        %1593 = vmatpush1.msra.mxu0 %v936
        %1594 = vmatprep.subr.mxu0 0.0
        %1595 = vmatpush1.msra.mxu0 0.0
        %1596 = vmatprep.subr.mxu0 0.0
        %1597 = vmatpush1.msra.mxu0 0.0
        %1598 = vmatprep.subr.mxu0 0.0
        %1599 = vmatpush1.msra.mxu0 0.0
        %1600 = vmatprep.subr.mxu0 0.0
        %1601 = vmatpush1.msra.mxu0 0.0
        %1602 = vmatprep.subr.mxu0 0.0
        %1603 = vmatpush1.msra.mxu0 0.0
        %1604 = vmatprep.subr.mxu0 0.0
        %1605 = vmatpush1.msra.mxu0 0.0
        %1606 = vmatprep.subr.mxu0 0.0
        %1607 = vmatpush1.msra.mxu0 0.0
        %1608 = vmatprep.subr.mxu0 0.0
        %1609 = vmatpush1.msra.mxu0 0.0
        %1610 = vmatprep.subr.mxu0 0.0
        %1611 = vmatpush1.msra.mxu0 0.0
        %1612 = vmatprep.subr.mxu0 0.0
        %1613 = vmatpush1.msra.mxu0 0.0
        %1614 = vmatprep.subr.mxu0 0.0
        %1615 = vmatpush1.msra.mxu0 0.0
        %1616 = vmatprep.subr.mxu0 0.0
        %1617 = vmatpush1.msra.mxu0 0.0
        %1618 = vmatprep.subr.mxu0 0.0
        %1619 = vmatpush1.msra.mxu0 0.0
        %1620 = vmatprep.subr.mxu0 0.0
        %1621 = vmatpush1.msra.mxu0 0.0
        %1622 = vmatprep.subr.mxu0 0.0
        %1623 = vmatpush1.msra.mxu0 0.0
        %1624 = vmatprep.subr.mxu0 0.0
        %1625 = vmatpush1.msra.mxu0 0.0
        %1626 = vmatprep.subr.mxu0 0.0
        %1627 = vmatpush1.msra.mxu0 0.0
        %1628 = vmatprep.subr.mxu0 0.0
        %1629 = vmatpush1.msra.mxu0 0.0
        %1630 = vmatprep.subr.mxu0 0.0
        %1631 = vmatpush1.msra.mxu0 0.0
        %1632 = vmatprep.subr.mxu0 0.0
        %1633 = vmatpush1.msra.mxu0 0.0
        %1634 = vmatprep.subr.mxu0 0.0
        %1635 = vmatpush1.msra.mxu0 0.0
        %1636 = vmatprep.subr.mxu0 0.0
        %1637 = vmatpush1.msra.mxu0 0.0
        %1638 = vmatprep.subr.mxu0 0.0
        %1639 = vmatpush1.msra.mxu0 0.0
        %1640 = vmatprep.subr.mxu0 0.0
        %1641 = vmatpush1.msra.mxu0 0.0
        %1642 = vmatprep.subr.mxu0 0.0
        %1643 = vmatpush1.msra.mxu0 0.0
        %1644 = vmatprep.subr.mxu0 0.0
        %1645 = vmatpush1.msra.mxu0 0.0
        %1646 = vmatprep.subr.mxu0 0.0
        %1647 = vmatpush1.msra.mxu0 0.0
        %1648 = vmatprep.subr.mxu0 0.0
        %1649 = vmatpush1.msra.mxu0 0.0
        %1650 = vmatprep.subr.mxu0 0.0
        %1651 = vmatpush1.msra.mxu0 0.0
        %1652 = vmatprep.subr.mxu0 0.0
        %1653 = vmatpush1.msra.mxu0 0.0
        %1654 = vmatprep.subr.mxu0 0.0
        %1655 = vmatpush1.msra.mxu0 0.0
        %1656 = vmatprep.mubr.f32.mxu0 0.0
        %1657 = vmatmul.mubr.f32.gmra.mrb[0].mxu0 %v1590
        %v1658 = vpop.f32.mrb[0].mxu0
        %v1659 = vadd.f32 0.0, %v1658
        %v1660 = vpop.f32.mrb[0].mxu0
        %1661 = vdwg.mxu0
        %v1662 = vadd.f32 %v1423, %v1659
        %1663 = vrot.lane.b32.xlu0 %v933, 104
        %v1664 = vpop.permute.xlu0 %1663
        %1665 = vrot.lane.b32.xlu0 %v930, 72
        %v1666 = vpop.permute.xlu0 %1665
        %v1667 = vsel %vm942, %v1664, 0
        %v1669 = vsel %vm942, %v1666, 0
        %1671 = vmatprep.subr.mxu0 0.0
        %1672 = vmatpush1.xpose.msra.mxu0 %v1669
        %1673 = vmatprep.subr.mxu0 0.0
        %1674 = vmatpush1.xpose.msra.mxu0 0.0
        %1675 = vmatprep.subr.mxu0 0.0
        %1676 = vmatpush1.xpose.msra.mxu0 0.0
        %1677 = vmatprep.subr.mxu0 0.0
        %1678 = vmatpush1.xpose.msra.mxu0 0.0
        %1679 = vmatprep.subr.mxu0 0.0
        %1680 = vmatpush1.xpose.msra.mxu0 0.0
        %1681 = vmatprep.subr.mxu0 0.0
        %1682 = vmatpush1.xpose.msra.mxu0 0.0
        %1683 = vmatprep.subr.mxu0 0.0
        %1684 = vmatpush1.xpose.msra.mxu0 0.0
        %1685 = vmatprep.subr.mxu0 0.0
        %1686 = vmatpush1.xpose.msra.mxu0 0.0
        %1687 = vmatprep.subr.mxu0 0.0
        %1688 = vmatpush1.xpose.msra.mxu0 0.0
        %1689 = vmatprep.subr.mxu0 0.0
        %1690 = vmatpush1.xpose.msra.mxu0 0.0
        %1691 = vmatprep.subr.mxu0 0.0
        %1692 = vmatpush1.xpose.msra.mxu0 0.0
        %1693 = vmatprep.subr.mxu0 0.0
        %1694 = vmatpush1.xpose.msra.mxu0 0.0
        %1695 = vmatprep.subr.mxu0 0.0
        %1696 = vmatpush1.xpose.msra.mxu0 0.0
        %1697 = vmatprep.subr.mxu0 0.0
        %1698 = vmatpush1.xpose.msra.mxu0 0.0
        %1699 = vmatprep.subr.mxu0 0.0
        %1700 = vmatpush1.xpose.msra.mxu0 0.0
        %1701 = vmatprep.subr.mxu0 0.0
        %1702 = vmatpush1.xpose.msra.mxu0 0.0
        %1703 = vmatprep.subr.mxu0 0.0
        %1704 = vmatpush1.xpose.msra.mxu0 0.0
        %1705 = vmatprep.subr.mxu0 0.0
        %1706 = vmatpush1.xpose.msra.mxu0 0.0
        %1707 = vmatprep.subr.mxu0 0.0
        %1708 = vmatpush1.xpose.msra.mxu0 0.0
        %1709 = vmatprep.subr.mxu0 0.0
        %1710 = vmatpush1.xpose.msra.mxu0 0.0
        %1711 = vmatprep.subr.mxu0 0.0
        %1712 = vmatpush1.xpose.msra.mxu0 0.0
        %1713 = vmatprep.subr.mxu0 0.0
        %1714 = vmatpush1.xpose.msra.mxu0 0.0
        %1715 = vmatprep.subr.mxu0 0.0
        %1716 = vmatpush1.xpose.msra.mxu0 0.0
        %1717 = vmatprep.subr.mxu0 0.0
        %1718 = vmatpush1.xpose.msra.mxu0 0.0
        %1719 = vmatprep.subr.mxu0 0.0
        %1720 = vmatpush1.xpose.msra.mxu0 0.0
        %1721 = vmatprep.subr.mxu0 0.0
        %1722 = vmatpush1.xpose.msra.mxu0 0.0
        %1723 = vmatprep.subr.mxu0 0.0
        %1724 = vmatpush1.xpose.msra.mxu0 0.0
        %1725 = vmatprep.subr.mxu0 0.0
        %1726 = vmatpush1.xpose.msra.mxu0 0.0
        %1727 = vmatprep.subr.mxu0 0.0
        %1728 = vmatpush1.xpose.msra.mxu0 0.0
        %1729 = vmatprep.subr.mxu0 0.0
        %1730 = vmatpush1.xpose.msra.mxu0 0.0
        %1731 = vmatprep.subr.mxu0 0.0
        %1732 = vmatpush1.xpose.msra.mxu0 0.0
        %1733 = vmatprep.subr.mxu0 0.0
        %1734 = vmatpush1.xpose.msra.mxu0 0.0
        %1735 = vmatprep.mubr.f32.mxu0 0.0
        %1736 = vmatmul.mubr.f32.gmra.mrb[0].mxu0 %v1667
        %v1737 = vpop.f32.mrb[0].mxu0
        %v1738 = vadd.f32 %v819, %v1737
        %v1739 = vpop.f32.mrb[0].mxu0
        %1740 = vdwg.mxu0
        %v1741 = vsel %vm942, %v1738, -inf
        %1742 = vmax.xlane.f32.xlu0 %v1741
        %v1743 = vpop.xlane.xlu0 %1742
        %v1744 = vsub.f32 %v1738, %v1743
        %v1745 = vmul.f32 %v1744, 1.442695
        %v1746 = vpow.pop %v1745
        %v1747 = vsel %vm942, %v1746, 0.0
        %1748 = vadd.xlane.f32.xlu0 %v1747
        %v1749 = vpop.xlane.xlu0 %1748
        %v1750 = vrcp.pop %v1749
        %v1751 = vmul.f32 %v1746, %v1750
        %1752 = vrot.lane.b32.xlu0 %v930, 40
        %v1753 = vpop.permute.xlu0 %1752
        %v1756 = vsel %vm942, %v1751, 0
        %1758 = vmatprep.subr.mxu0 0.0
        %1759 = vmatpush1.msra.mxu0 %v1753
        %1760 = vmatprep.subr.mxu0 0.0
        %1761 = vmatpush1.msra.mxu0 0.0
        %1762 = vmatprep.subr.mxu0 0.0
        %1763 = vmatpush1.msra.mxu0 0.0
        %1764 = vmatprep.subr.mxu0 0.0
        %1765 = vmatpush1.msra.mxu0 0.0
        %1766 = vmatprep.subr.mxu0 0.0
        %1767 = vmatpush1.msra.mxu0 0.0
        %1768 = vmatprep.subr.mxu0 0.0
        %1769 = vmatpush1.msra.mxu0 0.0
        %1770 = vmatprep.subr.mxu0 0.0
        %1771 = vmatpush1.msra.mxu0 0.0
        %1772 = vmatprep.subr.mxu0 0.0
        %1773 = vmatpush1.msra.mxu0 0.0
        %1774 = vmatprep.subr.mxu0 0.0
        %1775 = vmatpush1.msra.mxu0 0.0
        %1776 = vmatprep.subr.mxu0 0.0
        %1777 = vmatpush1.msra.mxu0 0.0
        %1778 = vmatprep.subr.mxu0 0.0
        %1779 = vmatpush1.msra.mxu0 0.0
        %1780 = vmatprep.subr.mxu0 0.0
        %1781 = vmatpush1.msra.mxu0 0.0
        %1782 = vmatprep.subr.mxu0 0.0
        %1783 = vmatpush1.msra.mxu0 0.0
        %1784 = vmatprep.subr.mxu0 0.0
        %1785 = vmatpush1.msra.mxu0 0.0
        %1786 = vmatprep.subr.mxu0 0.0
        %1787 = vmatpush1.msra.mxu0 0.0
        %1788 = vmatprep.subr.mxu0 0.0
        %1789 = vmatpush1.msra.mxu0 0.0
        %1790 = vmatprep.subr.mxu0 0.0
        %1791 = vmatpush1.msra.mxu0 0.0
        %1792 = vmatprep.subr.mxu0 0.0
        %1793 = vmatpush1.msra.mxu0 0.0
        %1794 = vmatprep.subr.mxu0 0.0
        %1795 = vmatpush1.msra.mxu0 0.0
        %1796 = vmatprep.subr.mxu0 0.0
        %1797 = vmatpush1.msra.mxu0 0.0
        %1798 = vmatprep.subr.mxu0 0.0
        %1799 = vmatpush1.msra.mxu0 0.0
        %1800 = vmatprep.subr.mxu0 0.0
        %1801 = vmatpush1.msra.mxu0 0.0
        %1802 = vmatprep.subr.mxu0 0.0
        %1803 = vmatpush1.msra.mxu0 0.0
        %1804 = vmatprep.subr.mxu0 0.0
        %1805 = vmatpush1.msra.mxu0 0.0
        %1806 = vmatprep.subr.mxu0 0.0
        %1807 = vmatpush1.msra.mxu0 0.0
        %1808 = vmatprep.subr.mxu0 0.0
        %1809 = vmatpush1.msra.mxu0 0.0
        %1810 = vmatprep.subr.mxu0 0.0
        %1811 = vmatpush1.msra.mxu0 0.0
        %1812 = vmatprep.subr.mxu0 0.0
        %1813 = vmatpush1.msra.mxu0 0.0
        %1814 = vmatprep.subr.mxu0 0.0
        %1815 = vmatpush1.msra.mxu0 0.0
        %1816 = vmatprep.subr.mxu0 0.0
        %1817 = vmatpush1.msra.mxu0 0.0
        %1818 = vmatprep.subr.mxu0 0.0
        %1819 = vmatpush1.msra.mxu0 0.0
        %1820 = vmatprep.subr.mxu0 0.0
        %1821 = vmatpush1.msra.mxu0 0.0
        %1822 = vmatprep.mubr.f32.mxu0 0.0
        %1823 = vmatmul.mubr.f32.gmra.mrb[0].mxu0 %v1756
        %v1824 = vpop.f32.mrb[0].mxu0
        %v1825 = vadd.f32 0.0, %v1824
        %v1826 = vpop.f32.mrb[0].mxu0
        %1827 = vdwg.mxu0
        %v1829 = vsel %vm942, %v1825, 0
        %1831 = vmatprep.subr.mxu0 0.0
        %1832 = vmatpush1.msra.mxu0 %v937
        %1833 = vmatprep.subr.mxu0 0.0
        %1834 = vmatpush1.msra.mxu0 0.0
        %1835 = vmatprep.subr.mxu0 0.0
        %1836 = vmatpush1.msra.mxu0 0.0
        %1837 = vmatprep.subr.mxu0 0.0
        %1838 = vmatpush1.msra.mxu0 0.0
        %1839 = vmatprep.subr.mxu0 0.0
        %1840 = vmatpush1.msra.mxu0 0.0
        %1841 = vmatprep.subr.mxu0 0.0
        %1842 = vmatpush1.msra.mxu0 0.0
        %1843 = vmatprep.subr.mxu0 0.0
        %1844 = vmatpush1.msra.mxu0 0.0
        %1845 = vmatprep.subr.mxu0 0.0
        %1846 = vmatpush1.msra.mxu0 0.0
        %1847 = vmatprep.subr.mxu0 0.0
        %1848 = vmatpush1.msra.mxu0 0.0
        %1849 = vmatprep.subr.mxu0 0.0
        %1850 = vmatpush1.msra.mxu0 0.0
        %1851 = vmatprep.subr.mxu0 0.0
        %1852 = vmatpush1.msra.mxu0 0.0
        %1853 = vmatprep.subr.mxu0 0.0
        %1854 = vmatpush1.msra.mxu0 0.0
        %1855 = vmatprep.subr.mxu0 0.0
        %1856 = vmatpush1.msra.mxu0 0.0
        %1857 = vmatprep.subr.mxu0 0.0
        %1858 = vmatpush1.msra.mxu0 0.0
        %1859 = vmatprep.subr.mxu0 0.0
        %1860 = vmatpush1.msra.mxu0 0.0
        %1861 = vmatprep.subr.mxu0 0.0
        %1862 = vmatpush1.msra.mxu0 0.0
        %1863 = vmatprep.subr.mxu0 0.0
        %1864 = vmatpush1.msra.mxu0 0.0
        %1865 = vmatprep.subr.mxu0 0.0
        %1866 = vmatpush1.msra.mxu0 0.0
        %1867 = vmatprep.subr.mxu0 0.0
        %1868 = vmatpush1.msra.mxu0 0.0
        %1869 = vmatprep.subr.mxu0 0.0
        %1870 = vmatpush1.msra.mxu0 0.0
        %1871 = vmatprep.subr.mxu0 0.0
        %1872 = vmatpush1.msra.mxu0 0.0
        %1873 = vmatprep.subr.mxu0 0.0
        %1874 = vmatpush1.msra.mxu0 0.0
        %1875 = vmatprep.subr.mxu0 0.0
        %1876 = vmatpush1.msra.mxu0 0.0
        %1877 = vmatprep.subr.mxu0 0.0
        %1878 = vmatpush1.msra.mxu0 0.0
        %1879 = vmatprep.subr.mxu0 0.0
        %1880 = vmatpush1.msra.mxu0 0.0
        %1881 = vmatprep.subr.mxu0 0.0
        %1882 = vmatpush1.msra.mxu0 0.0
        %1883 = vmatprep.subr.mxu0 0.0
        %1884 = vmatpush1.msra.mxu0 0.0
        %1885 = vmatprep.subr.mxu0 0.0
        %1886 = vmatpush1.msra.mxu0 0.0
        %1887 = vmatprep.subr.mxu0 0.0
        %1888 = vmatpush1.msra.mxu0 0.0
        %1889 = vmatprep.subr.mxu0 0.0
        %1890 = vmatpush1.msra.mxu0 0.0
        %1891 = vmatprep.subr.mxu0 0.0
        %1892 = vmatpush1.msra.mxu0 0.0
        %1893 = vmatprep.subr.mxu0 0.0
        %1894 = vmatpush1.msra.mxu0 0.0
        %1895 = vmatprep.mubr.f32.mxu0 0.0
        %1896 = vmatmul.mubr.f32.gmra.mrb[0].mxu0 %v1829
        %v1897 = vpop.f32.mrb[0].mxu0
        %v1898 = vadd.f32 0.0, %v1897
        %v1899 = vpop.f32.mrb[0].mxu0
        %1900 = vdwg.mxu0
        %v1901 = vadd.f32 %v1662, %v1898
        %v1902 = vadd.f32 %v800, %v1901
        %v1903 = vld [vmem:[%s12] sm:$0x1]
        %v1904 = vld [vmem:[%s13] sm:$0x1]
        %v1905 = vsel %vm765, %v1902, 0.0
        %1906 = vadd.xlane.f32.xlu0 %v1905
        %v1907 = vpop.xlane.xlu0 %1906
        %v1908 = vmul.f32 %v1907, %v769
        %v1909 = vsub.f32 %v1902, %v1908
        %v1910 = vmul.f32 %v1909, %v1909
        %v1911 = vsel %vm765, %v1910, 0.0
        %1912 = vadd.xlane.f32.xlu0 %v1911
        %v1913 = vpop.xlane.xlu0 %1912
        %v1914 = vmul.f32 %v1913, %v769
        %v1915 = vadd.f32 %v1914, 1e-05
        %v1916 = vrsqrt.pop %v1915
        %v1917 = vmul.f32 %v1909, %v1916
        %v1919 = vlaneseq
        %v1920 = vshrl.u32 %v1919, 7
        %v1921 = vsub.s32 0, %v1920
        %v1922 = vrot.slane %v1903, %v1921
        %v1924 = vmul.f32 %v1917, %v1922
        %v1926 = vlaneseq
        %v1927 = vshrl.u32 %v1926, 7
        %v1928 = vsub.s32 0, %v1927
        %v1929 = vrot.slane %v1904, %v1928
        %v1931 = vadd.f32 %v1924, %v1929
        %v1932 = vld [vmem:[%s14] sm:$0xff]
        %v1933 = vld [vmem:[%s14 + $0x8] sm:$0xff]
        %v1934 = vld [vmem:[%s14 + $0x10] sm:$0xff]
        %v1935 = vld [vmem:[%s14 + $0x18] sm:$0xff]
        %v1936 = vld [vmem:[%s15] sm:$0x1]
        %v1938 = vlaneseq
        %v1939 = vshrl.u32 %v1938, 7
        %v1940 = vsub.s32 0, %v1939
        %v1941 = vrot.slane %v1936, %v1940
        %v1944 = vsel %vm765, %v1931, 0
        %1946 = vmatprep.subr.mxu0 0.0
        %1947 = vmatpush1.msra.mxu0 %v1932
        %1948 = vmatprep.subr.mxu0 0.0
        %1949 = vmatpush1.msra.mxu0 %v1933
        %1950 = vmatprep.subr.mxu0 0.0
        %1951 = vmatpush1.msra.mxu0 %v1934
        %1952 = vmatprep.subr.mxu0 0.0
        %1953 = vmatpush1.msra.mxu0 %v1935
        %1954 = vmatprep.subr.mxu0 0.0
        %1955 = vmatpush1.msra.mxu0 0.0
        %1956 = vmatprep.subr.mxu0 0.0
        %1957 = vmatpush1.msra.mxu0 0.0
        %1958 = vmatprep.subr.mxu0 0.0
        %1959 = vmatpush1.msra.mxu0 0.0
        %1960 = vmatprep.subr.mxu0 0.0
        %1961 = vmatpush1.msra.mxu0 0.0
        %1962 = vmatprep.subr.mxu0 0.0
        %1963 = vmatpush1.msra.mxu0 0.0
        %1964 = vmatprep.subr.mxu0 0.0
        %1965 = vmatpush1.msra.mxu0 0.0
        %1966 = vmatprep.subr.mxu0 0.0
        %1967 = vmatpush1.msra.mxu0 0.0
        %1968 = vmatprep.subr.mxu0 0.0
        %1969 = vmatpush1.msra.mxu0 0.0
        %1970 = vmatprep.subr.mxu0 0.0
        %1971 = vmatpush1.msra.mxu0 0.0
        %1972 = vmatprep.subr.mxu0 0.0
        %1973 = vmatpush1.msra.mxu0 0.0
        %1974 = vmatprep.subr.mxu0 0.0
        %1975 = vmatpush1.msra.mxu0 0.0
        %1976 = vmatprep.subr.mxu0 0.0
        %1977 = vmatpush1.msra.mxu0 0.0
        %1978 = vmatprep.subr.mxu0 0.0
        %1979 = vmatpush1.msra.mxu0 0.0
        %1980 = vmatprep.subr.mxu0 0.0
        %1981 = vmatpush1.msra.mxu0 0.0
        %1982 = vmatprep.subr.mxu0 0.0
        %1983 = vmatpush1.msra.mxu0 0.0
        %1984 = vmatprep.subr.mxu0 0.0
        %1985 = vmatpush1.msra.mxu0 0.0
        %1986 = vmatprep.subr.mxu0 0.0
        %1987 = vmatpush1.msra.mxu0 0.0
        %1988 = vmatprep.subr.mxu0 0.0
        %1989 = vmatpush1.msra.mxu0 0.0
        %1990 = vmatprep.subr.mxu0 0.0
        %1991 = vmatpush1.msra.mxu0 0.0
        %1992 = vmatprep.subr.mxu0 0.0
        %1993 = vmatpush1.msra.mxu0 0.0
        %1994 = vmatprep.subr.mxu0 0.0
        %1995 = vmatpush1.msra.mxu0 0.0
        %1996 = vmatprep.subr.mxu0 0.0
        %1997 = vmatpush1.msra.mxu0 0.0
        %1998 = vmatprep.subr.mxu0 0.0
        %1999 = vmatpush1.msra.mxu0 0.0
        %2000 = vmatprep.subr.mxu0 0.0
        %2001 = vmatpush1.msra.mxu0 0.0
        %2002 = vmatprep.subr.mxu0 0.0
        %2003 = vmatpush1.msra.mxu0 0.0
        %2004 = vmatprep.subr.mxu0 0.0
        %2005 = vmatpush1.msra.mxu0 0.0
        %2006 = vmatprep.subr.mxu0 0.0
        %2007 = vmatpush1.msra.mxu0 0.0
        %2008 = vmatprep.subr.mxu0 0.0
        %2009 = vmatpush1.msra.mxu0 0.0
        %2010 = vmatprep.mubr.f32.mxu0 0.0
        %2011 = vmatmul.mubr.f32.gmra.mrb[0].mxu0 %v1944
        %v2012 = vpop.f32.mrb[0].mxu0
        %v2013 = vadd.f32 %v1941, %v2012
        %v2014 = vpop.f32.mrb[0].mxu0
        %2015 = vdwg.mxu0
        %v2016 = vmul.f32 %v2013, 0.5
        %v2017 = vmul.f32 %v2013, 0.044715
        %v2018 = vmul.f32 %v2017, %v2013
        %v2019 = vmul.f32 %v2018, %v2013
        %v2020 = vadd.f32 %v2013, %v2019
        %v2021 = vmul.f32 %v2020, 0.7978846
        %v2022 = vtanh.pop %v2021
        %v2023 = vadd.f32 %v2022, 1.0
        %v2024 = vmul.f32 %v2016, %v2023
        %v2025 = vld [vmem:[%s16] sm:$0xff]
        %v2026 = vld [vmem:[%s16 + $0x8] sm:$0xff]
        %v2027 = vld [vmem:[%s16 + $0x10] sm:$0xff]
        %v2028 = vld [vmem:[%s16 + $0x18] sm:$0xff]
        %v2029 = vld [vmem:[%s16 + $0x20] sm:$0xff]
        %v2030 = vld [vmem:[%s16 + $0x28] sm:$0xff]
        %v2031 = vld [vmem:[%s16 + $0x30] sm:$0xff]
        %v2032 = vld [vmem:[%s16 + $0x38] sm:$0xff]
        %vm2033 = vcmask 523264
        %v2035 = vsel %vm2033, %v2024, 0
        %2037 = vmatprep.subr.mxu0 0.0
        %2038 = vmatpush1.msra.mxu0 %v2025
        %2039 = vmatprep.subr.mxu0 0.0
        %2040 = vmatpush1.msra.mxu0 %v2026
        %2041 = vmatprep.subr.mxu0 0.0
        %2042 = vmatpush1.msra.mxu0 %v2027
        %2043 = vmatprep.subr.mxu0 0.0
        %2044 = vmatpush1.msra.mxu0 %v2028
        %2045 = vmatprep.subr.mxu0 0.0
        %2046 = vmatpush1.msra.mxu0 %v2029
        %2047 = vmatprep.subr.mxu0 0.0
        %2048 = vmatpush1.msra.mxu0 %v2030
        %2049 = vmatprep.subr.mxu0 0.0
        %2050 = vmatpush1.msra.mxu0 %v2031
        %2051 = vmatprep.subr.mxu0 0.0
        %2052 = vmatpush1.msra.mxu0 %v2032
        %2053 = vmatprep.subr.mxu0 0.0
        %2054 = vmatpush1.msra.mxu0 0.0
        %2055 = vmatprep.subr.mxu0 0.0
        %2056 = vmatpush1.msra.mxu0 0.0
        %2057 = vmatprep.subr.mxu0 0.0
        %2058 = vmatpush1.msra.mxu0 0.0
        %2059 = vmatprep.subr.mxu0 0.0
        %2060 = vmatpush1.msra.mxu0 0.0
        %2061 = vmatprep.subr.mxu0 0.0
        %2062 = vmatpush1.msra.mxu0 0.0
        %2063 = vmatprep.subr.mxu0 0.0
        %2064 = vmatpush1.msra.mxu0 0.0
        %2065 = vmatprep.subr.mxu0 0.0
        %2066 = vmatpush1.msra.mxu0 0.0
        %2067 = vmatprep.subr.mxu0 0.0
        %2068 = vmatpush1.msra.mxu0 0.0
        %2069 = vmatprep.subr.mxu0 0.0
        %2070 = vmatpush1.msra.mxu0 0.0
        %2071 = vmatprep.subr.mxu0 0.0
        %2072 = vmatpush1.msra.mxu0 0.0
        %2073 = vmatprep.subr.mxu0 0.0
        %2074 = vmatpush1.msra.mxu0 0.0
        %2075 = vmatprep.subr.mxu0 0.0
        %2076 = vmatpush1.msra.mxu0 0.0
        %2077 = vmatprep.subr.mxu0 0.0
        %2078 = vmatpush1.msra.mxu0 0.0
        %2079 = vmatprep.subr.mxu0 0.0
        %2080 = vmatpush1.msra.mxu0 0.0
        %2081 = vmatprep.subr.mxu0 0.0
        %2082 = vmatpush1.msra.mxu0 0.0
        %2083 = vmatprep.subr.mxu0 0.0
        %2084 = vmatpush1.msra.mxu0 0.0
        %2085 = vmatprep.subr.mxu0 0.0
        %2086 = vmatpush1.msra.mxu0 0.0
        %2087 = vmatprep.subr.mxu0 0.0
        %2088 = vmatpush1.msra.mxu0 0.0
        %2089 = vmatprep.subr.mxu0 0.0
        %2090 = vmatpush1.msra.mxu0 0.0
        %2091 = vmatprep.subr.mxu0 0.0
        %2092 = vmatpush1.msra.mxu0 0.0
        %2093 = vmatprep.subr.mxu0 0.0
        %2094 = vmatpush1.msra.mxu0 0.0
        %2095 = vmatprep.subr.mxu0 0.0
        %2096 = vmatpush1.msra.mxu0 0.0
        %2097 = vmatprep.subr.mxu0 0.0
        %2098 = vmatpush1.msra.mxu0 0.0
        %2099 = vmatprep.subr.mxu0 0.0
        %2100 = vmatpush1.msra.mxu0 0.0
        %2101 = vmatprep.mubr.f32.mxu0 0.0
        %2102 = vmatmul.mubr.f32.gmra.mrb[0].mxu0 %v2035
        %v2103 = vpop.f32.mrb[0].mxu0
        %v2104 = vadd.f32 0.0, %v2103
        %v2105 = vpop.f32.mrb[0].mxu0
        %2106 = vdwg.mxu0
        %v2107 = vadd.f32 %v1902, %v2104
        %v2108 = vld [vmem:[%s17] sm:$0x1]
        %v2110 = vlaneseq
        %v2111 = vshrl.u32 %v2110, 7
        %v2112 = vsub.s32 0, %v2111
        %v2113 = vrot.slane %v2108, %v2112
        %v2115 = vadd.f32 %v2107, %v2113
        %s2116 = scalar_lea.vmem %s6, 1
        %v2117 = vld [vmem:[%s2116] sm:$0x1]
        %s2118 = scalar_lea.vmem %s7, 1
        %v2119 = vld [vmem:[%s2118] sm:$0x1]
        %v2120 = vsel %vm765, %v2115, 0.0
        %2121 = vadd.xlane.f32.xlu0 %v2120
        %v2122 = vpop.xlane.xlu0 %2121
        %v2123 = vmul.f32 %v2122, %v769
        %v2124 = vsub.f32 %v2115, %v2123
        %v2125 = vmul.f32 %v2124, %v2124
        %v2126 = vsel %vm765, %v2125, 0.0
        %2127 = vadd.xlane.f32.xlu0 %v2126
        %v2128 = vpop.xlane.xlu0 %2127
        %v2129 = vmul.f32 %v2128, %v769
        %v2130 = vadd.f32 %v2129, 1e-05
        %v2131 = vrsqrt.pop %v2130
        %v2132 = vmul.f32 %v2124, %v2131
        %v2134 = vlaneseq
        %v2135 = vshrl.u32 %v2134, 7
        %v2136 = vsub.s32 0, %v2135
        %v2137 = vrot.slane %v2117, %v2136
        %v2139 = vmul.f32 %v2132, %v2137
        %v2141 = vlaneseq
        %v2142 = vshrl.u32 %v2141, 7
        %v2143 = vsub.s32 0, %v2142
        %v2144 = vrot.slane %v2119, %v2143
        %v2146 = vadd.f32 %v2139, %v2144
        %s2147 = scalar_lea.vmem %s8, 32
        %v2148 = vld [vmem:[%s2147] sm:$0xff]
        %v2149 = vld [vmem:[%s2147 + $0x8] sm:$0xff]
        %v2150 = vld [vmem:[%s2147 + $0x10] sm:$0xff]
        %v2151 = vld [vmem:[%s2147 + $0x18] sm:$0xff]
        %s2152 = scalar_lea.vmem %s9, 1
        %v2153 = vld [vmem:[%s2152] sm:$0x1]
        %v2155 = vlaneseq
        %v2156 = vshrl.u32 %v2155, 7
        %v2157 = vsub.s32 0, %v2156
        %v2158 = vrot.slane %v2153, %v2157
        %v2161 = vsel %vm765, %v2146, 0
        %2163 = vmatprep.subr.mxu0 0.0
        %2164 = vmatpush1.msra.mxu0 %v2148
        %2165 = vmatprep.subr.mxu0 0.0
        %2166 = vmatpush1.msra.mxu0 %v2149
        %2167 = vmatprep.subr.mxu0 0.0
        %2168 = vmatpush1.msra.mxu0 %v2150
        %2169 = vmatprep.subr.mxu0 0.0
        %2170 = vmatpush1.msra.mxu0 %v2151
        %2171 = vmatprep.subr.mxu0 0.0
        %2172 = vmatpush1.msra.mxu0 0.0
        %2173 = vmatprep.subr.mxu0 0.0
        %2174 = vmatpush1.msra.mxu0 0.0
        %2175 = vmatprep.subr.mxu0 0.0
        %2176 = vmatpush1.msra.mxu0 0.0
        %2177 = vmatprep.subr.mxu0 0.0
        %2178 = vmatpush1.msra.mxu0 0.0
        %2179 = vmatprep.subr.mxu0 0.0
        %2180 = vmatpush1.msra.mxu0 0.0
        %2181 = vmatprep.subr.mxu0 0.0
        %2182 = vmatpush1.msra.mxu0 0.0
        %2183 = vmatprep.subr.mxu0 0.0
        %2184 = vmatpush1.msra.mxu0 0.0
        %2185 = vmatprep.subr.mxu0 0.0
        %2186 = vmatpush1.msra.mxu0 0.0
        %2187 = vmatprep.subr.mxu0 0.0
        %2188 = vmatpush1.msra.mxu0 0.0
        %2189 = vmatprep.subr.mxu0 0.0
        %2190 = vmatpush1.msra.mxu0 0.0
        %2191 = vmatprep.subr.mxu0 0.0
        %2192 = vmatpush1.msra.mxu0 0.0
        %2193 = vmatprep.subr.mxu0 0.0
        %2194 = vmatpush1.msra.mxu0 0.0
        %2195 = vmatprep.subr.mxu0 0.0
        %2196 = vmatpush1.msra.mxu0 0.0
        %2197 = vmatprep.subr.mxu0 0.0
        %2198 = vmatpush1.msra.mxu0 0.0
        %2199 = vmatprep.subr.mxu0 0.0
        %2200 = vmatpush1.msra.mxu0 0.0
        %2201 = vmatprep.subr.mxu0 0.0
        %2202 = vmatpush1.msra.mxu0 0.0
        %2203 = vmatprep.subr.mxu0 0.0
        %2204 = vmatpush1.msra.mxu0 0.0
        %2205 = vmatprep.subr.mxu0 0.0
        %2206 = vmatpush1.msra.mxu0 0.0
        %2207 = vmatprep.subr.mxu0 0.0
        %2208 = vmatpush1.msra.mxu0 0.0
        %2209 = vmatprep.subr.mxu0 0.0
        %2210 = vmatpush1.msra.mxu0 0.0
        %2211 = vmatprep.subr.mxu0 0.0
        %2212 = vmatpush1.msra.mxu0 0.0
        %2213 = vmatprep.subr.mxu0 0.0
        %2214 = vmatpush1.msra.mxu0 0.0
        %2215 = vmatprep.subr.mxu0 0.0
        %2216 = vmatpush1.msra.mxu0 0.0
        %2217 = vmatprep.subr.mxu0 0.0
        %2218 = vmatpush1.msra.mxu0 0.0
        %2219 = vmatprep.subr.mxu0 0.0
        %2220 = vmatpush1.msra.mxu0 0.0
        %2221 = vmatprep.subr.mxu0 0.0
        %2222 = vmatpush1.msra.mxu0 0.0
        %2223 = vmatprep.subr.mxu0 0.0
        %2224 = vmatpush1.msra.mxu0 0.0
        %2225 = vmatprep.subr.mxu0 0.0
        %2226 = vmatpush1.msra.mxu0 0.0
        %2227 = vmatprep.mubr.f32.mxu0 0.0
        %2228 = vmatmul.mubr.f32.gmra.mrb[0].mxu0 %v2161
        %v2229 = vpop.f32.mrb[0].mxu0
        %v2230 = vadd.f32 %v2158, %v2229
        %v2231 = vpop.f32.mrb[0].mxu0
        %2232 = vdwg.mxu0
        %v2233 = vmul.f32 %v2230, 0.35355338
        %s2234 = scalar_lea.vmem %s10, 32
        %v2235 = vld [vmem:[%s2234] sm:$0xff]
        %v2236 = vld [vmem:[%s2234 + $0x8] sm:$0xff]
        %v2237 = vld [vmem:[%s2234 + $0x10] sm:$0xff]
        %v2238 = vld [vmem:[%s2234 + $0x18] sm:$0xff]
        %s2239 = scalar_lea.vmem %s11, 1
        %v2240 = vld [vmem:[%s2239] sm:$0x1]
        %2242 = vrot.lane.b32.xlu0 %v2230, 96
        %v2243 = vpop.permute.xlu0 %2242
        %v2245 = vsel %vm942, %v2233, 0
        %v2247 = vsel %vm942, %v2243, 0
        %2249 = vmatprep.subr.mxu0 0.0
        %2250 = vmatpush1.xpose.msra.mxu0 %v2247
        %2251 = vmatprep.subr.mxu0 0.0
        %2252 = vmatpush1.xpose.msra.mxu0 0.0
        %2253 = vmatprep.subr.mxu0 0.0
        %2254 = vmatpush1.xpose.msra.mxu0 0.0
        %2255 = vmatprep.subr.mxu0 0.0
        %2256 = vmatpush1.xpose.msra.mxu0 0.0
        %2257 = vmatprep.subr.mxu0 0.0
        %2258 = vmatpush1.xpose.msra.mxu0 0.0
        %2259 = vmatprep.subr.mxu0 0.0
        %2260 = vmatpush1.xpose.msra.mxu0 0.0
        %2261 = vmatprep.subr.mxu0 0.0
        %2262 = vmatpush1.xpose.msra.mxu0 0.0
        %2263 = vmatprep.subr.mxu0 0.0
        %2264 = vmatpush1.xpose.msra.mxu0 0.0
        %2265 = vmatprep.subr.mxu0 0.0
        %2266 = vmatpush1.xpose.msra.mxu0 0.0
        %2267 = vmatprep.subr.mxu0 0.0
        %2268 = vmatpush1.xpose.msra.mxu0 0.0
        %2269 = vmatprep.subr.mxu0 0.0
        %2270 = vmatpush1.xpose.msra.mxu0 0.0
        %2271 = vmatprep.subr.mxu0 0.0
        %2272 = vmatpush1.xpose.msra.mxu0 0.0
        %2273 = vmatprep.subr.mxu0 0.0
        %2274 = vmatpush1.xpose.msra.mxu0 0.0
        %2275 = vmatprep.subr.mxu0 0.0
        %2276 = vmatpush1.xpose.msra.mxu0 0.0
        %2277 = vmatprep.subr.mxu0 0.0
        %2278 = vmatpush1.xpose.msra.mxu0 0.0
        %2279 = vmatprep.subr.mxu0 0.0
        %2280 = vmatpush1.xpose.msra.mxu0 0.0
        %2281 = vmatprep.subr.mxu0 0.0
        %2282 = vmatpush1.xpose.msra.mxu0 0.0
        %2283 = vmatprep.subr.mxu0 0.0
        %2284 = vmatpush1.xpose.msra.mxu0 0.0
        %2285 = vmatprep.subr.mxu0 0.0
        %2286 = vmatpush1.xpose.msra.mxu0 0.0
        %2287 = vmatprep.subr.mxu0 0.0
        %2288 = vmatpush1.xpose.msra.mxu0 0.0
        %2289 = vmatprep.subr.mxu0 0.0
        %2290 = vmatpush1.xpose.msra.mxu0 0.0
        %2291 = vmatprep.subr.mxu0 0.0
        %2292 = vmatpush1.xpose.msra.mxu0 0.0
        %2293 = vmatprep.subr.mxu0 0.0
        %2294 = vmatpush1.xpose.msra.mxu0 0.0
        %2295 = vmatprep.subr.mxu0 0.0
        %2296 = vmatpush1.xpose.msra.mxu0 0.0
        %2297 = vmatprep.subr.mxu0 0.0
        %2298 = vmatpush1.xpose.msra.mxu0 0.0
        %2299 = vmatprep.subr.mxu0 0.0
        %2300 = vmatpush1.xpose.msra.mxu0 0.0
        %2301 = vmatprep.subr.mxu0 0.0
        %2302 = vmatpush1.xpose.msra.mxu0 0.0
        %2303 = vmatprep.subr.mxu0 0.0
        %2304 = vmatpush1.xpose.msra.mxu0 0.0
        %2305 = vmatprep.subr.mxu0 0.0
        %2306 = vmatpush1.xpose.msra.mxu0 0.0
        %2307 = vmatprep.subr.mxu0 0.0
        %2308 = vmatpush1.xpose.msra.mxu0 0.0
        %2309 = vmatprep.subr.mxu0 0.0
        %2310 = vmatpush1.xpose.msra.mxu0 0.0
        %2311 = vmatprep.subr.mxu0 0.0
        %2312 = vmatpush1.xpose.msra.mxu0 0.0
        %2313 = vmatprep.mubr.f32.mxu0 0.0
        %2314 = vmatmul.mubr.f32.gmra.mrb[0].mxu0 %v2245
        %v2315 = vpop.f32.mrb[0].mxu0
        %v2316 = vadd.f32 %v1015, %v2315
        %v2317 = vpop.f32.mrb[0].mxu0
        %2318 = vdwg.mxu0
        %v2319 = vsel %vm942, %v2316, -inf
        %2320 = vmax.xlane.f32.xlu0 %v2319
        %v2321 = vpop.xlane.xlu0 %2320
        %v2322 = vsub.f32 %v2316, %v2321
        %v2323 = vmul.f32 %v2322, 1.442695
        %v2324 = vpow.pop %v2323
        %v2325 = vsel %vm942, %v2324, 0.0
        %2326 = vadd.xlane.f32.xlu0 %v2325
        %v2327 = vpop.xlane.xlu0 %2326
        %v2328 = vrcp.pop %v2327
        %v2329 = vmul.f32 %v2324, %v2328
        %2330 = vrot.lane.b32.xlu0 %v2230, 64
        %v2331 = vpop.permute.xlu0 %2330
        %v2334 = vsel %vm942, %v2329, 0
        %2336 = vmatprep.subr.mxu0 0.0
        %2337 = vmatpush1.msra.mxu0 %v2331
        %2338 = vmatprep.subr.mxu0 0.0
        %2339 = vmatpush1.msra.mxu0 0.0
        %2340 = vmatprep.subr.mxu0 0.0
        %2341 = vmatpush1.msra.mxu0 0.0
        %2342 = vmatprep.subr.mxu0 0.0
        %2343 = vmatpush1.msra.mxu0 0.0
        %2344 = vmatprep.subr.mxu0 0.0
        %2345 = vmatpush1.msra.mxu0 0.0
        %2346 = vmatprep.subr.mxu0 0.0
        %2347 = vmatpush1.msra.mxu0 0.0
        %2348 = vmatprep.subr.mxu0 0.0
        %2349 = vmatpush1.msra.mxu0 0.0
        %2350 = vmatprep.subr.mxu0 0.0
        %2351 = vmatpush1.msra.mxu0 0.0
        %2352 = vmatprep.subr.mxu0 0.0
        %2353 = vmatpush1.msra.mxu0 0.0
        %2354 = vmatprep.subr.mxu0 0.0
        %2355 = vmatpush1.msra.mxu0 0.0
        %2356 = vmatprep.subr.mxu0 0.0
        %2357 = vmatpush1.msra.mxu0 0.0
        %2358 = vmatprep.subr.mxu0 0.0
        %2359 = vmatpush1.msra.mxu0 0.0
        %2360 = vmatprep.subr.mxu0 0.0
        %2361 = vmatpush1.msra.mxu0 0.0
        %2362 = vmatprep.subr.mxu0 0.0
        %2363 = vmatpush1.msra.mxu0 0.0
        %2364 = vmatprep.subr.mxu0 0.0
        %2365 = vmatpush1.msra.mxu0 0.0
        %2366 = vmatprep.subr.mxu0 0.0
        %2367 = vmatpush1.msra.mxu0 0.0
        %2368 = vmatprep.subr.mxu0 0.0
        %2369 = vmatpush1.msra.mxu0 0.0
        %2370 = vmatprep.subr.mxu0 0.0
        %2371 = vmatpush1.msra.mxu0 0.0
        %2372 = vmatprep.subr.mxu0 0.0
        %2373 = vmatpush1.msra.mxu0 0.0
        %2374 = vmatprep.subr.mxu0 0.0
        %2375 = vmatpush1.msra.mxu0 0.0
        %2376 = vmatprep.subr.mxu0 0.0
        %2377 = vmatpush1.msra.mxu0 0.0
        %2378 = vmatprep.subr.mxu0 0.0
        %2379 = vmatpush1.msra.mxu0 0.0
        %2380 = vmatprep.subr.mxu0 0.0
        %2381 = vmatpush1.msra.mxu0 0.0
        %2382 = vmatprep.subr.mxu0 0.0
        %2383 = vmatpush1.msra.mxu0 0.0
        %2384 = vmatprep.subr.mxu0 0.0
        %2385 = vmatpush1.msra.mxu0 0.0
        %2386 = vmatprep.subr.mxu0 0.0
        %2387 = vmatpush1.msra.mxu0 0.0
        %2388 = vmatprep.subr.mxu0 0.0
        %2389 = vmatpush1.msra.mxu0 0.0
        %2390 = vmatprep.subr.mxu0 0.0
        %2391 = vmatpush1.msra.mxu0 0.0
        %2392 = vmatprep.subr.mxu0 0.0
        %2393 = vmatpush1.msra.mxu0 0.0
        %2394 = vmatprep.subr.mxu0 0.0
        %2395 = vmatpush1.msra.mxu0 0.0
        %2396 = vmatprep.subr.mxu0 0.0
        %2397 = vmatpush1.msra.mxu0 0.0
        %2398 = vmatprep.subr.mxu0 0.0
        %2399 = vmatpush1.msra.mxu0 0.0
        %2400 = vmatprep.mubr.f32.mxu0 0.0
        %2401 = vmatmul.mubr.f32.gmra.mrb[0].mxu0 %v2334
        %v2402 = vpop.f32.mrb[0].mxu0
        %v2403 = vadd.f32 0.0, %v2402
        %v2404 = vpop.f32.mrb[0].mxu0
        %2405 = vdwg.mxu0
        %v2407 = vsel %vm942, %v2403, 0
        %2409 = vmatprep.subr.mxu0 0.0
        %2410 = vmatpush1.msra.mxu0 %v2235
        %2411 = vmatprep.subr.mxu0 0.0
        %2412 = vmatpush1.msra.mxu0 0.0
        %2413 = vmatprep.subr.mxu0 0.0
        %2414 = vmatpush1.msra.mxu0 0.0
        %2415 = vmatprep.subr.mxu0 0.0
        %2416 = vmatpush1.msra.mxu0 0.0
        %2417 = vmatprep.subr.mxu0 0.0
        %2418 = vmatpush1.msra.mxu0 0.0
        %2419 = vmatprep.subr.mxu0 0.0
        %2420 = vmatpush1.msra.mxu0 0.0
        %2421 = vmatprep.subr.mxu0 0.0
        %2422 = vmatpush1.msra.mxu0 0.0
        %2423 = vmatprep.subr.mxu0 0.0
        %2424 = vmatpush1.msra.mxu0 0.0
        %2425 = vmatprep.subr.mxu0 0.0
        %2426 = vmatpush1.msra.mxu0 0.0
        %2427 = vmatprep.subr.mxu0 0.0
        %2428 = vmatpush1.msra.mxu0 0.0
        %2429 = vmatprep.subr.mxu0 0.0
        %2430 = vmatpush1.msra.mxu0 0.0
        %2431 = vmatprep.subr.mxu0 0.0
        %2432 = vmatpush1.msra.mxu0 0.0
        %2433 = vmatprep.subr.mxu0 0.0
        %2434 = vmatpush1.msra.mxu0 0.0
        %2435 = vmatprep.subr.mxu0 0.0
        %2436 = vmatpush1.msra.mxu0 0.0
        %2437 = vmatprep.subr.mxu0 0.0
        %2438 = vmatpush1.msra.mxu0 0.0
        %2439 = vmatprep.subr.mxu0 0.0
        %2440 = vmatpush1.msra.mxu0 0.0
        %2441 = vmatprep.subr.mxu0 0.0
        %2442 = vmatpush1.msra.mxu0 0.0
        %2443 = vmatprep.subr.mxu0 0.0
        %2444 = vmatpush1.msra.mxu0 0.0
        %2445 = vmatprep.subr.mxu0 0.0
        %2446 = vmatpush1.msra.mxu0 0.0
        %2447 = vmatprep.subr.mxu0 0.0
        %2448 = vmatpush1.msra.mxu0 0.0
        %2449 = vmatprep.subr.mxu0 0.0
        %2450 = vmatpush1.msra.mxu0 0.0
        %2451 = vmatprep.subr.mxu0 0.0
        %2452 = vmatpush1.msra.mxu0 0.0
        %2453 = vmatprep.subr.mxu0 0.0
        %2454 = vmatpush1.msra.mxu0 0.0
        %2455 = vmatprep.subr.mxu0 0.0
        %2456 = vmatpush1.msra.mxu0 0.0
        %2457 = vmatprep.subr.mxu0 0.0
        %2458 = vmatpush1.msra.mxu0 0.0
        %2459 = vmatprep.subr.mxu0 0.0
        %2460 = vmatpush1.msra.mxu0 0.0
        %2461 = vmatprep.subr.mxu0 0.0
        %2462 = vmatpush1.msra.mxu0 0.0
        %2463 = vmatprep.subr.mxu0 0.0
        %2464 = vmatpush1.msra.mxu0 0.0
        %2465 = vmatprep.subr.mxu0 0.0
        %2466 = vmatpush1.msra.mxu0 0.0
        %2467 = vmatprep.subr.mxu0 0.0
        %2468 = vmatpush1.msra.mxu0 0.0
        %2469 = vmatprep.subr.mxu0 0.0
        %2470 = vmatpush1.msra.mxu0 0.0
        %2471 = vmatprep.subr.mxu0 0.0
        %2472 = vmatpush1.msra.mxu0 0.0
        %2473 = vmatprep.mubr.f32.mxu0 0.0
        %2474 = vmatmul.mubr.f32.gmra.mrb[0].mxu0 %v2407
        %v2475 = vpop.f32.mrb[0].mxu0
        %v2476 = vadd.f32 0.0, %v2475
        %v2477 = vpop.f32.mrb[0].mxu0
        %2478 = vdwg.mxu0
        %v2480 = vlaneseq
        %v2481 = vshrl.u32 %v2480, 7
        %v2482 = vsub.s32 0, %v2481
        %v2483 = vrot.slane %v2240, %v2482
        %v2485 = vadd.f32 %v2483, %v2476
        %2486 = vrot.lane.b32.xlu0 %v2233, 120
        %v2487 = vpop.permute.xlu0 %2486
        %2488 = vrot.lane.b32.xlu0 %v2230, 88
        %v2489 = vpop.permute.xlu0 %2488
        %v2490 = vsel %vm942, %v2487, 0
        %v2492 = vsel %vm942, %v2489, 0
        %2494 = vmatprep.subr.mxu0 0.0
        %2495 = vmatpush1.xpose.msra.mxu0 %v2492
        %2496 = vmatprep.subr.mxu0 0.0
        %2497 = vmatpush1.xpose.msra.mxu0 0.0
        %2498 = vmatprep.subr.mxu0 0.0
        %2499 = vmatpush1.xpose.msra.mxu0 0.0
        %2500 = vmatprep.subr.mxu0 0.0
        %2501 = vmatpush1.xpose.msra.mxu0 0.0
        %2502 = vmatprep.subr.mxu0 0.0
        %2503 = vmatpush1.xpose.msra.mxu0 0.0
        %2504 = vmatprep.subr.mxu0 0.0
        %2505 = vmatpush1.xpose.msra.mxu0 0.0
        %2506 = vmatprep.subr.mxu0 0.0
        %2507 = vmatpush1.xpose.msra.mxu0 0.0
        %2508 = vmatprep.subr.mxu0 0.0
        %2509 = vmatpush1.xpose.msra.mxu0 0.0
        %2510 = vmatprep.subr.mxu0 0.0
        %2511 = vmatpush1.xpose.msra.mxu0 0.0
        %2512 = vmatprep.subr.mxu0 0.0
        %2513 = vmatpush1.xpose.msra.mxu0 0.0
        %2514 = vmatprep.subr.mxu0 0.0
        %2515 = vmatpush1.xpose.msra.mxu0 0.0
        %2516 = vmatprep.subr.mxu0 0.0
        %2517 = vmatpush1.xpose.msra.mxu0 0.0
        %2518 = vmatprep.subr.mxu0 0.0
        %2519 = vmatpush1.xpose.msra.mxu0 0.0
        %2520 = vmatprep.subr.mxu0 0.0
        %2521 = vmatpush1.xpose.msra.mxu0 0.0
        %2522 = vmatprep.subr.mxu0 0.0
        %2523 = vmatpush1.xpose.msra.mxu0 0.0
        %2524 = vmatprep.subr.mxu0 0.0
        %2525 = vmatpush1.xpose.msra.mxu0 0.0
        %2526 = vmatprep.subr.mxu0 0.0
        %2527 = vmatpush1.xpose.msra.mxu0 0.0
        %2528 = vmatprep.subr.mxu0 0.0
        %2529 = vmatpush1.xpose.msra.mxu0 0.0
        %2530 = vmatprep.subr.mxu0 0.0
        %2531 = vmatpush1.xpose.msra.mxu0 0.0
        %2532 = vmatprep.subr.mxu0 0.0
        %2533 = vmatpush1.xpose.msra.mxu0 0.0
        %2534 = vmatprep.subr.mxu0 0.0
        %2535 = vmatpush1.xpose.msra.mxu0 0.0
        %2536 = vmatprep.subr.mxu0 0.0
        %2537 = vmatpush1.xpose.msra.mxu0 0.0
        %2538 = vmatprep.subr.mxu0 0.0
        %2539 = vmatpush1.xpose.msra.mxu0 0.0
        %2540 = vmatprep.subr.mxu0 0.0
        %2541 = vmatpush1.xpose.msra.mxu0 0.0
        %2542 = vmatprep.subr.mxu0 0.0
        %2543 = vmatpush1.xpose.msra.mxu0 0.0
        %2544 = vmatprep.subr.mxu0 0.0
        %2545 = vmatpush1.xpose.msra.mxu0 0.0
        %2546 = vmatprep.subr.mxu0 0.0
        %2547 = vmatpush1.xpose.msra.mxu0 0.0
        %2548 = vmatprep.subr.mxu0 0.0
        %2549 = vmatpush1.xpose.msra.mxu0 0.0
        %2550 = vmatprep.subr.mxu0 0.0
        %2551 = vmatpush1.xpose.msra.mxu0 0.0
        %2552 = vmatprep.subr.mxu0 0.0
        %2553 = vmatpush1.xpose.msra.mxu0 0.0
        %2554 = vmatprep.subr.mxu0 0.0
        %2555 = vmatpush1.xpose.msra.mxu0 0.0
        %2556 = vmatprep.subr.mxu0 0.0
        %2557 = vmatpush1.xpose.msra.mxu0 0.0
        %2558 = vmatprep.mubr.f32.mxu0 0.0
        %2559 = vmatmul.mubr.f32.gmra.mrb[0].mxu0 %v2490
        %v2560 = vpop.f32.mrb[0].mxu0
        %v2561 = vadd.f32 %v1260, %v2560
        %v2562 = vpop.f32.mrb[0].mxu0
        %2563 = vdwg.mxu0
        %v2564 = vsel %vm942, %v2561, -inf
        %2565 = vmax.xlane.f32.xlu0 %v2564
        %v2566 = vpop.xlane.xlu0 %2565
        %v2567 = vsub.f32 %v2561, %v2566
        %v2568 = vmul.f32 %v2567, 1.442695
        %v2569 = vpow.pop %v2568
        %v2570 = vsel %vm942, %v2569, 0.0
        %2571 = vadd.xlane.f32.xlu0 %v2570
        %v2572 = vpop.xlane.xlu0 %2571
        %v2573 = vrcp.pop %v2572
        %v2574 = vmul.f32 %v2569, %v2573
        %2575 = vrot.lane.b32.xlu0 %v2230, 56
        %v2576 = vpop.permute.xlu0 %2575
        %v2579 = vsel %vm942, %v2574, 0
        %2581 = vmatprep.subr.mxu0 0.0
        %2582 = vmatpush1.msra.mxu0 %v2576
        %2583 = vmatprep.subr.mxu0 0.0
        %2584 = vmatpush1.msra.mxu0 0.0
        %2585 = vmatprep.subr.mxu0 0.0
        %2586 = vmatpush1.msra.mxu0 0.0
        %2587 = vmatprep.subr.mxu0 0.0
        %2588 = vmatpush1.msra.mxu0 0.0
        %2589 = vmatprep.subr.mxu0 0.0
        %2590 = vmatpush1.msra.mxu0 0.0
        %2591 = vmatprep.subr.mxu0 0.0
        %2592 = vmatpush1.msra.mxu0 0.0
        %2593 = vmatprep.subr.mxu0 0.0
        %2594 = vmatpush1.msra.mxu0 0.0
        %2595 = vmatprep.subr.mxu0 0.0
        %2596 = vmatpush1.msra.mxu0 0.0
        %2597 = vmatprep.subr.mxu0 0.0
        %2598 = vmatpush1.msra.mxu0 0.0
        %2599 = vmatprep.subr.mxu0 0.0
        %2600 = vmatpush1.msra.mxu0 0.0
        %2601 = vmatprep.subr.mxu0 0.0
        %2602 = vmatpush1.msra.mxu0 0.0
        %2603 = vmatprep.subr.mxu0 0.0
        %2604 = vmatpush1.msra.mxu0 0.0
        %2605 = vmatprep.subr.mxu0 0.0
        %2606 = vmatpush1.msra.mxu0 0.0
        %2607 = vmatprep.subr.mxu0 0.0
        %2608 = vmatpush1.msra.mxu0 0.0
        %2609 = vmatprep.subr.mxu0 0.0
        %2610 = vmatpush1.msra.mxu0 0.0
        %2611 = vmatprep.subr.mxu0 0.0
        %2612 = vmatpush1.msra.mxu0 0.0
        %2613 = vmatprep.subr.mxu0 0.0
        %2614 = vmatpush1.msra.mxu0 0.0
        %2615 = vmatprep.subr.mxu0 0.0
        %2616 = vmatpush1.msra.mxu0 0.0
        %2617 = vmatprep.subr.mxu0 0.0
        %2618 = vmatpush1.msra.mxu0 0.0
        %2619 = vmatprep.subr.mxu0 0.0
        %2620 = vmatpush1.msra.mxu0 0.0
        %2621 = vmatprep.subr.mxu0 0.0
        %2622 = vmatpush1.msra.mxu0 0.0
        %2623 = vmatprep.subr.mxu0 0.0
        %2624 = vmatpush1.msra.mxu0 0.0
        %2625 = vmatprep.subr.mxu0 0.0
        %2626 = vmatpush1.msra.mxu0 0.0
        %2627 = vmatprep.subr.mxu0 0.0
        %2628 = vmatpush1.msra.mxu0 0.0
        %2629 = vmatprep.subr.mxu0 0.0
        %2630 = vmatpush1.msra.mxu0 0.0
        %2631 = vmatprep.subr.mxu0 0.0
        %2632 = vmatpush1.msra.mxu0 0.0
        %2633 = vmatprep.subr.mxu0 0.0
        %2634 = vmatpush1.msra.mxu0 0.0
        %2635 = vmatprep.subr.mxu0 0.0
        %2636 = vmatpush1.msra.mxu0 0.0
        %2637 = vmatprep.subr.mxu0 0.0
        %2638 = vmatpush1.msra.mxu0 0.0
        %2639 = vmatprep.subr.mxu0 0.0
        %2640 = vmatpush1.msra.mxu0 0.0
        %2641 = vmatprep.subr.mxu0 0.0
        %2642 = vmatpush1.msra.mxu0 0.0
        %2643 = vmatprep.subr.mxu0 0.0
        %2644 = vmatpush1.msra.mxu0 0.0
        %2645 = vmatprep.mubr.f32.mxu0 0.0
        %2646 = vmatmul.mubr.f32.gmra.mrb[0].mxu0 %v2579
        %v2647 = vpop.f32.mrb[0].mxu0
        %v2648 = vadd.f32 0.0, %v2647
        %v2649 = vpop.f32.mrb[0].mxu0
        %2650 = vdwg.mxu0
        %v2652 = vsel %vm942, %v2648, 0
        %2654 = vmatprep.subr.mxu0 0.0
        %2655 = vmatpush1.msra.mxu0 %v2236
        %2656 = vmatprep.subr.mxu0 0.0
        %2657 = vmatpush1.msra.mxu0 0.0
        %2658 = vmatprep.subr.mxu0 0.0
        %2659 = vmatpush1.msra.mxu0 0.0
        %2660 = vmatprep.subr.mxu0 0.0
        %2661 = vmatpush1.msra.mxu0 0.0
        %2662 = vmatprep.subr.mxu0 0.0
        %2663 = vmatpush1.msra.mxu0 0.0
        %2664 = vmatprep.subr.mxu0 0.0
        %2665 = vmatpush1.msra.mxu0 0.0
        %2666 = vmatprep.subr.mxu0 0.0
        %2667 = vmatpush1.msra.mxu0 0.0
        %2668 = vmatprep.subr.mxu0 0.0
        %2669 = vmatpush1.msra.mxu0 0.0
        %2670 = vmatprep.subr.mxu0 0.0
        %2671 = vmatpush1.msra.mxu0 0.0
        %2672 = vmatprep.subr.mxu0 0.0
        %2673 = vmatpush1.msra.mxu0 0.0
        %2674 = vmatprep.subr.mxu0 0.0
        %2675 = vmatpush1.msra.mxu0 0.0
        %2676 = vmatprep.subr.mxu0 0.0
        %2677 = vmatpush1.msra.mxu0 0.0
        %2678 = vmatprep.subr.mxu0 0.0
        %2679 = vmatpush1.msra.mxu0 0.0
        %2680 = vmatprep.subr.mxu0 0.0
        %2681 = vmatpush1.msra.mxu0 0.0
        %2682 = vmatprep.subr.mxu0 0.0
        %2683 = vmatpush1.msra.mxu0 0.0
        %2684 = vmatprep.subr.mxu0 0.0
        %2685 = vmatpush1.msra.mxu0 0.0
        %2686 = vmatprep.subr.mxu0 0.0
        %2687 = vmatpush1.msra.mxu0 0.0
        %2688 = vmatprep.subr.mxu0 0.0
        %2689 = vmatpush1.msra.mxu0 0.0
        %2690 = vmatprep.subr.mxu0 0.0
        %2691 = vmatpush1.msra.mxu0 0.0
        %2692 = vmatprep.subr.mxu0 0.0
        %2693 = vmatpush1.msra.mxu0 0.0
        %2694 = vmatprep.subr.mxu0 0.0
        %2695 = vmatpush1.msra.mxu0 0.0
        %2696 = vmatprep.subr.mxu0 0.0
        %2697 = vmatpush1.msra.mxu0 0.0
        %2698 = vmatprep.subr.mxu0 0.0
        %2699 = vmatpush1.msra.mxu0 0.0
        %2700 = vmatprep.subr.mxu0 0.0
        %2701 = vmatpush1.msra.mxu0 0.0
        %2702 = vmatprep.subr.mxu0 0.0
        %2703 = vmatpush1.msra.mxu0 0.0
        %2704 = vmatprep.subr.mxu0 0.0
        %2705 = vmatpush1.msra.mxu0 0.0
        %2706 = vmatprep.subr.mxu0 0.0
        %2707 = vmatpush1.msra.mxu0 0.0
        %2708 = vmatprep.subr.mxu0 0.0
        %2709 = vmatpush1.msra.mxu0 0.0
        %2710 = vmatprep.subr.mxu0 0.0
        %2711 = vmatpush1.msra.mxu0 0.0
        %2712 = vmatprep.subr.mxu0 0.0
        %2713 = vmatpush1.msra.mxu0 0.0
        %2714 = vmatprep.subr.mxu0 0.0
        %2715 = vmatpush1.msra.mxu0 0.0
        %2716 = vmatprep.subr.mxu0 0.0
        %2717 = vmatpush1.msra.mxu0 0.0
        %2718 = vmatprep.mubr.f32.mxu0 0.0
        %2719 = vmatmul.mubr.f32.gmra.mrb[0].mxu0 %v2652
        %v2720 = vpop.f32.mrb[0].mxu0
        %v2721 = vadd.f32 0.0, %v2720
        %v2722 = vpop.f32.mrb[0].mxu0
        %2723 = vdwg.mxu0
        %v2724 = vadd.f32 %v2485, %v2721
        %2725 = vrot.lane.b32.xlu0 %v2233, 112
        %v2726 = vpop.permute.xlu0 %2725
        %2727 = vrot.lane.b32.xlu0 %v2230, 80
        %v2728 = vpop.permute.xlu0 %2727
        %v2729 = vsel %vm942, %v2726, 0
        %v2731 = vsel %vm942, %v2728, 0
        %2733 = vmatprep.subr.mxu0 0.0
        %2734 = vmatpush1.xpose.msra.mxu0 %v2731
        %2735 = vmatprep.subr.mxu0 0.0
        %2736 = vmatpush1.xpose.msra.mxu0 0.0
        %2737 = vmatprep.subr.mxu0 0.0
        %2738 = vmatpush1.xpose.msra.mxu0 0.0
        %2739 = vmatprep.subr.mxu0 0.0
        %2740 = vmatpush1.xpose.msra.mxu0 0.0
        %2741 = vmatprep.subr.mxu0 0.0
        %2742 = vmatpush1.xpose.msra.mxu0 0.0
        %2743 = vmatprep.subr.mxu0 0.0
        %2744 = vmatpush1.xpose.msra.mxu0 0.0
        %2745 = vmatprep.subr.mxu0 0.0
        %2746 = vmatpush1.xpose.msra.mxu0 0.0
        %2747 = vmatprep.subr.mxu0 0.0
        %2748 = vmatpush1.xpose.msra.mxu0 0.0
        %2749 = vmatprep.subr.mxu0 0.0
        %2750 = vmatpush1.xpose.msra.mxu0 0.0
        %2751 = vmatprep.subr.mxu0 0.0
        %2752 = vmatpush1.xpose.msra.mxu0 0.0
        %2753 = vmatprep.subr.mxu0 0.0
        %2754 = vmatpush1.xpose.msra.mxu0 0.0
        %2755 = vmatprep.subr.mxu0 0.0
        %2756 = vmatpush1.xpose.msra.mxu0 0.0
        %2757 = vmatprep.subr.mxu0 0.0
        %2758 = vmatpush1.xpose.msra.mxu0 0.0
        %2759 = vmatprep.subr.mxu0 0.0
        %2760 = vmatpush1.xpose.msra.mxu0 0.0
        %2761 = vmatprep.subr.mxu0 0.0
        %2762 = vmatpush1.xpose.msra.mxu0 0.0
        %2763 = vmatprep.subr.mxu0 0.0
        %2764 = vmatpush1.xpose.msra.mxu0 0.0
        %2765 = vmatprep.subr.mxu0 0.0
        %2766 = vmatpush1.xpose.msra.mxu0 0.0
        %2767 = vmatprep.subr.mxu0 0.0
        %2768 = vmatpush1.xpose.msra.mxu0 0.0
        %2769 = vmatprep.subr.mxu0 0.0
        %2770 = vmatpush1.xpose.msra.mxu0 0.0
        %2771 = vmatprep.subr.mxu0 0.0
        %2772 = vmatpush1.xpose.msra.mxu0 0.0
        %2773 = vmatprep.subr.mxu0 0.0
        %2774 = vmatpush1.xpose.msra.mxu0 0.0
        %2775 = vmatprep.subr.mxu0 0.0
        %2776 = vmatpush1.xpose.msra.mxu0 0.0
        %2777 = vmatprep.subr.mxu0 0.0
        %2778 = vmatpush1.xpose.msra.mxu0 0.0
        %2779 = vmatprep.subr.mxu0 0.0
        %2780 = vmatpush1.xpose.msra.mxu0 0.0
        %2781 = vmatprep.subr.mxu0 0.0
        %2782 = vmatpush1.xpose.msra.mxu0 0.0
        %2783 = vmatprep.subr.mxu0 0.0
        %2784 = vmatpush1.xpose.msra.mxu0 0.0
        %2785 = vmatprep.subr.mxu0 0.0
        %2786 = vmatpush1.xpose.msra.mxu0 0.0
        %2787 = vmatprep.subr.mxu0 0.0
        %2788 = vmatpush1.xpose.msra.mxu0 0.0
        %2789 = vmatprep.subr.mxu0 0.0
        %2790 = vmatpush1.xpose.msra.mxu0 0.0
        %2791 = vmatprep.subr.mxu0 0.0
        %2792 = vmatpush1.xpose.msra.mxu0 0.0
        %2793 = vmatprep.subr.mxu0 0.0
        %2794 = vmatpush1.xpose.msra.mxu0 0.0
        %2795 = vmatprep.subr.mxu0 0.0
        %2796 = vmatpush1.xpose.msra.mxu0 0.0
        %2797 = vmatprep.mubr.f32.mxu0 0.0
        %2798 = vmatmul.mubr.f32.gmra.mrb[0].mxu0 %v2729
        %v2799 = vpop.f32.mrb[0].mxu0
        %v2800 = vadd.f32 %v1499, %v2799
        %v2801 = vpop.f32.mrb[0].mxu0
        %2802 = vdwg.mxu0
        %v2803 = vsel %vm942, %v2800, -inf
        %2804 = vmax.xlane.f32.xlu0 %v2803
        %v2805 = vpop.xlane.xlu0 %2804
        %v2806 = vsub.f32 %v2800, %v2805
        %v2807 = vmul.f32 %v2806, 1.442695
        %v2808 = vpow.pop %v2807
        %v2809 = vsel %vm942, %v2808, 0.0
        %2810 = vadd.xlane.f32.xlu0 %v2809
        %v2811 = vpop.xlane.xlu0 %2810
        %v2812 = vrcp.pop %v2811
        %v2813 = vmul.f32 %v2808, %v2812
        %2814 = vrot.lane.b32.xlu0 %v2230, 48
        %v2815 = vpop.permute.xlu0 %2814
        %v2818 = vsel %vm942, %v2813, 0
        %2820 = vmatprep.subr.mxu0 0.0
        %2821 = vmatpush1.msra.mxu0 %v2815
        %2822 = vmatprep.subr.mxu0 0.0
        %2823 = vmatpush1.msra.mxu0 0.0
        %2824 = vmatprep.subr.mxu0 0.0
        %2825 = vmatpush1.msra.mxu0 0.0
        %2826 = vmatprep.subr.mxu0 0.0
        %2827 = vmatpush1.msra.mxu0 0.0
        %2828 = vmatprep.subr.mxu0 0.0
        %2829 = vmatpush1.msra.mxu0 0.0
        %2830 = vmatprep.subr.mxu0 0.0
        %2831 = vmatpush1.msra.mxu0 0.0
        %2832 = vmatprep.subr.mxu0 0.0
        %2833 = vmatpush1.msra.mxu0 0.0
        %2834 = vmatprep.subr.mxu0 0.0
        %2835 = vmatpush1.msra.mxu0 0.0
        %2836 = vmatprep.subr.mxu0 0.0
        %2837 = vmatpush1.msra.mxu0 0.0
        %2838 = vmatprep.subr.mxu0 0.0
        %2839 = vmatpush1.msra.mxu0 0.0
        %2840 = vmatprep.subr.mxu0 0.0
        %2841 = vmatpush1.msra.mxu0 0.0
        %2842 = vmatprep.subr.mxu0 0.0
        %2843 = vmatpush1.msra.mxu0 0.0
        %2844 = vmatprep.subr.mxu0 0.0
        %2845 = vmatpush1.msra.mxu0 0.0
        %2846 = vmatprep.subr.mxu0 0.0
        %2847 = vmatpush1.msra.mxu0 0.0
        %2848 = vmatprep.subr.mxu0 0.0
        %2849 = vmatpush1.msra.mxu0 0.0
        %2850 = vmatprep.subr.mxu0 0.0
        %2851 = vmatpush1.msra.mxu0 0.0
        %2852 = vmatprep.subr.mxu0 0.0
        %2853 = vmatpush1.msra.mxu0 0.0
        %2854 = vmatprep.subr.mxu0 0.0
        %2855 = vmatpush1.msra.mxu0 0.0
        %2856 = vmatprep.subr.mxu0 0.0
        %2857 = vmatpush1.msra.mxu0 0.0
        %2858 = vmatprep.subr.mxu0 0.0
        %2859 = vmatpush1.msra.mxu0 0.0
        %2860 = vmatprep.subr.mxu0 0.0
        %2861 = vmatpush1.msra.mxu0 0.0
        %2862 = vmatprep.subr.mxu0 0.0
        %2863 = vmatpush1.msra.mxu0 0.0
        %2864 = vmatprep.subr.mxu0 0.0
        %2865 = vmatpush1.msra.mxu0 0.0
        %2866 = vmatprep.subr.mxu0 0.0
        %2867 = vmatpush1.msra.mxu0 0.0
        %2868 = vmatprep.subr.mxu0 0.0
        %2869 = vmatpush1.msra.mxu0 0.0
        %2870 = vmatprep.subr.mxu0 0.0
        %2871 = vmatpush1.msra.mxu0 0.0
        %2872 = vmatprep.subr.mxu0 0.0
        %2873 = vmatpush1.msra.mxu0 0.0
        %2874 = vmatprep.subr.mxu0 0.0
        %2875 = vmatpush1.msra.mxu0 0.0
        %2876 = vmatprep.subr.mxu0 0.0
        %2877 = vmatpush1.msra.mxu0 0.0
        %2878 = vmatprep.subr.mxu0 0.0
        %2879 = vmatpush1.msra.mxu0 0.0
        %2880 = vmatprep.subr.mxu0 0.0
        %2881 = vmatpush1.msra.mxu0 0.0
        %2882 = vmatprep.subr.mxu0 0.0
        %2883 = vmatpush1.msra.mxu0 0.0
        %2884 = vmatprep.mubr.f32.mxu0 0.0
        %2885 = vmatmul.mubr.f32.gmra.mrb[0].mxu0 %v2818
        %v2886 = vpop.f32.mrb[0].mxu0
        %v2887 = vadd.f32 0.0, %v2886
        %v2888 = vpop.f32.mrb[0].mxu0
        %2889 = vdwg.mxu0
        %v2891 = vsel %vm942, %v2887, 0
        %2893 = vmatprep.subr.mxu0 0.0
        %2894 = vmatpush1.msra.mxu0 %v2237
        %2895 = vmatprep.subr.mxu0 0.0
        %2896 = vmatpush1.msra.mxu0 0.0
        %2897 = vmatprep.subr.mxu0 0.0
        %2898 = vmatpush1.msra.mxu0 0.0
        %2899 = vmatprep.subr.mxu0 0.0
        %2900 = vmatpush1.msra.mxu0 0.0
        %2901 = vmatprep.subr.mxu0 0.0
        %2902 = vmatpush1.msra.mxu0 0.0
        %2903 = vmatprep.subr.mxu0 0.0
        %2904 = vmatpush1.msra.mxu0 0.0
        %2905 = vmatprep.subr.mxu0 0.0
        %2906 = vmatpush1.msra.mxu0 0.0
        %2907 = vmatprep.subr.mxu0 0.0
        %2908 = vmatpush1.msra.mxu0 0.0
        %2909 = vmatprep.subr.mxu0 0.0
        %2910 = vmatpush1.msra.mxu0 0.0
        %2911 = vmatprep.subr.mxu0 0.0
        %2912 = vmatpush1.msra.mxu0 0.0
        %2913 = vmatprep.subr.mxu0 0.0
        %2914 = vmatpush1.msra.mxu0 0.0
        %2915 = vmatprep.subr.mxu0 0.0
        %2916 = vmatpush1.msra.mxu0 0.0
        %2917 = vmatprep.subr.mxu0 0.0
        %2918 = vmatpush1.msra.mxu0 0.0
        %2919 = vmatprep.subr.mxu0 0.0
        %2920 = vmatpush1.msra.mxu0 0.0
        %2921 = vmatprep.subr.mxu0 0.0
        %2922 = vmatpush1.msra.mxu0 0.0
        %2923 = vmatprep.subr.mxu0 0.0
        %2924 = vmatpush1.msra.mxu0 0.0
        %2925 = vmatprep.subr.mxu0 0.0
        %2926 = vmatpush1.msra.mxu0 0.0
        %2927 = vmatprep.subr.mxu0 0.0
        %2928 = vmatpush1.msra.mxu0 0.0
        %2929 = vmatprep.subr.mxu0 0.0
        %2930 = vmatpush1.msra.mxu0 0.0
        %2931 = vmatprep.subr.mxu0 0.0
        %2932 = vmatpush1.msra.mxu0 0.0
        %2933 = vmatprep.subr.mxu0 0.0
        %2934 = vmatpush1.msra.mxu0 0.0
        %2935 = vmatprep.subr.mxu0 0.0
        %2936 = vmatpush1.msra.mxu0 0.0
        %2937 = vmatprep.subr.mxu0 0.0
        %2938 = vmatpush1.msra.mxu0 0.0
        %2939 = vmatprep.subr.mxu0 0.0
        %2940 = vmatpush1.msra.mxu0 0.0
        %2941 = vmatprep.subr.mxu0 0.0
        %2942 = vmatpush1.msra.mxu0 0.0
        %2943 = vmatprep.subr.mxu0 0.0
        %2944 = vmatpush1.msra.mxu0 0.0
        %2945 = vmatprep.subr.mxu0 0.0
        %2946 = vmatpush1.msra.mxu0 0.0
        %2947 = vmatprep.subr.mxu0 0.0
        %2948 = vmatpush1.msra.mxu0 0.0
        %2949 = vmatprep.subr.mxu0 0.0
        %2950 = vmatpush1.msra.mxu0 0.0
        %2951 = vmatprep.subr.mxu0 0.0
        %2952 = vmatpush1.msra.mxu0 0.0
        %2953 = vmatprep.subr.mxu0 0.0
        %2954 = vmatpush1.msra.mxu0 0.0
        %2955 = vmatprep.subr.mxu0 0.0
        %2956 = vmatpush1.msra.mxu0 0.0
        %2957 = vmatprep.mubr.f32.mxu0 0.0
        %2958 = vmatmul.mubr.f32.gmra.mrb[0].mxu0 %v2891
        %v2959 = vpop.f32.mrb[0].mxu0
        %v2960 = vadd.f32 0.0, %v2959
        %v2961 = vpop.f32.mrb[0].mxu0
        %2962 = vdwg.mxu0
        %v2963 = vadd.f32 %v2724, %v2960
        %2964 = vrot.lane.b32.xlu0 %v2233, 104
        %v2965 = vpop.permute.xlu0 %2964
        %2966 = vrot.lane.b32.xlu0 %v2230, 72
        %v2967 = vpop.permute.xlu0 %2966
        %v2968 = vsel %vm942, %v2965, 0
        %v2970 = vsel %vm942, %v2967, 0
        %2972 = vmatprep.subr.mxu0 0.0
        %2973 = vmatpush1.xpose.msra.mxu0 %v2970
        %2974 = vmatprep.subr.mxu0 0.0
        %2975 = vmatpush1.xpose.msra.mxu0 0.0
        %2976 = vmatprep.subr.mxu0 0.0
        %2977 = vmatpush1.xpose.msra.mxu0 0.0
        %2978 = vmatprep.subr.mxu0 0.0
        %2979 = vmatpush1.xpose.msra.mxu0 0.0
        %2980 = vmatprep.subr.mxu0 0.0
        %2981 = vmatpush1.xpose.msra.mxu0 0.0
        %2982 = vmatprep.subr.mxu0 0.0
        %2983 = vmatpush1.xpose.msra.mxu0 0.0
        %2984 = vmatprep.subr.mxu0 0.0
        %2985 = vmatpush1.xpose.msra.mxu0 0.0
        %2986 = vmatprep.subr.mxu0 0.0
        %2987 = vmatpush1.xpose.msra.mxu0 0.0
        %2988 = vmatprep.subr.mxu0 0.0
        %2989 = vmatpush1.xpose.msra.mxu0 0.0
        %2990 = vmatprep.subr.mxu0 0.0
        %2991 = vmatpush1.xpose.msra.mxu0 0.0
        %2992 = vmatprep.subr.mxu0 0.0
        %2993 = vmatpush1.xpose.msra.mxu0 0.0
        %2994 = vmatprep.subr.mxu0 0.0
        %2995 = vmatpush1.xpose.msra.mxu0 0.0
        %2996 = vmatprep.subr.mxu0 0.0
        %2997 = vmatpush1.xpose.msra.mxu0 0.0
        %2998 = vmatprep.subr.mxu0 0.0
        %2999 = vmatpush1.xpose.msra.mxu0 0.0
        %3000 = vmatprep.subr.mxu0 0.0
        %3001 = vmatpush1.xpose.msra.mxu0 0.0
        %3002 = vmatprep.subr.mxu0 0.0
        %3003 = vmatpush1.xpose.msra.mxu0 0.0
        %3004 = vmatprep.subr.mxu0 0.0
        %3005 = vmatpush1.xpose.msra.mxu0 0.0
        %3006 = vmatprep.subr.mxu0 0.0
        %3007 = vmatpush1.xpose.msra.mxu0 0.0
        %3008 = vmatprep.subr.mxu0 0.0
        %3009 = vmatpush1.xpose.msra.mxu0 0.0
        %3010 = vmatprep.subr.mxu0 0.0
        %3011 = vmatpush1.xpose.msra.mxu0 0.0
        %3012 = vmatprep.subr.mxu0 0.0
        %3013 = vmatpush1.xpose.msra.mxu0 0.0
        %3014 = vmatprep.subr.mxu0 0.0
        %3015 = vmatpush1.xpose.msra.mxu0 0.0
        %3016 = vmatprep.subr.mxu0 0.0
        %3017 = vmatpush1.xpose.msra.mxu0 0.0
        %3018 = vmatprep.subr.mxu0 0.0
        %3019 = vmatpush1.xpose.msra.mxu0 0.0
        %3020 = vmatprep.subr.mxu0 0.0
        %3021 = vmatpush1.xpose.msra.mxu0 0.0
        %3022 = vmatprep.subr.mxu0 0.0
        %3023 = vmatpush1.xpose.msra.mxu0 0.0
        %3024 = vmatprep.subr.mxu0 0.0
        %3025 = vmatpush1.xpose.msra.mxu0 0.0
        %3026 = vmatprep.subr.mxu0 0.0
        %3027 = vmatpush1.xpose.msra.mxu0 0.0
        %3028 = vmatprep.subr.mxu0 0.0
        %3029 = vmatpush1.xpose.msra.mxu0 0.0
        %3030 = vmatprep.subr.mxu0 0.0
        %3031 = vmatpush1.xpose.msra.mxu0 0.0
        %3032 = vmatprep.subr.mxu0 0.0
        %3033 = vmatpush1.xpose.msra.mxu0 0.0
        %3034 = vmatprep.subr.mxu0 0.0
        %3035 = vmatpush1.xpose.msra.mxu0 0.0
        %3036 = vmatprep.mubr.f32.mxu0 0.0
        %3037 = vmatmul.mubr.f32.gmra.mrb[0].mxu0 %v2968
        %v3038 = vpop.f32.mrb[0].mxu0
        %v3039 = vadd.f32 %v1738, %v3038
        %v3040 = vpop.f32.mrb[0].mxu0
        %3041 = vdwg.mxu0
        %v3042 = vsel %vm942, %v3039, -inf
        %3043 = vmax.xlane.f32.xlu0 %v3042
        %v3044 = vpop.xlane.xlu0 %3043
        %v3045 = vsub.f32 %v3039, %v3044
        %v3046 = vmul.f32 %v3045, 1.442695
        %v3047 = vpow.pop %v3046
        %v3048 = vsel %vm942, %v3047, 0.0
        %3049 = vadd.xlane.f32.xlu0 %v3048
        %v3050 = vpop.xlane.xlu0 %3049
        %v3051 = vrcp.pop %v3050
        %v3052 = vmul.f32 %v3047, %v3051
        %3053 = vrot.lane.b32.xlu0 %v2230, 40
        %v3054 = vpop.permute.xlu0 %3053
        %v3057 = vsel %vm942, %v3052, 0
        %3059 = vmatprep.subr.mxu0 0.0
        %3060 = vmatpush1.msra.mxu0 %v3054
        %3061 = vmatprep.subr.mxu0 0.0
        %3062 = vmatpush1.msra.mxu0 0.0
        %3063 = vmatprep.subr.mxu0 0.0
        %3064 = vmatpush1.msra.mxu0 0.0
        %3065 = vmatprep.subr.mxu0 0.0
        %3066 = vmatpush1.msra.mxu0 0.0
        %3067 = vmatprep.subr.mxu0 0.0
        %3068 = vmatpush1.msra.mxu0 0.0
        %3069 = vmatprep.subr.mxu0 0.0
        %3070 = vmatpush1.msra.mxu0 0.0
        %3071 = vmatprep.subr.mxu0 0.0
        %3072 = vmatpush1.msra.mxu0 0.0
        %3073 = vmatprep.subr.mxu0 0.0
        %3074 = vmatpush1.msra.mxu0 0.0
        %3075 = vmatprep.subr.mxu0 0.0
        %3076 = vmatpush1.msra.mxu0 0.0
        %3077 = vmatprep.subr.mxu0 0.0
        %3078 = vmatpush1.msra.mxu0 0.0
        %3079 = vmatprep.subr.mxu0 0.0
        %3080 = vmatpush1.msra.mxu0 0.0
        %3081 = vmatprep.subr.mxu0 0.0
        %3082 = vmatpush1.msra.mxu0 0.0
        %3083 = vmatprep.subr.mxu0 0.0
        %3084 = vmatpush1.msra.mxu0 0.0
        %3085 = vmatprep.subr.mxu0 0.0
        %3086 = vmatpush1.msra.mxu0 0.0
        %3087 = vmatprep.subr.mxu0 0.0
        %3088 = vmatpush1.msra.mxu0 0.0
        %3089 = vmatprep.subr.mxu0 0.0
        %3090 = vmatpush1.msra.mxu0 0.0
        %3091 = vmatprep.subr.mxu0 0.0
        %3092 = vmatpush1.msra.mxu0 0.0
        %3093 = vmatprep.subr.mxu0 0.0
        %3094 = vmatpush1.msra.mxu0 0.0
        %3095 = vmatprep.subr.mxu0 0.0
        %3096 = vmatpush1.msra.mxu0 0.0
        %3097 = vmatprep.subr.mxu0 0.0
        %3098 = vmatpush1.msra.mxu0 0.0
        %3099 = vmatprep.subr.mxu0 0.0
        %3100 = vmatpush1.msra.mxu0 0.0
        %3101 = vmatprep.subr.mxu0 0.0
        %3102 = vmatpush1.msra.mxu0 0.0
        %3103 = vmatprep.subr.mxu0 0.0
        %3104 = vmatpush1.msra.mxu0 0.0
        %3105 = vmatprep.subr.mxu0 0.0
        %3106 = vmatpush1.msra.mxu0 0.0
        %3107 = vmatprep.subr.mxu0 0.0
        %3108 = vmatpush1.msra.mxu0 0.0
        %3109 = vmatprep.subr.mxu0 0.0
        %3110 = vmatpush1.msra.mxu0 0.0
        %3111 = vmatprep.subr.mxu0 0.0
        %3112 = vmatpush1.msra.mxu0 0.0
        %3113 = vmatprep.subr.mxu0 0.0
        %3114 = vmatpush1.msra.mxu0 0.0
        %3115 = vmatprep.subr.mxu0 0.0
        %3116 = vmatpush1.msra.mxu0 0.0
        %3117 = vmatprep.subr.mxu0 0.0
        %3118 = vmatpush1.msra.mxu0 0.0
        %3119 = vmatprep.subr.mxu0 0.0
        %3120 = vmatpush1.msra.mxu0 0.0
        %3121 = vmatprep.subr.mxu0 0.0
        %3122 = vmatpush1.msra.mxu0 0.0
        %3123 = vmatprep.mubr.f32.mxu0 0.0
        %3124 = vmatmul.mubr.f32.gmra.mrb[0].mxu0 %v3057
        %v3125 = vpop.f32.mrb[0].mxu0
        %v3126 = vadd.f32 0.0, %v3125
        %v3127 = vpop.f32.mrb[0].mxu0
        %3128 = vdwg.mxu0
        %v3130 = vsel %vm942, %v3126, 0
        %3132 = vmatprep.subr.mxu0 0.0
        %3133 = vmatpush1.msra.mxu0 %v2238
        %3134 = vmatprep.subr.mxu0 0.0
        %3135 = vmatpush1.msra.mxu0 0.0
        %3136 = vmatprep.subr.mxu0 0.0
        %3137 = vmatpush1.msra.mxu0 0.0
        %3138 = vmatprep.subr.mxu0 0.0
        %3139 = vmatpush1.msra.mxu0 0.0
        %3140 = vmatprep.subr.mxu0 0.0
        %3141 = vmatpush1.msra.mxu0 0.0
        %3142 = vmatprep.subr.mxu0 0.0
        %3143 = vmatpush1.msra.mxu0 0.0
        %3144 = vmatprep.subr.mxu0 0.0
        %3145 = vmatpush1.msra.mxu0 0.0
        %3146 = vmatprep.subr.mxu0 0.0
        %3147 = vmatpush1.msra.mxu0 0.0
        %3148 = vmatprep.subr.mxu0 0.0
        %3149 = vmatpush1.msra.mxu0 0.0
        %3150 = vmatprep.subr.mxu0 0.0
        %3151 = vmatpush1.msra.mxu0 0.0
        %3152 = vmatprep.subr.mxu0 0.0
        %3153 = vmatpush1.msra.mxu0 0.0
        %3154 = vmatprep.subr.mxu0 0.0
        %3155 = vmatpush1.msra.mxu0 0.0
        %3156 = vmatprep.subr.mxu0 0.0
        %3157 = vmatpush1.msra.mxu0 0.0
        %3158 = vmatprep.subr.mxu0 0.0
        %3159 = vmatpush1.msra.mxu0 0.0
        %3160 = vmatprep.subr.mxu0 0.0
        %3161 = vmatpush1.msra.mxu0 0.0
        %3162 = vmatprep.subr.mxu0 0.0
        %3163 = vmatpush1.msra.mxu0 0.0
        %3164 = vmatprep.subr.mxu0 0.0
        %3165 = vmatpush1.msra.mxu0 0.0
        %3166 = vmatprep.subr.mxu0 0.0
        %3167 = vmatpush1.msra.mxu0 0.0
        %3168 = vmatprep.subr.mxu0 0.0
        %3169 = vmatpush1.msra.mxu0 0.0
        %3170 = vmatprep.subr.mxu0 0.0
        %3171 = vmatpush1.msra.mxu0 0.0
        %3172 = vmatprep.subr.mxu0 0.0
        %3173 = vmatpush1.msra.mxu0 0.0
        %3174 = vmatprep.subr.mxu0 0.0
        %3175 = vmatpush1.msra.mxu0 0.0
        %3176 = vmatprep.subr.mxu0 0.0
        %3177 = vmatpush1.msra.mxu0 0.0
        %3178 = vmatprep.subr.mxu0 0.0
        %3179 = vmatpush1.msra.mxu0 0.0
        %3180 = vmatprep.subr.mxu0 0.0
        %3181 = vmatpush1.msra.mxu0 0.0
        %3182 = vmatprep.subr.mxu0 0.0
        %3183 = vmatpush1.msra.mxu0 0.0
        %3184 = vmatprep.subr.mxu0 0.0
        %3185 = vmatpush1.msra.mxu0 0.0
        %3186 = vmatprep.subr.mxu0 0.0
        %3187 = vmatpush1.msra.mxu0 0.0
        %3188 = vmatprep.subr.mxu0 0.0
        %3189 = vmatpush1.msra.mxu0 0.0
        %3190 = vmatprep.subr.mxu0 0.0
        %3191 = vmatpush1.msra.mxu0 0.0
        %3192 = vmatprep.subr.mxu0 0.0
        %3193 = vmatpush1.msra.mxu0 0.0
        %3194 = vmatprep.subr.mxu0 0.0
        %3195 = vmatpush1.msra.mxu0 0.0
        %3196 = vmatprep.mubr.f32.mxu0 0.0
        %3197 = vmatmul.mubr.f32.gmra.mrb[0].mxu0 %v3130
        %v3198 = vpop.f32.mrb[0].mxu0
        %v3199 = vadd.f32 0.0, %v3198
        %v3200 = vpop.f32.mrb[0].mxu0
        %3201 = vdwg.mxu0
        %v3202 = vadd.f32 %v2963, %v3199
        %v3203 = vadd.f32 %v2115, %v3202
        %s3204 = scalar_lea.vmem %s12, 1
        %v3205 = vld [vmem:[%s3204] sm:$0x1]
        %s3206 = scalar_lea.vmem %s13, 1
        %v3207 = vld [vmem:[%s3206] sm:$0x1]
        %v3208 = vsel %vm765, %v3203, 0.0
        %3209 = vadd.xlane.f32.xlu0 %v3208
        %v3210 = vpop.xlane.xlu0 %3209
        %v3211 = vmul.f32 %v3210, %v769
        %v3212 = vsub.f32 %v3203, %v3211
        %v3213 = vmul.f32 %v3212, %v3212
        %v3214 = vsel %vm765, %v3213, 0.0
        %3215 = vadd.xlane.f32.xlu0 %v3214
        %v3216 = vpop.xlane.xlu0 %3215
        %v3217 = vmul.f32 %v3216, %v769
        %v3218 = vadd.f32 %v3217, 1e-05
        %v3219 = vrsqrt.pop %v3218
        %v3220 = vmul.f32 %v3212, %v3219
        %v3222 = vlaneseq
        %v3223 = vshrl.u32 %v3222, 7
        %v3224 = vsub.s32 0, %v3223
        %v3225 = vrot.slane %v3205, %v3224
        %v3227 = vmul.f32 %v3220, %v3225
        %v3229 = vlaneseq
        %v3230 = vshrl.u32 %v3229, 7
        %v3231 = vsub.s32 0, %v3230
        %v3232 = vrot.slane %v3207, %v3231
        %v3234 = vadd.f32 %v3227, %v3232
        %s3235 = scalar_lea.vmem %s14, 32
        %v3236 = vld [vmem:[%s3235] sm:$0xff]
        %v3237 = vld [vmem:[%s3235 + $0x8] sm:$0xff]
        %v3238 = vld [vmem:[%s3235 + $0x10] sm:$0xff]
        %v3239 = vld [vmem:[%s3235 + $0x18] sm:$0xff]
        %s3240 = scalar_lea.vmem %s15, 1
        %v3241 = vld [vmem:[%s3240] sm:$0x1]
        %v3243 = vlaneseq
        %v3244 = vshrl.u32 %v3243, 7
        %v3245 = vsub.s32 0, %v3244
        %v3246 = vrot.slane %v3241, %v3245
        %v3249 = vsel %vm765, %v3234, 0
        %3251 = vmatprep.subr.mxu0 0.0
        %3252 = vmatpush1.msra.mxu0 %v3236
        %3253 = vmatprep.subr.mxu0 0.0
        %3254 = vmatpush1.msra.mxu0 %v3237
        %3255 = vmatprep.subr.mxu0 0.0
        %3256 = vmatpush1.msra.mxu0 %v3238
        %3257 = vmatprep.subr.mxu0 0.0
        %3258 = vmatpush1.msra.mxu0 %v3239
        %3259 = vmatprep.subr.mxu0 0.0
        %3260 = vmatpush1.msra.mxu0 0.0
        %3261 = vmatprep.subr.mxu0 0.0
        %3262 = vmatpush1.msra.mxu0 0.0
        %3263 = vmatprep.subr.mxu0 0.0
        %3264 = vmatpush1.msra.mxu0 0.0
        %3265 = vmatprep.subr.mxu0 0.0
        %3266 = vmatpush1.msra.mxu0 0.0
        %3267 = vmatprep.subr.mxu0 0.0
        %3268 = vmatpush1.msra.mxu0 0.0
        %3269 = vmatprep.subr.mxu0 0.0
        %3270 = vmatpush1.msra.mxu0 0.0
        %3271 = vmatprep.subr.mxu0 0.0
        %3272 = vmatpush1.msra.mxu0 0.0
        %3273 = vmatprep.subr.mxu0 0.0
        %3274 = vmatpush1.msra.mxu0 0.0
        %3275 = vmatprep.subr.mxu0 0.0
        %3276 = vmatpush1.msra.mxu0 0.0
        %3277 = vmatprep.subr.mxu0 0.0
        %3278 = vmatpush1.msra.mxu0 0.0
        %3279 = vmatprep.subr.mxu0 0.0
        %3280 = vmatpush1.msra.mxu0 0.0
        %3281 = vmatprep.subr.mxu0 0.0
        %3282 = vmatpush1.msra.mxu0 0.0
        %3283 = vmatprep.subr.mxu0 0.0
        %3284 = vmatpush1.msra.mxu0 0.0
        %3285 = vmatprep.subr.mxu0 0.0
        %3286 = vmatpush1.msra.mxu0 0.0
        %3287 = vmatprep.subr.mxu0 0.0
        %3288 = vmatpush1.msra.mxu0 0.0
        %3289 = vmatprep.subr.mxu0 0.0
        %3290 = vmatpush1.msra.mxu0 0.0
        %3291 = vmatprep.subr.mxu0 0.0
        %3292 = vmatpush1.msra.mxu0 0.0
        %3293 = vmatprep.subr.mxu0 0.0
        %3294 = vmatpush1.msra.mxu0 0.0
        %3295 = vmatprep.subr.mxu0 0.0
        %3296 = vmatpush1.msra.mxu0 0.0
        %3297 = vmatprep.subr.mxu0 0.0
        %3298 = vmatpush1.msra.mxu0 0.0
        %3299 = vmatprep.subr.mxu0 0.0
        %3300 = vmatpush1.msra.mxu0 0.0
        %3301 = vmatprep.subr.mxu0 0.0
        %3302 = vmatpush1.msra.mxu0 0.0
        %3303 = vmatprep.subr.mxu0 0.0
        %3304 = vmatpush1.msra.mxu0 0.0
        %3305 = vmatprep.subr.mxu0 0.0
        %3306 = vmatpush1.msra.mxu0 0.0
        %3307 = vmatprep.subr.mxu0 0.0
        %3308 = vmatpush1.msra.mxu0 0.0
        %3309 = vmatprep.subr.mxu0 0.0
        %3310 = vmatpush1.msra.mxu0 0.0
        %3311 = vmatprep.subr.mxu0 0.0
        %3312 = vmatpush1.msra.mxu0 0.0
        %3313 = vmatprep.subr.mxu0 0.0
        %3314 = vmatpush1.msra.mxu0 0.0
        %3315 = vmatprep.mubr.f32.mxu0 0.0
        %3316 = vmatmul.mubr.f32.gmra.mrb[0].mxu0 %v3249
        %v3317 = vpop.f32.mrb[0].mxu0
        %v3318 = vadd.f32 %v3246, %v3317
        %v3319 = vpop.f32.mrb[0].mxu0
        %3320 = vdwg.mxu0
        %v3321 = vmul.f32 %v3318, 0.5
        %v3322 = vmul.f32 %v3318, 0.044715
        %v3323 = vmul.f32 %v3322, %v3318
        %v3324 = vmul.f32 %v3323, %v3318
        %v3325 = vadd.f32 %v3318, %v3324
        %v3326 = vmul.f32 %v3325, 0.7978846
        %v3327 = vtanh.pop %v3326
        %v3328 = vadd.f32 %v3327, 1.0
        %v3329 = vmul.f32 %v3321, %v3328
        %s3330 = scalar_lea.vmem %s16, 64
        %v3331 = vld [vmem:[%s3330] sm:$0xff]
        %v3332 = vld [vmem:[%s3330 + $0x8] sm:$0xff]
        %v3333 = vld [vmem:[%s3330 + $0x10] sm:$0xff]
        %v3334 = vld [vmem:[%s3330 + $0x18] sm:$0xff]
        %v3335 = vld [vmem:[%s3330 + $0x20] sm:$0xff]
        %v3336 = vld [vmem:[%s3330 + $0x28] sm:$0xff]
        %v3337 = vld [vmem:[%s3330 + $0x30] sm:$0xff]
        %v3338 = vld [vmem:[%s3330 + $0x38] sm:$0xff]
        %v3340 = vsel %vm2033, %v3329, 0
        %3342 = vmatprep.subr.mxu0 0.0
        %3343 = vmatpush1.msra.mxu0 %v3331
        %3344 = vmatprep.subr.mxu0 0.0
        %3345 = vmatpush1.msra.mxu0 %v3332
        %3346 = vmatprep.subr.mxu0 0.0
        %3347 = vmatpush1.msra.mxu0 %v3333
        %3348 = vmatprep.subr.mxu0 0.0
        %3349 = vmatpush1.msra.mxu0 %v3334
        %3350 = vmatprep.subr.mxu0 0.0
        %3351 = vmatpush1.msra.mxu0 %v3335
        %3352 = vmatprep.subr.mxu0 0.0
        %3353 = vmatpush1.msra.mxu0 %v3336
        %3354 = vmatprep.subr.mxu0 0.0
        %3355 = vmatpush1.msra.mxu0 %v3337
        %3356 = vmatprep.subr.mxu0 0.0
        %3357 = vmatpush1.msra.mxu0 %v3338
        %3358 = vmatprep.subr.mxu0 0.0
        %3359 = vmatpush1.msra.mxu0 0.0
        %3360 = vmatprep.subr.mxu0 0.0
        %3361 = vmatpush1.msra.mxu0 0.0
        %3362 = vmatprep.subr.mxu0 0.0
        %3363 = vmatpush1.msra.mxu0 0.0
        %3364 = vmatprep.subr.mxu0 0.0
        %3365 = vmatpush1.msra.mxu0 0.0
        %3366 = vmatprep.subr.mxu0 0.0
        %3367 = vmatpush1.msra.mxu0 0.0
        %3368 = vmatprep.subr.mxu0 0.0
        %3369 = vmatpush1.msra.mxu0 0.0
        %3370 = vmatprep.subr.mxu0 0.0
        %3371 = vmatpush1.msra.mxu0 0.0
        %3372 = vmatprep.subr.mxu0 0.0
        %3373 = vmatpush1.msra.mxu0 0.0
        %3374 = vmatprep.subr.mxu0 0.0
        %3375 = vmatpush1.msra.mxu0 0.0
        %3376 = vmatprep.subr.mxu0 0.0
        %3377 = vmatpush1.msra.mxu0 0.0
        %3378 = vmatprep.subr.mxu0 0.0
        %3379 = vmatpush1.msra.mxu0 0.0
        %3380 = vmatprep.subr.mxu0 0.0
        %3381 = vmatpush1.msra.mxu0 0.0
        %3382 = vmatprep.subr.mxu0 0.0
        %3383 = vmatpush1.msra.mxu0 0.0
        %3384 = vmatprep.subr.mxu0 0.0
        %3385 = vmatpush1.msra.mxu0 0.0
        %3386 = vmatprep.subr.mxu0 0.0
        %3387 = vmatpush1.msra.mxu0 0.0
        %3388 = vmatprep.subr.mxu0 0.0
        %3389 = vmatpush1.msra.mxu0 0.0
        %3390 = vmatprep.subr.mxu0 0.0
        %3391 = vmatpush1.msra.mxu0 0.0
        %3392 = vmatprep.subr.mxu0 0.0
        %3393 = vmatpush1.msra.mxu0 0.0
        %3394 = vmatprep.subr.mxu0 0.0
        %3395 = vmatpush1.msra.mxu0 0.0
        %3396 = vmatprep.subr.mxu0 0.0
        %3397 = vmatpush1.msra.mxu0 0.0
        %3398 = vmatprep.subr.mxu0 0.0
        %3399 = vmatpush1.msra.mxu0 0.0
        %3400 = vmatprep.subr.mxu0 0.0
        %3401 = vmatpush1.msra.mxu0 0.0
        %3402 = vmatprep.subr.mxu0 0.0
        %3403 = vmatpush1.msra.mxu0 0.0
        %3404 = vmatprep.subr.mxu0 0.0
        %3405 = vmatpush1.msra.mxu0 0.0
        %3406 = vmatprep.mubr.f32.mxu0 0.0
        %3407 = vmatmul.mubr.f32.gmra.mrb[0].mxu0 %v3340
        %v3408 = vpop.f32.mrb[0].mxu0
        %v3409 = vadd.f32 0.0, %v3408
        %v3410 = vpop.f32.mrb[0].mxu0
        %3411 = vdwg.mxu0
        %v3412 = vadd.f32 %v3203, %v3409
        %s3413 = scalar_lea.vmem %s17, 1
        %v3414 = vld [vmem:[%s3413] sm:$0x1]
        %v3416 = vlaneseq
        %v3417 = vshrl.u32 %v3416, 7
        %v3418 = vsub.s32 0, %v3417
        %v3419 = vrot.slane %v3414, %v3418
        %v3421 = vadd.f32 %v3412, %v3419
        %v3422 = vld [vmem:[%s18] sm:$0x1]
        %v3423 = vld [vmem:[%s19] sm:$0x1]
        %v3424 = vsel %vm765, %v3421, 0.0
        %3425 = vadd.xlane.f32.xlu0 %v3424
        %v3426 = vpop.xlane.xlu0 %3425
        %v3427 = vmul.f32 %v3426, %v769
        %v3428 = vsub.f32 %v3421, %v3427
        %v3429 = vmul.f32 %v3428, %v3428
        %v3430 = vsel %vm765, %v3429, 0.0
        %3431 = vadd.xlane.f32.xlu0 %v3430
        %v3432 = vpop.xlane.xlu0 %3431
        %v3433 = vmul.f32 %v3432, %v769
        %v3434 = vadd.f32 %v3433, 1e-05
        %v3435 = vrsqrt.pop %v3434
        %v3436 = vmul.f32 %v3428, %v3435
        %v3438 = vlaneseq
        %v3439 = vshrl.u32 %v3438, 7
        %v3440 = vsub.s32 0, %v3439
        %v3441 = vrot.slane %v3422, %v3440
        %v3443 = vmul.f32 %v3436, %v3441
        %v3445 = vlaneseq
        %v3446 = vshrl.u32 %v3445, 7
        %v3447 = vsub.s32 0, %v3446
        %v3448 = vrot.slane %v3423, %v3447
        %v3450 = vadd.f32 %v3443, %v3448
        %3451 = vst.msk [vmem:[%s738] sm:$0xff] %vm765, %v3450
        %v3452 = vsel %vm809, %v2316, 0.0
        %3453 = vst.msk [vmem:[%s761] sm:$0xff] %vm942, %v3452
        %v3454 = vsel %vm809, %v2561, 0.0
        %s3455 = scalar_lea.vmem %s761, 8
        %3456 = vst.msk [vmem:[%s3455] sm:$0xff] %vm942, %v3454
        %v3457 = vsel %vm809, %v2800, 0.0
        %s3458 = scalar_lea.vmem %s761, 16
        %3459 = vst.msk [vmem:[%s3458] sm:$0xff] %vm942, %v3457
        %v3460 = vsel %vm809, %v3039, 0.0
        %s3461 = scalar_lea.vmem %s761, 24
        %3462 = vst.msk [vmem:[%s3461] sm:$0xff] %vm942, %v3460
        %s3463 = sand.u32 %s484, 1
        %s3464 = scalar_lea.sflag [#allocation4], %s3463
        %s3465 = sand.u32 %s484, 1
        %s3466 = smul.addr %s3465, 8
        %s3467 = scalar_lea.vmem [#allocation3], %s3466
        %p3468 = scmp.lt.s32.totalorder %s36, 1
        %s3469 = scalar_select %p3468, %s36, 1
        %s3470 = smul.addr %s3469, 4
        %s3471 = smul.addr %s3470, 8
        %s3472 = scalar_lea.vmem %s21, %s3471
        // Predicated region
        $region139: #{unimol_forward.3} parent=133 // pred_check
          %p3473 = pneg %p494
        $region140: #{unimol_forward.3} parent=133 // pred_check_branch
          %3475 = sbr.rel (%p3473) target = $region142
        $region141: #{unimol_forward.3} parent=133 // pred_region
          %s3477 = ssub.s32 128, 128
          %3478 = vsyncadd %s3464, %s3477
          %s3479 = smul.addr %s36, 128
          %s3480 = scalar_lea.hbm %s20, %s3479
          %s3482 = sshll.u32 %s3467, 4
          %s3483 = int_to_ptr.vmem [resolvable:$true] %s3482
          %3485 = dma.vmem_to_hbm [thread:$0]  %s3483, 128, %s3480, %s3464
        $region142: #{unimol_forward.3} parent=133 // pred_fallthru
          _
        // Predicated region
        $region143: #{unimol_forward.3} parent=133 // pred_check
          %p3486 = pneg %p520
        $region144: #{unimol_forward.3} parent=133 // pred_check_branch
          %3488 = sbr.rel (%p3486) target = $region146
        $region145: #{unimol_forward.3} parent=133 // pred_region
          _
        $region146: #{unimol_forward.3} parent=133 // pred_fallthru
          _
      $region134: #{unimol_forward.3} parent=5 // pred_fallthru
        _
      %p3489 = scmp.le.s32.totalorder 2, %s31
      // Predicated region
      $region147: #{unimol_forward.3} parent=5 // pred_check
        %p3490 = pneg %p3489
      $region148: #{unimol_forward.3} parent=5 // pred_check_branch
        %3492 = sbr.rel (%p3490) target = $region150
      $region149: #{unimol_forward.3} parent=5 // pred_region
        %s3493 = ssub.s32 %s31, 2
        // Predicated region
        $region151: #{unimol_forward.3} parent=149 // pred_check
          %p3494 = pneg %p500
        $region152: #{unimol_forward.3} parent=149 // pred_check_branch
          %3496 = sbr.rel (%p3494) target = $region154
        $region153: #{unimol_forward.3} parent=149 // pred_region
          %s3497 = sand.u32 %s485, 1
          %s3498 = scalar_lea.sflag [#allocation4], %s3497
          %s3499 = sand.u32 %s485, 1
          %s3500 = smul.addr %s3499, 8
          %s3501 = scalar_lea.vmem [#allocation3], %s3500
          %3502 = dma.done %s3498, 128
        $region154: #{unimol_forward.3} parent=149 // pred_fallthru
          _
        // Predicated region
        $region155: #{unimol_forward.3} parent=149 // pred_check
          %p3503 = pneg %p526
        $region156: #{unimol_forward.3} parent=149 // pred_check_branch
          %3505 = sbr.rel (%p3503) target = $region158
        $region157: #{unimol_forward.3} parent=149 // pred_region
          %p3506 = scmp.lt.s32.totalorder %s37, 1
          %s3507 = scalar_select %p3506, %s37, 1
          %s3508 = smul.addr %s3507, 4
          %s3509 = smul.addr %s3508, 8
          %s3510 = scalar_lea.vmem %s21, %s3509
        $region158: #{unimol_forward.3} parent=149 // pred_fallthru
          _
      $region150: #{unimol_forward.3} parent=5 // pred_fallthru
        _
    $region6: #{unimol_forward.3} parent=1 // loop_footer
      %s35 = sadd.s32 1, %s31
    $region7: #{unimol_forward.3} parent=1 // loop_footer_branch
      %30 = sbr.rel target = $region3
    $region8: #{unimol_forward.3} parent=1 // loop_exit
      _
    %3511 = vsyncpa [#allocation4], 1
    %s3512 = scalar_lea.sflag [#allocation4], 1
    %3513 = vsyncpa %s3512, 1

</llo_original>
